<compile_context>
chip_gen: v6e
topology: v6e:2x2x1
jax: 0.10.0
libtpu: 0.0.40
codegen_flags: <defaults>
</compile_context>

<pallas_src>
import math
import numpy as np
import jax
import jax.numpy as jnp
from jax.experimental import pallas as pl
from jax.experimental.pallas import tpu as pltpu

PAD = 4  # padding of the largest (9x9) spatial kernel


def gcsca_forward(x, kp):
    """x: (B, C, H, W) float32.  kp: dict of kernel-layout parameters."""
    B, C, H, W = x.shape
    HW = H * W
    Cr = kp["wfc1t"].shape[1]
    HP = H + 2 * PAD                 # padded rows for the fused 9x9 conv
    WP = max(W + 2 * PAD, 128)       # lane-aligned padded width

    def kernel(x_ref, wfc1t_ref, wfc2_ref, w12_ref, w2_ref, wr_ref, br_ref,
               keff_ref, wc_ref, ws_ref, out_ref, pad_ref, sflat_ref):
        x_flat = x_ref[0]                                    # (C, HW) lane-dense

        # ---------------- channel attention (VPU, no MXU GEMV) ----------------
        avg_c = jnp.mean(x_flat, axis=1, keepdims=True)      # (C, 1)
        max_c = jnp.max(x_flat, axis=1, keepdims=True)       # (C, 1)
        s = avg_c + max_c
        h1 = jnp.maximum(
            jnp.sum(wfc1t_ref[...] * s, axis=0, keepdims=True), 0.0)  # (1, Cr)
        catt = jax.nn.sigmoid(
            jnp.sum(wfc2_ref[...] * h1, axis=1, keepdims=True))       # (C, 1)
        x_c = x_flat * (wc_ref[0] * catt)                    # (C, HW)

        # ------------- spatial attention: single fused 2x9x9 conv -------------
        mx_flat = jnp.max(x_c, axis=0, keepdims=True)        # (1, HW)
        av_flat = jnp.mean(x_c, axis=0, keepdims=True)       # (1, HW)

        # Re-zero every step so the kernel is correct when the batch axis is
        # sharded across TensorCores ("parallel"); this is only a few vregs.
        pad_ref[...] = jnp.zeros_like(pad_ref)
        for h in range(H):
            pad_ref[0, PAD + h:PAD + h + 1, PAD:PAD + W] = \
                mx_flat[:, h * W:(h + 1) * W]
            pad_ref[1, PAD + h:PAD + h + 1, PAD:PAD + W] = \
                av_flat[:, h * W:(h + 1) * W]

        acc = jnp.zeros((H, W), jnp.float32)
        for ci in range(2):
            for ky in range(9):
                for kx in range(9):
                    acc = acc + (pad_ref[ci, ky:ky + H, kx:kx + W]
                                 * keff_ref[ci * 81 + ky * 9 + kx])
        satt = jax.nn.sigmoid(acc)                           # (H, W)

        # Row-copy satt back into the lane-dense layout (no in-kernel reshape).
        for h in range(H):
            sflat_ref[:, h * W:(h + 1) * W] = satt[h:h + 1, :]
        x_s = x_c * (ws_ref[0] * sflat_ref[...])             # (C, HW)

        # ------------- fused epilogue: one lane-dense MXU stage ---------------
        # out = w1 @ x_s + w2 @ (x_s + g) + w_res @ x + b
        #     = (w1 + w2) @ x_s + w_res @ x + (w2 @ g + b)
        g = jnp.mean(x_s, axis=1, keepdims=True)             # (C, 1)
        bias = jnp.dot(w2_ref[...], g,
                       preferred_element_type=jnp.float32) + br_ref[...]
        out = (jnp.dot(w12_ref[...], x_s, preferred_element_type=jnp.float32)
               + jnp.dot(wr_ref[...], x_flat, preferred_element_type=jnp.float32)
               + bias)
        out_ref[0] = out                                     # lane-dense store

    smem = pl.BlockSpec(memory_space=pltpu.MemorySpace.SMEM)

    # TODO(synk): for production C/H/W, additionally tile the grid over the
    # H*W axis in the matmul stage so the per-step block fits v7x's 64 MiB VMEM.
    out_flat = pl.pallas_call(
        kernel,
        out_shape=jax.ShapeDtypeStruct((B, C, HW), jnp.float32),
        grid=(B,),
        in_specs=[
            pl.BlockSpec((1, C, HW), lambda b: (b, 0, 0)),   # x (lane-dense)
            pl.BlockSpec((C, Cr), lambda b: (0, 0)),         # fc1^T
            pl.BlockSpec((C, Cr), lambda b: (0, 0)),         # fc2
            pl.BlockSpec((C, C), lambda b: (0, 0)),          # w1 + w2
            pl.BlockSpec((C, C), lambda b: (0, 0)),          # w2 (bias hoist)
            pl.BlockSpec((C, C), lambda b: (0, 0)),          # residual conv
            pl.BlockSpec((C, 1), lambda b: (0, 0)),          # residual bias
            smem,                                            # fused 2x9x9 weights
            smem, smem,                                      # weight_c, weight_s
        ],
        out_specs=pl.BlockSpec((1, C, HW), lambda b: (b, 0, 0)),
        scratch_shapes=[
            pltpu.VMEM((2, HP, WP), jnp.float32),   # zero-padded spatial maps
            pltpu.VMEM((1, HW), jnp.float32),       # flattened spatial attention
        ],
        compiler_params=pltpu.CompilerParams(
            dimension_semantics=("parallel",)),     # v7x: batch over 2 TCs
    )(x.reshape(B, C, HW), kp["wfc1t"], kp["wfc2"], kp["w12"], kp["w2"],
      kp["w_res"], kp["b_res2"], kp["keff"], kp["wc"], kp["ws"])
    return out_flat.reshape(B, C, H, W)


# ----------------------------- parameters -----------------------------
def init_params(key, C, reduction=8):
    Cr = max(C // reduction, 1)
    ks = jax.random.split(key, 10)

    def u(k, shape, fan_in):
        b = 1.0 / math.sqrt(fan_in)
        return jax.random.uniform(k, shape, jnp.float32, -b, b)

    p = dict(
        w_fc1=u(ks[0], (Cr, C), C),          # Conv2d(C, Cr, 1, bias=False)
        w_fc2=u(ks[1], (C, Cr), Cr),         # Conv2d(Cr, C, 1, bias=False)
        w_s3=u(ks[2], (2, 3, 3), 2 * 9),     # Conv2d(2, 1, 3, pad=1)   -> (1,2,3,3)
        w_s5=u(ks[3], (2, 5, 5), 25),        # Conv2d(2, 2, 5, groups=2) -> (2,1,5,5)
        w_s7=u(ks[4], (2, 7, 7), 49),        # Conv2d(2, 2, 7, groups=2) -> (2,1,7,7)
        w_s9=u(ks[5], (2, 9, 9), 2 * 81),    # Conv2d(2, 1, 9, pad=4)   -> (1,2,9,9)
        w_fuse=u(ks[6], (2,), 2),            # Conv2d(2, 1, 1)
        w_final=u(ks[7], (C, 2 * C), 2 * C), # Conv2d(2C, C, 1, bias=False)
        w_res=u(ks[8], (C, C), C),           # Conv2d(C, C, 1)
        b_res=u(ks[9], (C,), C),
        wc=jnp.ones((1,), jnp.float32),      # nn.Parameter(torch.ones(1))
        ws=jnp.ones((1,), jnp.float32),
    )
    return p, Cr


def make_kernel_params(p, C, Cr):
    # Fold conv3/conv5/conv7/conv9 + 1x1 fuse into one effective 2x9x9 kernel:
    #   fuse = wf0*s0 + wf1*s1,   s_ci = a3 + a5[ci] + a7[ci] + a9
    #   =>  K_eff[ci] = (wf0+wf1)*(pad9(w3[ci]) + w9[ci])
    #                 +  wf[ci] *(pad9(w5[ci]) + pad9(w7[ci]))
    wf = p["w_fuse"]

    def pad9(k, ksz):
        off = (9 - ksz) // 2
        return jnp.zeros((9, 9), jnp.float32).at[off:off + ksz, off:off + ksz].set(k)

    keff = []
    for ci in range(2):
        keff.append((wf[0] + wf[1]) * (pad9(p["w_s3"][ci], 3) + p["w_s9"][ci])
                    + wf[ci] * (pad9(p["w_s5"][ci], 5) + pad9(p["w_s7"][ci], 7)))
    keff = jnp.stack(keff).reshape(-1)       # (2*81,)

    w1 = p["w_final"][:, :C]
    w2 = p["w_final"][:, C:]
    return dict(
        wfc1t=p["w_fc1"].T,                  # (C, Cr) — VPU layout
        wfc2=p["w_fc2"],                     # (C, Cr)
        w12=w1 + w2,                         # fused final-conv weight
        w2=w2,                               # for the hoisted w2 @ g bias term
        w_res=p["w_res"],
        b_res2=p["b_res"].reshape(C, 1),
        keff=keff,
        wc=p["wc"],
        ws=p["ws"],
    )


# ----------------------------- pure-JAX reference -----------------------------
def gcsca_ref(x, p):
    hi = jax.lax.Precision.HIGHEST
    avg = jnp.mean(x, axis=(2, 3), keepdims=True)
    mx = jnp.max(x, axis=(2, 3), keepdims=True)
    s = avg + mx
    h1 = jax.nn.relu(jnp.einsum('oc,bcij->boij', p['w_fc1'], s, precision=hi))
    catt = jax.nn.sigmoid(jnp.einsum('oc,bcij->boij', p['w_fc2'], h1, precision=hi))
    x_c = x * (p['wc'][0] * catt)

    mxp = jnp.max(x_c, axis=1, keepdims=True)
    avp = jnp.mean(x_c, axis=1, keepdims=True)
    sp = jnp.concatenate([mxp, avp], axis=1)

    def conv(inp, w, groups=1):
        k = w.shape[-1]
        pad = (k - 1) // 2
        return jax.lax.conv_general_dilated(
            inp, w, window_strides=(1, 1), padding=[(pad, pad), (pad, pad)],
            dimension_numbers=('NCHW', 'OIHW', 'NCHW'),
            feature_group_count=groups, precision=hi)

    a3 = conv(sp, p['w_s3'][None])
    a5 = conv(sp, p['w_s5'][:, None], groups=2)
    a7 = conv(sp, p['w_s7'][:, None], groups=2)
    a9 = conv(sp, p['w_s9'][None])
    satt = jax.nn.sigmoid(conv(a3 + a5 + a7 + a9, p['w_fuse'][None, :, None, None]))
    x_s = x_c * (p['ws'][0] * satt)

    g = jnp.mean(x_s, axis=(2, 3), keepdims=True)
    x_g = x_s + g
    cat = jnp.concatenate([x_s, x_g], axis=1)
    out = (jnp.einsum('oc,bcij->boij', p['w_final'], cat, precision=hi)
           + jnp.einsum('oc,bcij->boij', p['w_res'], x, precision=hi)
           + p['b_res'][None, :, None, None])
    return out


if __name__ == "__main__":
    B, C, H, W = 2, 16, 16, 16   # in_channels=16, reduction=8 -> bottleneck 2
    key = jax.random.PRNGKey(0)
    kx, kparam = jax.random.split(key)
    x = jax.random.normal(kx, (B, C, H, W), jnp.float32)

    params, Cr = init_params(kparam, C, reduction=8)
    kernel_params = make_kernel_params(params, C, Cr)

    out = gcsca_forward(x, kernel_params)
    out = jax.block_until_ready(out)

    ref = gcsca_ref(x, params)
    err = float(jnp.max(jnp.abs(out - ref)))
    assert out.shape == (B, C, H, W), out.shape
    assert np.isfinite(err) and err < 2e-2, f"max abs err {err}"
    print("KERNEL_OK")
</pallas_src>

<mosaic_0001>
module attributes {stable_mosaic.version = 11 : i64} {
  func.func @kernel(%arg0: i32, %arg1: memref<1x16x256xf32, #tpu.memory_space<vmem>>, %arg2: memref<16x2xf32, #tpu.memory_space<vmem>>, %arg3: memref<16x2xf32, #tpu.memory_space<vmem>>, %arg4: memref<16x16xf32, #tpu.memory_space<vmem>>, %arg5: memref<16x16xf32, #tpu.memory_space<vmem>>, %arg6: memref<16x16xf32, #tpu.memory_space<vmem>>, %arg7: memref<16x1xf32, #tpu.memory_space<vmem>>, %arg8: memref<162xf32, #tpu.memory_space<smem>>, %arg9: memref<1xf32, #tpu.memory_space<smem>>, %arg10: memref<1xf32, #tpu.memory_space<smem>>, %arg11: memref<1x16x256xf32, #tpu.memory_space<vmem>>, %arg12: memref<2x24x128xf32, #tpu.memory_space<vmem>>, %arg13: memref<1x256xf32, #tpu.memory_space<vmem>>) attributes {dimension_semantics = [#tpu.dimension_semantics<parallel>], iteration_bounds = array<i64: 2>, scalar_prefetch = 0 : i64, scratch_operands = 2 : i64, tpu.core_type = #tpu.core_type<tc>, window_params = [{transform_indices = @transform_0, window_bounds = array<i64: 1, 16, 256>}, {pipeline_mode = #tpu.pipeline_mode<synchronous>, transform_indices = @transform_1, window_bounds = array<i64: 16, 2>}, {pipeline_mode = #tpu.pipeline_mode<synchronous>, transform_indices = @transform_2, window_bounds = array<i64: 16, 2>}, {pipeline_mode = #tpu.pipeline_mode<synchronous>, transform_indices = @transform_3, window_bounds = array<i64: 16, 16>}, {pipeline_mode = #tpu.pipeline_mode<synchronous>, transform_indices = @transform_4, window_bounds = array<i64: 16, 16>}, {pipeline_mode = #tpu.pipeline_mode<synchronous>, transform_indices = @transform_5, window_bounds = array<i64: 16, 16>}, {pipeline_mode = #tpu.pipeline_mode<synchronous>, transform_indices = @transform_6, window_bounds = array<i64: 16, 1>}, {transform_indices = @transform_7, window_bounds = array<i64: 162>}, {transform_indices = @transform_8, window_bounds = array<i64: 1>}, {transform_indices = @transform_9, window_bounds = array<i64: 1>}, {transform_indices = @transform_10, window_bounds = array<i64: 1, 16, 256>}]} {
    %c0 = arith.constant 0 : index
    %c0_0 = arith.constant 0 : index
    %c0_1 = arith.constant 0 : index
    %0 = vector.load %arg1[%c0, %c0_0, %c0_1] : memref<1x16x256xf32, #tpu.memory_space<vmem>>, vector<1x16x256xf32>
    %1 = vector.shape_cast %0 : vector<1x16x256xf32> to vector<16x256xf32>
    %cst = arith.constant dense<0.000000e+00> : vector<16xf32>
    %2 = vector.multi_reduction <add>, %1, %cst [1] : vector<16x256xf32> to vector<16xf32>
    %3 = vector.shape_cast %2 : vector<16xf32> to vector<16x1xf32>
    %cst_2 = arith.constant 2.560000e+02 : f32
    %4 = vector.broadcast %cst_2 : f32 to vector<16x1xf32>
    %5 = arith.divf %3, %4 : vector<16x1xf32>
    %cst_3 = arith.constant dense<0xFF800000> : vector<16xf32>
    %6 = vector.multi_reduction <maximumf>, %1, %cst_3 [1] : vector<16x256xf32> to vector<16xf32>
    %7 = vector.shape_cast %6 : vector<16xf32> to vector<16x1xf32>
    %8 = arith.addf %5, %7 : vector<16x1xf32>
    %c0_4 = arith.constant 0 : index
    %c0_5 = arith.constant 0 : index
    %9 = vector.load %arg2[%c0_4, %c0_5] : memref<16x2xf32, #tpu.memory_space<vmem>>, vector<16x2xf32>
    %10 = vector.broadcast %8 : vector<16x1xf32> to vector<16x2xf32>
    %11 = arith.mulf %9, %10 : vector<16x2xf32>
    %cst_6 = arith.constant dense<0.000000e+00> : vector<2xf32>
    %12 = vector.multi_reduction <add>, %11, %cst_6 [0] : vector<16x2xf32> to vector<2xf32>
    %13 = vector.shape_cast %12 : vector<2xf32> to vector<1x2xf32>
    %cst_7 = arith.constant 0.000000e+00 : f32
    %14 = vector.broadcast %cst_7 : f32 to vector<1x2xf32>
    %15 = arith.maximumf %13, %14 : vector<1x2xf32>
    %c0_8 = arith.constant 0 : index
    %c0_9 = arith.constant 0 : index
    %16 = vector.load %arg3[%c0_8, %c0_9] : memref<16x2xf32, #tpu.memory_space<vmem>>, vector<16x2xf32>
    %17 = vector.broadcast %15 : vector<1x2xf32> to vector<16x2xf32>
    %18 = arith.mulf %16, %17 : vector<16x2xf32>
    %cst_10 = arith.constant dense<0.000000e+00> : vector<16xf32>
    %19 = vector.multi_reduction <add>, %18, %cst_10 [1] : vector<16x2xf32> to vector<16xf32>
    %20 = vector.shape_cast %19 : vector<16xf32> to vector<16x1xf32>
    %21 = arith.negf %20 : vector<16x1xf32>
    %22 = math.exp %21 : vector<16x1xf32>
    %cst_11 = arith.constant 1.000000e+00 : f32
    %23 = vector.broadcast %cst_11 : f32 to vector<16x1xf32>
    %24 = arith.addf %23, %22 : vector<16x1xf32>
    %25 = arith.divf %23, %24 : vector<16x1xf32>
    %c0_12 = arith.constant 0 : index
    %26 = memref.load %arg9[%c0_12] : memref<1xf32, #tpu.memory_space<smem>>
    %27 = vector.broadcast %26 : f32 to vector<16x1xf32>
    %28 = arith.mulf %27, %25 : vector<16x1xf32>
    %29 = vector.broadcast %28 : vector<16x1xf32> to vector<16x256xf32>
    %30 = arith.mulf %1, %29 : vector<16x256xf32>
    %cst_13 = arith.constant dense<0xFF800000> : vector<256xf32>
    %31 = vector.multi_reduction <maximumf>, %30, %cst_13 [0] : vector<16x256xf32> to vector<256xf32>
    %32 = vector.shape_cast %31 : vector<256xf32> to vector<1x256xf32>
    %cst_14 = arith.constant dense<0.000000e+00> : vector<256xf32>
    %33 = vector.multi_reduction <add>, %30, %cst_14 [0] : vector<16x256xf32> to vector<256xf32>
    %34 = vector.shape_cast %33 : vector<256xf32> to vector<1x256xf32>
    %cst_15 = arith.constant 1.600000e+01 : f32
    %35 = vector.broadcast %cst_15 : f32 to vector<1x256xf32>
    %36 = arith.divf %34, %35 : vector<1x256xf32>
    %cst_16 = arith.constant 0.000000e+00 : f32
    %37 = vector.broadcast %cst_16 : f32 to vector<2x24x128xf32>
    %c0_17 = arith.constant 0 : index
    %c0_18 = arith.constant 0 : index
    %c0_19 = arith.constant 0 : index
    %38 = vector.load %arg12[%c0_17, %c0_18, %c0_19] : memref<2x24x128xf32, #tpu.memory_space<vmem>>, vector<2x24x128xf32>
    tpu.vector_store %arg12[%c0_17, %c0_18, %c0_19], %37 {strides = array<i32>} : memref<2x24x128xf32, #tpu.memory_space<vmem>>, vector<2x24x128xf32>,
    %39 = vector.extract_strided_slice %32 {offsets = [0, 0], sizes = [1, 16], strides = [1, 1]} : vector<1x256xf32> to vector<1x16xf32>
    %c0_20 = arith.constant 0 : index
    %c4 = arith.constant 4 : index
    %c4_21 = arith.constant 4 : index
    %40 = vector.load %arg12[%c0_20, %c4, %c4_21] : memref<2x24x128xf32, #tpu.memory_space<vmem>>, vector<1x1x16xf32>
    %41 = vector.shape_cast %40 : vector<1x1x16xf32> to vector<1x16xf32>
    %42 = vector.shape_cast %39 : vector<1x16xf32> to vector<1x1x16xf32>
    tpu.vector_store %arg12[%c0_20, %c4, %c4_21], %42 {strides = array<i32>} : memref<2x24x128xf32, #tpu.memory_space<vmem>>, vector<1x1x16xf32>,
    %43 = vector.extract_strided_slice %36 {offsets = [0, 0], sizes = [1, 16], strides = [1, 1]} : vector<1x256xf32> to vector<1x16xf32>
    %c1 = arith.constant 1 : index
    %c4_22 = arith.constant 4 : index
    %c4_23 = arith.constant 4 : index
    %44 = vector.load %arg12[%c1, %c4_22, %c4_23] : memref<2x24x128xf32, #tpu.memory_space<vmem>>, vector<1x1x16xf32>
    %45 = vector.shape_cast %44 : vector<1x1x16xf32> to vector<1x16xf32>
    %46 = vector.shape_cast %43 : vector<1x16xf32> to vector<1x1x16xf32>
    tpu.vector_store %arg12[%c1, %c4_22, %c4_23], %46 {strides = array<i32>} : memref<2x24x128xf32, #tpu.memory_space<vmem>>, vector<1x1x16xf32>,
    %47 = vector.extract_strided_slice %32 {offsets = [0, 16], sizes = [1, 16], strides = [1, 1]} : vector<1x256xf32> to vector<1x16xf32>
    %c0_24 = arith.constant 0 : index
    %c5 = arith.constant 5 : index
    %c4_25 = arith.constant 4 : index
    %48 = vector.load %arg12[%c0_24, %c5, %c4_25] : memref<2x24x128xf32, #tpu.memory_space<vmem>>, vector<1x1x16xf32>
    %49 = vector.shape_cast %48 : vector<1x1x16xf32> to vector<1x16xf32>
    %50 = vector.shape_cast %47 : vector<1x16xf32> to vector<1x1x16xf32>
    tpu.vector_store %arg12[%c0_24, %c5, %c4_25], %50 {strides = array<i32>} : memref<2x24x128xf32, #tpu.memory_space<vmem>>, vector<1x1x16xf32>,
    %51 = vector.extract_strided_slice %36 {offsets = [0, 16], sizes = [1, 16], strides = [1, 1]} : vector<1x256xf32> to vector<1x16xf32>
    %c1_26 = arith.constant 1 : index
    %c5_27 = arith.constant 5 : index
    %c4_28 = arith.constant 4 : index
    %52 = vector.load %arg12[%c1_26, %c5_27, %c4_28] : memref<2x24x128xf32, #tpu.memory_space<vmem>>, vector<1x1x16xf32>
    %53 = vector.shape_cast %52 : vector<1x1x16xf32> to vector<1x16xf32>
    %54 = vector.shape_cast %51 : vector<1x16xf32> to vector<1x1x16xf32>
    tpu.vector_store %arg12[%c1_26, %c5_27, %c4_28], %54 {strides = array<i32>} : memref<2x24x128xf32, #tpu.memory_space<vmem>>, vector<1x1x16xf32>,
    %55 = vector.extract_strided_slice %32 {offsets = [0, 32], sizes = [1, 16], strides = [1, 1]} : vector<1x256xf32> to vector<1x16xf32>
    %c0_29 = arith.constant 0 : index
    %c6 = arith.constant 6 : index
    %c4_30 = arith.constant 4 : index
    %56 = vector.load %arg12[%c0_29, %c6, %c4_30] : memref<2x24x128xf32, #tpu.memory_space<vmem>>, vector<1x1x16xf32>
    %57 = vector.shape_cast %56 : vector<1x1x16xf32> to vector<1x16xf32>
    %58 = vector.shape_cast %55 : vector<1x16xf32> to vector<1x1x16xf32>
    tpu.vector_store %arg12[%c0_29, %c6, %c4_30], %58 {strides = array<i32>} : memref<2x24x128xf32, #tpu.memory_space<vmem>>, vector<1x1x16xf32>,
    %59 = vector.extract_strided_slice %36 {offsets = [0, 32], sizes = [1, 16], strides = [1, 1]} : vector<1x256xf32> to vector<1x16xf32>
    %c1_31 = arith.constant 1 : index
    %c6_32 = arith.constant 6 : index
    %c4_33 = arith.constant 4 : index
    %60 = vector.load %arg12[%c1_31, %c6_32, %c4_33] : memref<2x24x128xf32, #tpu.memory_space<vmem>>, vector<1x1x16xf32>
    %61 = vector.shape_cast %60 : vector<1x1x16xf32> to vector<1x16xf32>
    %62 = vector.shape_cast %59 : vector<1x16xf32> to vector<1x1x16xf32>
    tpu.vector_store %arg12[%c1_31, %c6_32, %c4_33], %62 {strides = array<i32>} : memref<2x24x128xf32, #tpu.memory_space<vmem>>, vector<1x1x16xf32>,
    %63 = vector.extract_strided_slice %32 {offsets = [0, 48], sizes = [1, 16], strides = [1, 1]} : vector<1x256xf32> to vector<1x16xf32>
    %c0_34 = arith.constant 0 : index
    %c7 = arith.constant 7 : index
    %c4_35 = arith.constant 4 : index
    %64 = vector.load %arg12[%c0_34, %c7, %c4_35] : memref<2x24x128xf32, #tpu.memory_space<vmem>>, vector<1x1x16xf32>
    %65 = vector.shape_cast %64 : vector<1x1x16xf32> to vector<1x16xf32>
    %66 = vector.shape_cast %63 : vector<1x16xf32> to vector<1x1x16xf32>
    tpu.vector_store %arg12[%c0_34, %c7, %c4_35], %66 {strides = array<i32>} : memref<2x24x128xf32, #tpu.memory_space<vmem>>, vector<1x1x16xf32>,
    %67 = vector.extract_strided_slice %36 {offsets = [0, 48], sizes = [1, 16], strides = [1, 1]} : vector<1x256xf32> to vector<1x16xf32>
    %c1_36 = arith.constant 1 : index
    %c7_37 = arith.constant 7 : index
    %c4_38 = arith.constant 4 : index
    %68 = vector.load %arg12[%c1_36, %c7_37, %c4_38] : memref<2x24x128xf32, #tpu.memory_space<vmem>>, vector<1x1x16xf32>
    %69 = vector.shape_cast %68 : vector<1x1x16xf32> to vector<1x16xf32>
    %70 = vector.shape_cast %67 : vector<1x16xf32> to vector<1x1x16xf32>
    tpu.vector_store %arg12[%c1_36, %c7_37, %c4_38], %70 {strides = array<i32>} : memref<2x24x128xf32, #tpu.memory_space<vmem>>, vector<1x1x16xf32>,
    %71 = vector.extract_strided_slice %32 {offsets = [0, 64], sizes = [1, 16], strides = [1, 1]} : vector<1x256xf32> to vector<1x16xf32>
    %c0_39 = arith.constant 0 : index
    %c8 = arith.constant 8 : index
    %c4_40 = arith.constant 4 : index
    %72 = vector.load %arg12[%c0_39, %c8, %c4_40] : memref<2x24x128xf32, #tpu.memory_space<vmem>>, vector<1x1x16xf32>
    %73 = vector.shape_cast %72 : vector<1x1x16xf32> to vector<1x16xf32>
    %74 = vector.shape_cast %71 : vector<1x16xf32> to vector<1x1x16xf32>
    tpu.vector_store %arg12[%c0_39, %c8, %c4_40], %74 {strides = array<i32>} : memref<2x24x128xf32, #tpu.memory_space<vmem>>, vector<1x1x16xf32>,
    %75 = vector.extract_strided_slice %36 {offsets = [0, 64], sizes = [1, 16], strides = [1, 1]} : vector<1x256xf32> to vector<1x16xf32>
    %c1_41 = arith.constant 1 : index
    %c8_42 = arith.constant 8 : index
    %c4_43 = arith.constant 4 : index
    %76 = vector.load %arg12[%c1_41, %c8_42, %c4_43] : memref<2x24x128xf32, #tpu.memory_space<vmem>>, vector<1x1x16xf32>
    %77 = vector.shape_cast %76 : vector<1x1x16xf32> to vector<1x16xf32>
    %78 = vector.shape_cast %75 : vector<1x16xf32> to vector<1x1x16xf32>
    tpu.vector_store %arg12[%c1_41, %c8_42, %c4_43], %78 {strides = array<i32>} : memref<2x24x128xf32, #tpu.memory_space<vmem>>, vector<1x1x16xf32>,
    %79 = vector.extract_strided_slice %32 {offsets = [0, 80], sizes = [1, 16], strides = [1, 1]} : vector<1x256xf32> to vector<1x16xf32>
    %c0_44 = arith.constant 0 : index
    %c9 = arith.constant 9 : index
    %c4_45 = arith.constant 4 : index
    %80 = vector.load %arg12[%c0_44, %c9, %c4_45] : memref<2x24x128xf32, #tpu.memory_space<vmem>>, vector<1x1x16xf32>
    %81 = vector.shape_cast %80 : vector<1x1x16xf32> to vector<1x16xf32>
    %82 = vector.shape_cast %79 : vector<1x16xf32> to vector<1x1x16xf32>
    tpu.vector_store %arg12[%c0_44, %c9, %c4_45], %82 {strides = array<i32>} : memref<2x24x128xf32, #tpu.memory_space<vmem>>, vector<1x1x16xf32>,
    %83 = vector.extract_strided_slice %36 {offsets = [0, 80], sizes = [1, 16], strides = [1, 1]} : vector<1x256xf32> to vector<1x16xf32>
    %c1_46 = arith.constant 1 : index
    %c9_47 = arith.constant 9 : index
    %c4_48 = arith.constant 4 : index
    %84 = vector.load %arg12[%c1_46, %c9_47, %c4_48] : memref<2x24x128xf32, #tpu.memory_space<vmem>>, vector<1x1x16xf32>
    %85 = vector.shape_cast %84 : vector<1x1x16xf32> to vector<1x16xf32>
    %86 = vector.shape_cast %83 : vector<1x16xf32> to vector<1x1x16xf32>
    tpu.vector_store %arg12[%c1_46, %c9_47, %c4_48], %86 {strides = array<i32>} : memref<2x24x128xf32, #tpu.memory_space<vmem>>, vector<1x1x16xf32>,
    %87 = vector.extract_strided_slice %32 {offsets = [0, 96], sizes = [1, 16], strides = [1, 1]} : vector<1x256xf32> to vector<1x16xf32>
    %c0_49 = arith.constant 0 : index
    %c10 = arith.constant 10 : index
    %c4_50 = arith.constant 4 : index
    %88 = vector.load %arg12[%c0_49, %c10, %c4_50] : memref<2x24x128xf32, #tpu.memory_space<vmem>>, vector<1x1x16xf32>
    %89 = vector.shape_cast %88 : vector<1x1x16xf32> to vector<1x16xf32>
    %90 = vector.shape_cast %87 : vector<1x16xf32> to vector<1x1x16xf32>
    tpu.vector_store %arg12[%c0_49, %c10, %c4_50], %90 {strides = array<i32>} : memref<2x24x128xf32, #tpu.memory_space<vmem>>, vector<1x1x16xf32>,
    %91 = vector.extract_strided_slice %36 {offsets = [0, 96], sizes = [1, 16], strides = [1, 1]} : vector<1x256xf32> to vector<1x16xf32>
    %c1_51 = arith.constant 1 : index
    %c10_52 = arith.constant 10 : index
    %c4_53 = arith.constant 4 : index
    %92 = vector.load %arg12[%c1_51, %c10_52, %c4_53] : memref<2x24x128xf32, #tpu.memory_space<vmem>>, vector<1x1x16xf32>
    %93 = vector.shape_cast %92 : vector<1x1x16xf32> to vector<1x16xf32>
    %94 = vector.shape_cast %91 : vector<1x16xf32> to vector<1x1x16xf32>
    tpu.vector_store %arg12[%c1_51, %c10_52, %c4_53], %94 {strides = array<i32>} : memref<2x24x128xf32, #tpu.memory_space<vmem>>, vector<1x1x16xf32>,
    %95 = vector.extract_strided_slice %32 {offsets = [0, 112], sizes = [1, 16], strides = [1, 1]} : vector<1x256xf32> to vector<1x16xf32>
    %c0_54 = arith.constant 0 : index
    %c11 = arith.constant 11 : index
    %c4_55 = arith.constant 4 : index
    %96 = vector.load %arg12[%c0_54, %c11, %c4_55] : memref<2x24x128xf32, #tpu.memory_space<vmem>>, vector<1x1x16xf32>
    %97 = vector.shape_cast %96 : vector<1x1x16xf32> to vector<1x16xf32>
    %98 = vector.shape_cast %95 : vector<1x16xf32> to vector<1x1x16xf32>
    tpu.vector_store %arg12[%c0_54, %c11, %c4_55], %98 {strides = array<i32>} : memref<2x24x128xf32, #tpu.memory_space<vmem>>, vector<1x1x16xf32>,
    %99 = vector.extract_strided_slice %36 {offsets = [0, 112], sizes = [1, 16], strides = [1, 1]} : vector<1x256xf32> to vector<1x16xf32>
    %c1_56 = arith.constant 1 : index
    %c11_57 = arith.constant 11 : index
    %c4_58 = arith.constant 4 : index
    %100 = vector.load %arg12[%c1_56, %c11_57, %c4_58] : memref<2x24x128xf32, #tpu.memory_space<vmem>>, vector<1x1x16xf32>
    %101 = vector.shape_cast %100 : vector<1x1x16xf32> to vector<1x16xf32>
    %102 = vector.shape_cast %99 : vector<1x16xf32> to vector<1x1x16xf32>
    tpu.vector_store %arg12[%c1_56, %c11_57, %c4_58], %102 {strides = array<i32>} : memref<2x24x128xf32, #tpu.memory_space<vmem>>, vector<1x1x16xf32>,
    %103 = vector.extract_strided_slice %32 {offsets = [0, 128], sizes = [1, 16], strides = [1, 1]} : vector<1x256xf32> to vector<1x16xf32>
    %c0_59 = arith.constant 0 : index
    %c12 = arith.constant 12 : index
    %c4_60 = arith.constant 4 : index
    %104 = vector.load %arg12[%c0_59, %c12, %c4_60] : memref<2x24x128xf32, #tpu.memory_space<vmem>>, vector<1x1x16xf32>
    %105 = vector.shape_cast %104 : vector<1x1x16xf32> to vector<1x16xf32>
    %106 = vector.shape_cast %103 : vector<1x16xf32> to vector<1x1x16xf32>
    tpu.vector_store %arg12[%c0_59, %c12, %c4_60], %106 {strides = array<i32>} : memref<2x24x128xf32, #tpu.memory_space<vmem>>, vector<1x1x16xf32>,
    %107 = vector.extract_strided_slice %36 {offsets = [0, 128], sizes = [1, 16], strides = [1, 1]} : vector<1x256xf32> to vector<1x16xf32>
    %c1_61 = arith.constant 1 : index
    %c12_62 = arith.constant 12 : index
    %c4_63 = arith.constant 4 : index
    %108 = vector.load %arg12[%c1_61, %c12_62, %c4_63] : memref<2x24x128xf32, #tpu.memory_space<vmem>>, vector<1x1x16xf32>
    %109 = vector.shape_cast %108 : vector<1x1x16xf32> to vector<1x16xf32>
    %110 = vector.shape_cast %107 : vector<1x16xf32> to vector<1x1x16xf32>
    tpu.vector_store %arg12[%c1_61, %c12_62, %c4_63], %110 {strides = array<i32>} : memref<2x24x128xf32, #tpu.memory_space<vmem>>, vector<1x1x16xf32>,
    %111 = vector.extract_strided_slice %32 {offsets = [0, 144], sizes = [1, 16], strides = [1, 1]} : vector<1x256xf32> to vector<1x16xf32>
    %c0_64 = arith.constant 0 : index
    %c13 = arith.constant 13 : index
    %c4_65 = arith.constant 4 : index
    %112 = vector.load %arg12[%c0_64, %c13, %c4_65] : memref<2x24x128xf32, #tpu.memory_space<vmem>>, vector<1x1x16xf32>
    %113 = vector.shape_cast %112 : vector<1x1x16xf32> to vector<1x16xf32>
    %114 = vector.shape_cast %111 : vector<1x16xf32> to vector<1x1x16xf32>
    tpu.vector_store %arg12[%c0_64, %c13, %c4_65], %114 {strides = array<i32>} : memref<2x24x128xf32, #tpu.memory_space<vmem>>, vector<1x1x16xf32>,
    %115 = vector.extract_strided_slice %36 {offsets = [0, 144], sizes = [1, 16], strides = [1, 1]} : vector<1x256xf32> to vector<1x16xf32>
    %c1_66 = arith.constant 1 : index
    %c13_67 = arith.constant 13 : index
    %c4_68 = arith.constant 4 : index
    %116 = vector.load %arg12[%c1_66, %c13_67, %c4_68] : memref<2x24x128xf32, #tpu.memory_space<vmem>>, vector<1x1x16xf32>
    %117 = vector.shape_cast %116 : vector<1x1x16xf32> to vector<1x16xf32>
    %118 = vector.shape_cast %115 : vector<1x16xf32> to vector<1x1x16xf32>
    tpu.vector_store %arg12[%c1_66, %c13_67, %c4_68], %118 {strides = array<i32>} : memref<2x24x128xf32, #tpu.memory_space<vmem>>, vector<1x1x16xf32>,
    %119 = vector.extract_strided_slice %32 {offsets = [0, 160], sizes = [1, 16], strides = [1, 1]} : vector<1x256xf32> to vector<1x16xf32>
    %c0_69 = arith.constant 0 : index
    %c14 = arith.constant 14 : index
    %c4_70 = arith.constant 4 : index
    %120 = vector.load %arg12[%c0_69, %c14, %c4_70] : memref<2x24x128xf32, #tpu.memory_space<vmem>>, vector<1x1x16xf32>
    %121 = vector.shape_cast %120 : vector<1x1x16xf32> to vector<1x16xf32>
    %122 = vector.shape_cast %119 : vector<1x16xf32> to vector<1x1x16xf32>
    tpu.vector_store %arg12[%c0_69, %c14, %c4_70], %122 {strides = array<i32>} : memref<2x24x128xf32, #tpu.memory_space<vmem>>, vector<1x1x16xf32>,
    %123 = vector.extract_strided_slice %36 {offsets = [0, 160], sizes = [1, 16], strides = [1, 1]} : vector<1x256xf32> to vector<1x16xf32>
    %c1_71 = arith.constant 1 : index
    %c14_72 = arith.constant 14 : index
    %c4_73 = arith.constant 4 : index
    %124 = vector.load %arg12[%c1_71, %c14_72, %c4_73] : memref<2x24x128xf32, #tpu.memory_space<vmem>>, vector<1x1x16xf32>
    %125 = vector.shape_cast %124 : vector<1x1x16xf32> to vector<1x16xf32>
    %126 = vector.shape_cast %123 : vector<1x16xf32> to vector<1x1x16xf32>
    tpu.vector_store %arg12[%c1_71, %c14_72, %c4_73], %126 {strides = array<i32>} : memref<2x24x128xf32, #tpu.memory_space<vmem>>, vector<1x1x16xf32>,
    %127 = vector.extract_strided_slice %32 {offsets = [0, 176], sizes = [1, 16], strides = [1, 1]} : vector<1x256xf32> to vector<1x16xf32>
    %c0_74 = arith.constant 0 : index
    %c15 = arith.constant 15 : index
    %c4_75 = arith.constant 4 : index
    %128 = vector.load %arg12[%c0_74, %c15, %c4_75] : memref<2x24x128xf32, #tpu.memory_space<vmem>>, vector<1x1x16xf32>
    %129 = vector.shape_cast %128 : vector<1x1x16xf32> to vector<1x16xf32>
    %130 = vector.shape_cast %127 : vector<1x16xf32> to vector<1x1x16xf32>
    tpu.vector_store %arg12[%c0_74, %c15, %c4_75], %130 {strides = array<i32>} : memref<2x24x128xf32, #tpu.memory_space<vmem>>, vector<1x1x16xf32>,
    %131 = vector.extract_strided_slice %36 {offsets = [0, 176], sizes = [1, 16], strides = [1, 1]} : vector<1x256xf32> to vector<1x16xf32>
    %c1_76 = arith.constant 1 : index
    %c15_77 = arith.constant 15 : index
    %c4_78 = arith.constant 4 : index
    %132 = vector.load %arg12[%c1_76, %c15_77, %c4_78] : memref<2x24x128xf32, #tpu.memory_space<vmem>>, vector<1x1x16xf32>
    %133 = vector.shape_cast %132 : vector<1x1x16xf32> to vector<1x16xf32>
    %134 = vector.shape_cast %131 : vector<1x16xf32> to vector<1x1x16xf32>
    tpu.vector_store %arg12[%c1_76, %c15_77, %c4_78], %134 {strides = array<i32>} : memref<2x24x128xf32, #tpu.memory_space<vmem>>, vector<1x1x16xf32>,
    %135 = vector.extract_strided_slice %32 {offsets = [0, 192], sizes = [1, 16], strides = [1, 1]} : vector<1x256xf32> to vector<1x16xf32>
    %c0_79 = arith.constant 0 : index
    %c16 = arith.constant 16 : index
    %c4_80 = arith.constant 4 : index
    %136 = vector.load %arg12[%c0_79, %c16, %c4_80] : memref<2x24x128xf32, #tpu.memory_space<vmem>>, vector<1x1x16xf32>
    %137 = vector.shape_cast %136 : vector<1x1x16xf32> to vector<1x16xf32>
    %138 = vector.shape_cast %135 : vector<1x16xf32> to vector<1x1x16xf32>
    tpu.vector_store %arg12[%c0_79, %c16, %c4_80], %138 {strides = array<i32>} : memref<2x24x128xf32, #tpu.memory_space<vmem>>, vector<1x1x16xf32>,
    %139 = vector.extract_strided_slice %36 {offsets = [0, 192], sizes = [1, 16], strides = [1, 1]} : vector<1x256xf32> to vector<1x16xf32>
    %c1_81 = arith.constant 1 : index
    %c16_82 = arith.constant 16 : index
    %c4_83 = arith.constant 4 : index
    %140 = vector.load %arg12[%c1_81, %c16_82, %c4_83] : memref<2x24x128xf32, #tpu.memory_space<vmem>>, vector<1x1x16xf32>
    %141 = vector.shape_cast %140 : vector<1x1x16xf32> to vector<1x16xf32>
    %142 = vector.shape_cast %139 : vector<1x16xf32> to vector<1x1x16xf32>
    tpu.vector_store %arg12[%c1_81, %c16_82, %c4_83], %142 {strides = array<i32>} : memref<2x24x128xf32, #tpu.memory_space<vmem>>, vector<1x1x16xf32>,
    %143 = vector.extract_strided_slice %32 {offsets = [0, 208], sizes = [1, 16], strides = [1, 1]} : vector<1x256xf32> to vector<1x16xf32>
    %c0_84 = arith.constant 0 : index
    %c17 = arith.constant 17 : index
    %c4_85 = arith.constant 4 : index
    %144 = vector.load %arg12[%c0_84, %c17, %c4_85] : memref<2x24x128xf32, #tpu.memory_space<vmem>>, vector<1x1x16xf32>
    %145 = vector.shape_cast %144 : vector<1x1x16xf32> to vector<1x16xf32>
    %146 = vector.shape_cast %143 : vector<1x16xf32> to vector<1x1x16xf32>
    tpu.vector_store %arg12[%c0_84, %c17, %c4_85], %146 {strides = array<i32>} : memref<2x24x128xf32, #tpu.memory_space<vmem>>, vector<1x1x16xf32>,
    %147 = vector.extract_strided_slice %36 {offsets = [0, 208], sizes = [1, 16], strides = [1, 1]} : vector<1x256xf32> to vector<1x16xf32>
    %c1_86 = arith.constant 1 : index
    %c17_87 = arith.constant 17 : index
    %c4_88 = arith.constant 4 : index
    %148 = vector.load %arg12[%c1_86, %c17_87, %c4_88] : memref<2x24x128xf32, #tpu.memory_space<vmem>>, vector<1x1x16xf32>
    %149 = vector.shape_cast %148 : vector<1x1x16xf32> to vector<1x16xf32>
    %150 = vector.shape_cast %147 : vector<1x16xf32> to vector<1x1x16xf32>
    tpu.vector_store %arg12[%c1_86, %c17_87, %c4_88], %150 {strides = array<i32>} : memref<2x24x128xf32, #tpu.memory_space<vmem>>, vector<1x1x16xf32>,
    %151 = vector.extract_strided_slice %32 {offsets = [0, 224], sizes = [1, 16], strides = [1, 1]} : vector<1x256xf32> to vector<1x16xf32>
    %c0_89 = arith.constant 0 : index
    %c18 = arith.constant 18 : index
    %c4_90 = arith.constant 4 : index
    %152 = vector.load %arg12[%c0_89, %c18, %c4_90] : memref<2x24x128xf32, #tpu.memory_space<vmem>>, vector<1x1x16xf32>
    %153 = vector.shape_cast %152 : vector<1x1x16xf32> to vector<1x16xf32>
    %154 = vector.shape_cast %151 : vector<1x16xf32> to vector<1x1x16xf32>
    tpu.vector_store %arg12[%c0_89, %c18, %c4_90], %154 {strides = array<i32>} : memref<2x24x128xf32, #tpu.memory_space<vmem>>, vector<1x1x16xf32>,
    %155 = vector.extract_strided_slice %36 {offsets = [0, 224], sizes = [1, 16], strides = [1, 1]} : vector<1x256xf32> to vector<1x16xf32>
    %c1_91 = arith.constant 1 : index
    %c18_92 = arith.constant 18 : index
    %c4_93 = arith.constant 4 : index
    %156 = vector.load %arg12[%c1_91, %c18_92, %c4_93] : memref<2x24x128xf32, #tpu.memory_space<vmem>>, vector<1x1x16xf32>
    %157 = vector.shape_cast %156 : vector<1x1x16xf32> to vector<1x16xf32>
    %158 = vector.shape_cast %155 : vector<1x16xf32> to vector<1x1x16xf32>
    tpu.vector_store %arg12[%c1_91, %c18_92, %c4_93], %158 {strides = array<i32>} : memref<2x24x128xf32, #tpu.memory_space<vmem>>, vector<1x1x16xf32>,
    %159 = vector.extract_strided_slice %32 {offsets = [0, 240], sizes = [1, 16], strides = [1, 1]} : vector<1x256xf32> to vector<1x16xf32>
    %c0_94 = arith.constant 0 : index
    %c19 = arith.constant 19 : index
    %c4_95 = arith.constant 4 : index
    %160 = vector.load %arg12[%c0_94, %c19, %c4_95] : memref<2x24x128xf32, #tpu.memory_space<vmem>>, vector<1x1x16xf32>
    %161 = vector.shape_cast %160 : vector<1x1x16xf32> to vector<1x16xf32>
    %162 = vector.shape_cast %159 : vector<1x16xf32> to vector<1x1x16xf32>
    tpu.vector_store %arg12[%c0_94, %c19, %c4_95], %162 {strides = array<i32>} : memref<2x24x128xf32, #tpu.memory_space<vmem>>, vector<1x1x16xf32>,
    %163 = vector.extract_strided_slice %36 {offsets = [0, 240], sizes = [1, 16], strides = [1, 1]} : vector<1x256xf32> to vector<1x16xf32>
    %c1_96 = arith.constant 1 : index
    %c19_97 = arith.constant 19 : index
    %c4_98 = arith.constant 4 : index
    %164 = vector.load %arg12[%c1_96, %c19_97, %c4_98] : memref<2x24x128xf32, #tpu.memory_space<vmem>>, vector<1x1x16xf32>
    %165 = vector.shape_cast %164 : vector<1x1x16xf32> to vector<1x16xf32>
    %166 = vector.shape_cast %163 : vector<1x16xf32> to vector<1x1x16xf32>
    tpu.vector_store %arg12[%c1_96, %c19_97, %c4_98], %166 {strides = array<i32>} : memref<2x24x128xf32, #tpu.memory_space<vmem>>, vector<1x1x16xf32>,
    %cst_99 = arith.constant 0.000000e+00 : f32
    %167 = vector.broadcast %cst_99 : f32 to vector<16x16xf32>
    %c0_100 = arith.constant 0 : index
    %c0_101 = arith.constant 0 : index
    %c0_102 = arith.constant 0 : index
    %168 = vector.load %arg12[%c0_100, %c0_101, %c0_102] : memref<2x24x128xf32, #tpu.memory_space<vmem>>, vector<1x16x16xf32>
    %169 = vector.shape_cast %168 : vector<1x16x16xf32> to vector<16x16xf32>
    %c0_103 = arith.constant 0 : index
    %170 = memref.load %arg8[%c0_103] : memref<162xf32, #tpu.memory_space<smem>>
    %171 = vector.broadcast %170 : f32 to vector<16x16xf32>
    %172 = arith.mulf %169, %171 : vector<16x16xf32>
    %173 = arith.addf %167, %172 : vector<16x16xf32>
    %c0_104 = arith.constant 0 : index
    %c0_105 = arith.constant 0 : index
    %c1_106 = arith.constant 1 : index
    %174 = vector.load %arg12[%c0_104, %c0_105, %c1_106] : memref<2x24x128xf32, #tpu.memory_space<vmem>>, vector<1x16x16xf32>
    %175 = vector.shape_cast %174 : vector<1x16x16xf32> to vector<16x16xf32>
    %c1_107 = arith.constant 1 : index
    %176 = memref.load %arg8[%c1_107] : memref<162xf32, #tpu.memory_space<smem>>
    %177 = vector.broadcast %176 : f32 to vector<16x16xf32>
    %178 = arith.mulf %175, %177 : vector<16x16xf32>
    %179 = arith.addf %173, %178 : vector<16x16xf32>
    %c0_108 = arith.constant 0 : index
    %c0_109 = arith.constant 0 : index
    %c2 = arith.constant 2 : index
    %180 = vector.load %arg12[%c0_108, %c0_109, %c2] : memref<2x24x128xf32, #tpu.memory_space<vmem>>, vector<1x16x16xf32>
    %181 = vector.shape_cast %180 : vector<1x16x16xf32> to vector<16x16xf32>
    %c2_110 = arith.constant 2 : index
    %182 = memref.load %arg8[%c2_110] : memref<162xf32, #tpu.memory_space<smem>>
    %183 = vector.broadcast %182 : f32 to vector<16x16xf32>
    %184 = arith.mulf %181, %183 : vector<16x16xf32>
    %185 = arith.addf %179, %184 : vector<16x16xf32>
    %c0_111 = arith.constant 0 : index
    %c0_112 = arith.constant 0 : index
    %c3 = arith.constant 3 : index
    %186 = vector.load %arg12[%c0_111, %c0_112, %c3] : memref<2x24x128xf32, #tpu.memory_space<vmem>>, vector<1x16x16xf32>
    %187 = vector.shape_cast %186 : vector<1x16x16xf32> to vector<16x16xf32>
    %c3_113 = arith.constant 3 : index
    %188 = memref.load %arg8[%c3_113] : memref<162xf32, #tpu.memory_space<smem>>
    %189 = vector.broadcast %188 : f32 to vector<16x16xf32>
    %190 = arith.mulf %187, %189 : vector<16x16xf32>
    %191 = arith.addf %185, %190 : vector<16x16xf32>
    %c0_114 = arith.constant 0 : index
    %c0_115 = arith.constant 0 : index
    %c4_116 = arith.constant 4 : index
    %192 = vector.load %arg12[%c0_114, %c0_115, %c4_116] : memref<2x24x128xf32, #tpu.memory_space<vmem>>, vector<1x16x16xf32>
    %193 = vector.shape_cast %192 : vector<1x16x16xf32> to vector<16x16xf32>
    %c4_117 = arith.constant 4 : index
    %194 = memref.load %arg8[%c4_117] : memref<162xf32, #tpu.memory_space<smem>>
    %195 = vector.broadcast %194 : f32 to vector<16x16xf32>
    %196 = arith.mulf %193, %195 : vector<16x16xf32>
    %197 = arith.addf %191, %196 : vector<16x16xf32>
    %c0_118 = arith.constant 0 : index
    %c0_119 = arith.constant 0 : index
    %c5_120 = arith.constant 5 : index
    %198 = vector.load %arg12[%c0_118, %c0_119, %c5_120] : memref<2x24x128xf32, #tpu.memory_space<vmem>>, vector<1x16x16xf32>
    %199 = vector.shape_cast %198 : vector<1x16x16xf32> to vector<16x16xf32>
    %c5_121 = arith.constant 5 : index
    %200 = memref.load %arg8[%c5_121] : memref<162xf32, #tpu.memory_space<smem>>
    %201 = vector.broadcast %200 : f32 to vector<16x16xf32>
    %202 = arith.mulf %199, %201 : vector<16x16xf32>
    %203 = arith.addf %197, %202 : vector<16x16xf32>
    %c0_122 = arith.constant 0 : index
    %c0_123 = arith.constant 0 : index
    %c6_124 = arith.constant 6 : index
    %204 = vector.load %arg12[%c0_122, %c0_123, %c6_124] : memref<2x24x128xf32, #tpu.memory_space<vmem>>, vector<1x16x16xf32>
    %205 = vector.shape_cast %204 : vector<1x16x16xf32> to vector<16x16xf32>
    %c6_125 = arith.constant 6 : index
    %206 = memref.load %arg8[%c6_125] : memref<162xf32, #tpu.memory_space<smem>>
    %207 = vector.broadcast %206 : f32 to vector<16x16xf32>
    %208 = arith.mulf %205, %207 : vector<16x16xf32>
    %209 = arith.addf %203, %208 : vector<16x16xf32>
    %c0_126 = arith.constant 0 : index
    %c0_127 = arith.constant 0 : index
    %c7_128 = arith.constant 7 : index
    %210 = vector.load %arg12[%c0_126, %c0_127, %c7_128] : memref<2x24x128xf32, #tpu.memory_space<vmem>>, vector<1x16x16xf32>
    %211 = vector.shape_cast %210 : vector<1x16x16xf32> to vector<16x16xf32>
    %c7_129 = arith.constant 7 : index
    %212 = memref.load %arg8[%c7_129] : memref<162xf32, #tpu.memory_space<smem>>
    %213 = vector.broadcast %212 : f32 to vector<16x16xf32>
    %214 = arith.mulf %211, %213 : vector<16x16xf32>
    %215 = arith.addf %209, %214 : vector<16x16xf32>
    %c0_130 = arith.constant 0 : index
    %c0_131 = arith.constant 0 : index
    %c8_132 = arith.constant 8 : index
    %216 = vector.load %arg12[%c0_130, %c0_131, %c8_132] : memref<2x24x128xf32, #tpu.memory_space<vmem>>, vector<1x16x16xf32>
    %217 = vector.shape_cast %216 : vector<1x16x16xf32> to vector<16x16xf32>
    %c8_133 = arith.constant 8 : index
    %218 = memref.load %arg8[%c8_133] : memref<162xf32, #tpu.memory_space<smem>>
    %219 = vector.broadcast %218 : f32 to vector<16x16xf32>
    %220 = arith.mulf %217, %219 : vector<16x16xf32>
    %221 = arith.addf %215, %220 : vector<16x16xf32>
    %c0_134 = arith.constant 0 : index
    %c1_135 = arith.constant 1 : index
    %c0_136 = arith.constant 0 : index
    %222 = vector.load %arg12[%c0_134, %c1_135, %c0_136] : memref<2x24x128xf32, #tpu.memory_space<vmem>>, vector<1x16x16xf32>
    %223 = vector.shape_cast %222 : vector<1x16x16xf32> to vector<16x16xf32>
    %c9_137 = arith.constant 9 : index
    %224 = memref.load %arg8[%c9_137] : memref<162xf32, #tpu.memory_space<smem>>
    %225 = vector.broadcast %224 : f32 to vector<16x16xf32>
    %226 = arith.mulf %223, %225 : vector<16x16xf32>
    %227 = arith.addf %221, %226 : vector<16x16xf32>
    %c0_138 = arith.constant 0 : index
    %c1_139 = arith.constant 1 : index
    %c1_140 = arith.constant 1 : index
    %228 = vector.load %arg12[%c0_138, %c1_139, %c1_140] : memref<2x24x128xf32, #tpu.memory_space<vmem>>, vector<1x16x16xf32>
    %229 = vector.shape_cast %228 : vector<1x16x16xf32> to vector<16x16xf32>
    %c10_141 = arith.constant 10 : index
    %230 = memref.load %arg8[%c10_141] : memref<162xf32, #tpu.memory_space<smem>>
    %231 = vector.broadcast %230 : f32 to vector<16x16xf32>
    %232 = arith.mulf %229, %231 : vector<16x16xf32>
    %233 = arith.addf %227, %232 : vector<16x16xf32>
    %c0_142 = arith.constant 0 : index
    %c1_143 = arith.constant 1 : index
    %c2_144 = arith.constant 2 : index
    %234 = vector.load %arg12[%c0_142, %c1_143, %c2_144] : memref<2x24x128xf32, #tpu.memory_space<vmem>>, vector<1x16x16xf32>
    %235 = vector.shape_cast %234 : vector<1x16x16xf32> to vector<16x16xf32>
    %c11_145 = arith.constant 11 : index
    %236 = memref.load %arg8[%c11_145] : memref<162xf32, #tpu.memory_space<smem>>
    %237 = vector.broadcast %236 : f32 to vector<16x16xf32>
    %238 = arith.mulf %235, %237 : vector<16x16xf32>
    %239 = arith.addf %233, %238 : vector<16x16xf32>
    %c0_146 = arith.constant 0 : index
    %c1_147 = arith.constant 1 : index
    %c3_148 = arith.constant 3 : index
    %240 = vector.load %arg12[%c0_146, %c1_147, %c3_148] : memref<2x24x128xf32, #tpu.memory_space<vmem>>, vector<1x16x16xf32>
    %241 = vector.shape_cast %240 : vector<1x16x16xf32> to vector<16x16xf32>
    %c12_149 = arith.constant 12 : index
    %242 = memref.load %arg8[%c12_149] : memref<162xf32, #tpu.memory_space<smem>>
    %243 = vector.broadcast %242 : f32 to vector<16x16xf32>
    %244 = arith.mulf %241, %243 : vector<16x16xf32>
    %245 = arith.addf %239, %244 : vector<16x16xf32>
    %c0_150 = arith.constant 0 : index
    %c1_151 = arith.constant 1 : index
    %c4_152 = arith.constant 4 : index
    %246 = vector.load %arg12[%c0_150, %c1_151, %c4_152] : memref<2x24x128xf32, #tpu.memory_space<vmem>>, vector<1x16x16xf32>
    %247 = vector.shape_cast %246 : vector<1x16x16xf32> to vector<16x16xf32>
    %c13_153 = arith.constant 13 : index
    %248 = memref.load %arg8[%c13_153] : memref<162xf32, #tpu.memory_space<smem>>
    %249 = vector.broadcast %248 : f32 to vector<16x16xf32>
    %250 = arith.mulf %247, %249 : vector<16x16xf32>
    %251 = arith.addf %245, %250 : vector<16x16xf32>
    %c0_154 = arith.constant 0 : index
    %c1_155 = arith.constant 1 : index
    %c5_156 = arith.constant 5 : index
    %252 = vector.load %arg12[%c0_154, %c1_155, %c5_156] : memref<2x24x128xf32, #tpu.memory_space<vmem>>, vector<1x16x16xf32>
    %253 = vector.shape_cast %252 : vector<1x16x16xf32> to vector<16x16xf32>
    %c14_157 = arith.constant 14 : index
    %254 = memref.load %arg8[%c14_157] : memref<162xf32, #tpu.memory_space<smem>>
    %255 = vector.broadcast %254 : f32 to vector<16x16xf32>
    %256 = arith.mulf %253, %255 : vector<16x16xf32>
    %257 = arith.addf %251, %256 : vector<16x16xf32>
    %c0_158 = arith.constant 0 : index
    %c1_159 = arith.constant 1 : index
    %c6_160 = arith.constant 6 : index
    %258 = vector.load %arg12[%c0_158, %c1_159, %c6_160] : memref<2x24x128xf32, #tpu.memory_space<vmem>>, vector<1x16x16xf32>
    %259 = vector.shape_cast %258 : vector<1x16x16xf32> to vector<16x16xf32>
    %c15_161 = arith.constant 15 : index
    %260 = memref.load %arg8[%c15_161] : memref<162xf32, #tpu.memory_space<smem>>
    %261 = vector.broadcast %260 : f32 to vector<16x16xf32>
    %262 = arith.mulf %259, %261 : vector<16x16xf32>
    %263 = arith.addf %257, %262 : vector<16x16xf32>
    %c0_162 = arith.constant 0 : index
    %c1_163 = arith.constant 1 : index
    %c7_164 = arith.constant 7 : index
    %264 = vector.load %arg12[%c0_162, %c1_163, %c7_164] : memref<2x24x128xf32, #tpu.memory_space<vmem>>, vector<1x16x16xf32>
    %265 = vector.shape_cast %264 : vector<1x16x16xf32> to vector<16x16xf32>
    %c16_165 = arith.constant 16 : index
    %266 = memref.load %arg8[%c16_165] : memref<162xf32, #tpu.memory_space<smem>>
    %267 = vector.broadcast %266 : f32 to vector<16x16xf32>
    %268 = arith.mulf %265, %267 : vector<16x16xf32>
    %269 = arith.addf %263, %268 : vector<16x16xf32>
    %c0_166 = arith.constant 0 : index
    %c1_167 = arith.constant 1 : index
    %c8_168 = arith.constant 8 : index
    %270 = vector.load %arg12[%c0_166, %c1_167, %c8_168] : memref<2x24x128xf32, #tpu.memory_space<vmem>>, vector<1x16x16xf32>
    %271 = vector.shape_cast %270 : vector<1x16x16xf32> to vector<16x16xf32>
    %c17_169 = arith.constant 17 : index
    %272 = memref.load %arg8[%c17_169] : memref<162xf32, #tpu.memory_space<smem>>
    %273 = vector.broadcast %272 : f32 to vector<16x16xf32>
    %274 = arith.mulf %271, %273 : vector<16x16xf32>
    %275 = arith.addf %269, %274 : vector<16x16xf32>
    %c0_170 = arith.constant 0 : index
    %c2_171 = arith.constant 2 : index
    %c0_172 = arith.constant 0 : index
    %276 = vector.load %arg12[%c0_170, %c2_171, %c0_172] : memref<2x24x128xf32, #tpu.memory_space<vmem>>, vector<1x16x16xf32>
    %277 = vector.shape_cast %276 : vector<1x16x16xf32> to vector<16x16xf32>
    %c18_173 = arith.constant 18 : index
    %278 = memref.load %arg8[%c18_173] : memref<162xf32, #tpu.memory_space<smem>>
    %279 = vector.broadcast %278 : f32 to vector<16x16xf32>
    %280 = arith.mulf %277, %279 : vector<16x16xf32>
    %281 = arith.addf %275, %280 : vector<16x16xf32>
    %c0_174 = arith.constant 0 : index
    %c2_175 = arith.constant 2 : index
    %c1_176 = arith.constant 1 : index
    %282 = vector.load %arg12[%c0_174, %c2_175, %c1_176] : memref<2x24x128xf32, #tpu.memory_space<vmem>>, vector<1x16x16xf32>
    %283 = vector.shape_cast %282 : vector<1x16x16xf32> to vector<16x16xf32>
    %c19_177 = arith.constant 19 : index
    %284 = memref.load %arg8[%c19_177] : memref<162xf32, #tpu.memory_space<smem>>
    %285 = vector.broadcast %284 : f32 to vector<16x16xf32>
    %286 = arith.mulf %283, %285 : vector<16x16xf32>
    %287 = arith.addf %281, %286 : vector<16x16xf32>
    %c0_178 = arith.constant 0 : index
    %c2_179 = arith.constant 2 : index
    %c2_180 = arith.constant 2 : index
    %288 = vector.load %arg12[%c0_178, %c2_179, %c2_180] : memref<2x24x128xf32, #tpu.memory_space<vmem>>, vector<1x16x16xf32>
    %289 = vector.shape_cast %288 : vector<1x16x16xf32> to vector<16x16xf32>
    %c20 = arith.constant 20 : index
    %290 = memref.load %arg8[%c20] : memref<162xf32, #tpu.memory_space<smem>>
    %291 = vector.broadcast %290 : f32 to vector<16x16xf32>
    %292 = arith.mulf %289, %291 : vector<16x16xf32>
    %293 = arith.addf %287, %292 : vector<16x16xf32>
    %c0_181 = arith.constant 0 : index
    %c2_182 = arith.constant 2 : index
    %c3_183 = arith.constant 3 : index
    %294 = vector.load %arg12[%c0_181, %c2_182, %c3_183] : memref<2x24x128xf32, #tpu.memory_space<vmem>>, vector<1x16x16xf32>
    %295 = vector.shape_cast %294 : vector<1x16x16xf32> to vector<16x16xf32>
    %c21 = arith.constant 21 : index
    %296 = memref.load %arg8[%c21] : memref<162xf32, #tpu.memory_space<smem>>
    %297 = vector.broadcast %296 : f32 to vector<16x16xf32>
    %298 = arith.mulf %295, %297 : vector<16x16xf32>
    %299 = arith.addf %293, %298 : vector<16x16xf32>
    %c0_184 = arith.constant 0 : index
    %c2_185 = arith.constant 2 : index
    %c4_186 = arith.constant 4 : index
    %300 = vector.load %arg12[%c0_184, %c2_185, %c4_186] : memref<2x24x128xf32, #tpu.memory_space<vmem>>, vector<1x16x16xf32>
    %301 = vector.shape_cast %300 : vector<1x16x16xf32> to vector<16x16xf32>
    %c22 = arith.constant 22 : index
    %302 = memref.load %arg8[%c22] : memref<162xf32, #tpu.memory_space<smem>>
    %303 = vector.broadcast %302 : f32 to vector<16x16xf32>
    %304 = arith.mulf %301, %303 : vector<16x16xf32>
    %305 = arith.addf %299, %304 : vector<16x16xf32>
    %c0_187 = arith.constant 0 : index
    %c2_188 = arith.constant 2 : index
    %c5_189 = arith.constant 5 : index
    %306 = vector.load %arg12[%c0_187, %c2_188, %c5_189] : memref<2x24x128xf32, #tpu.memory_space<vmem>>, vector<1x16x16xf32>
    %307 = vector.shape_cast %306 : vector<1x16x16xf32> to vector<16x16xf32>
    %c23 = arith.constant 23 : index
    %308 = memref.load %arg8[%c23] : memref<162xf32, #tpu.memory_space<smem>>
    %309 = vector.broadcast %308 : f32 to vector<16x16xf32>
    %310 = arith.mulf %307, %309 : vector<16x16xf32>
    %311 = arith.addf %305, %310 : vector<16x16xf32>
    %c0_190 = arith.constant 0 : index
    %c2_191 = arith.constant 2 : index
    %c6_192 = arith.constant 6 : index
    %312 = vector.load %arg12[%c0_190, %c2_191, %c6_192] : memref<2x24x128xf32, #tpu.memory_space<vmem>>, vector<1x16x16xf32>
    %313 = vector.shape_cast %312 : vector<1x16x16xf32> to vector<16x16xf32>
    %c24 = arith.constant 24 : index
    %314 = memref.load %arg8[%c24] : memref<162xf32, #tpu.memory_space<smem>>
    %315 = vector.broadcast %314 : f32 to vector<16x16xf32>
    %316 = arith.mulf %313, %315 : vector<16x16xf32>
    %317 = arith.addf %311, %316 : vector<16x16xf32>
    %c0_193 = arith.constant 0 : index
    %c2_194 = arith.constant 2 : index
    %c7_195 = arith.constant 7 : index
    %318 = vector.load %arg12[%c0_193, %c2_194, %c7_195] : memref<2x24x128xf32, #tpu.memory_space<vmem>>, vector<1x16x16xf32>
    %319 = vector.shape_cast %318 : vector<1x16x16xf32> to vector<16x16xf32>
    %c25 = arith.constant 25 : index
    %320 = memref.load %arg8[%c25] : memref<162xf32, #tpu.memory_space<smem>>
    %321 = vector.broadcast %320 : f32 to vector<16x16xf32>
    %322 = arith.mulf %319, %321 : vector<16x16xf32>
    %323 = arith.addf %317, %322 : vector<16x16xf32>
    %c0_196 = arith.constant 0 : index
    %c2_197 = arith.constant 2 : index
    %c8_198 = arith.constant 8 : index
    %324 = vector.load %arg12[%c0_196, %c2_197, %c8_198] : memref<2x24x128xf32, #tpu.memory_space<vmem>>, vector<1x16x16xf32>
    %325 = vector.shape_cast %324 : vector<1x16x16xf32> to vector<16x16xf32>
    %c26 = arith.constant 26 : index
    %326 = memref.load %arg8[%c26] : memref<162xf32, #tpu.memory_space<smem>>
    %327 = vector.broadcast %326 : f32 to vector<16x16xf32>
    %328 = arith.mulf %325, %327 : vector<16x16xf32>
    %329 = arith.addf %323, %328 : vector<16x16xf32>
    %c0_199 = arith.constant 0 : index
    %c3_200 = arith.constant 3 : index
    %c0_201 = arith.constant 0 : index
    %330 = vector.load %arg12[%c0_199, %c3_200, %c0_201] : memref<2x24x128xf32, #tpu.memory_space<vmem>>, vector<1x16x16xf32>
    %331 = vector.shape_cast %330 : vector<1x16x16xf32> to vector<16x16xf32>
    %c27 = arith.constant 27 : index
    %332 = memref.load %arg8[%c27] : memref<162xf32, #tpu.memory_space<smem>>
    %333 = vector.broadcast %332 : f32 to vector<16x16xf32>
    %334 = arith.mulf %331, %333 : vector<16x16xf32>
    %335 = arith.addf %329, %334 : vector<16x16xf32>
    %c0_202 = arith.constant 0 : index
    %c3_203 = arith.constant 3 : index
    %c1_204 = arith.constant 1 : index
    %336 = vector.load %arg12[%c0_202, %c3_203, %c1_204] : memref<2x24x128xf32, #tpu.memory_space<vmem>>, vector<1x16x16xf32>
    %337 = vector.shape_cast %336 : vector<1x16x16xf32> to vector<16x16xf32>
    %c28 = arith.constant 28 : index
    %338 = memref.load %arg8[%c28] : memref<162xf32, #tpu.memory_space<smem>>
    %339 = vector.broadcast %338 : f32 to vector<16x16xf32>
    %340 = arith.mulf %337, %339 : vector<16x16xf32>
    %341 = arith.addf %335, %340 : vector<16x16xf32>
    %c0_205 = arith.constant 0 : index
    %c3_206 = arith.constant 3 : index
    %c2_207 = arith.constant 2 : index
    %342 = vector.load %arg12[%c0_205, %c3_206, %c2_207] : memref<2x24x128xf32, #tpu.memory_space<vmem>>, vector<1x16x16xf32>
    %343 = vector.shape_cast %342 : vector<1x16x16xf32> to vector<16x16xf32>
    %c29 = arith.constant 29 : index
    %344 = memref.load %arg8[%c29] : memref<162xf32, #tpu.memory_space<smem>>
    %345 = vector.broadcast %344 : f32 to vector<16x16xf32>
    %346 = arith.mulf %343, %345 : vector<16x16xf32>
    %347 = arith.addf %341, %346 : vector<16x16xf32>
    %c0_208 = arith.constant 0 : index
    %c3_209 = arith.constant 3 : index
    %c3_210 = arith.constant 3 : index
    %348 = vector.load %arg12[%c0_208, %c3_209, %c3_210] : memref<2x24x128xf32, #tpu.memory_space<vmem>>, vector<1x16x16xf32>
    %349 = vector.shape_cast %348 : vector<1x16x16xf32> to vector<16x16xf32>
    %c30 = arith.constant 30 : index
    %350 = memref.load %arg8[%c30] : memref<162xf32, #tpu.memory_space<smem>>
    %351 = vector.broadcast %350 : f32 to vector<16x16xf32>
    %352 = arith.mulf %349, %351 : vector<16x16xf32>
    %353 = arith.addf %347, %352 : vector<16x16xf32>
    %c0_211 = arith.constant 0 : index
    %c3_212 = arith.constant 3 : index
    %c4_213 = arith.constant 4 : index
    %354 = vector.load %arg12[%c0_211, %c3_212, %c4_213] : memref<2x24x128xf32, #tpu.memory_space<vmem>>, vector<1x16x16xf32>
    %355 = vector.shape_cast %354 : vector<1x16x16xf32> to vector<16x16xf32>
    %c31 = arith.constant 31 : index
    %356 = memref.load %arg8[%c31] : memref<162xf32, #tpu.memory_space<smem>>
    %357 = vector.broadcast %356 : f32 to vector<16x16xf32>
    %358 = arith.mulf %355, %357 : vector<16x16xf32>
    %359 = arith.addf %353, %358 : vector<16x16xf32>
    %c0_214 = arith.constant 0 : index
    %c3_215 = arith.constant 3 : index
    %c5_216 = arith.constant 5 : index
    %360 = vector.load %arg12[%c0_214, %c3_215, %c5_216] : memref<2x24x128xf32, #tpu.memory_space<vmem>>, vector<1x16x16xf32>
    %361 = vector.shape_cast %360 : vector<1x16x16xf32> to vector<16x16xf32>
    %c32 = arith.constant 32 : index
    %362 = memref.load %arg8[%c32] : memref<162xf32, #tpu.memory_space<smem>>
    %363 = vector.broadcast %362 : f32 to vector<16x16xf32>
    %364 = arith.mulf %361, %363 : vector<16x16xf32>
    %365 = arith.addf %359, %364 : vector<16x16xf32>
    %c0_217 = arith.constant 0 : index
    %c3_218 = arith.constant 3 : index
    %c6_219 = arith.constant 6 : index
    %366 = vector.load %arg12[%c0_217, %c3_218, %c6_219] : memref<2x24x128xf32, #tpu.memory_space<vmem>>, vector<1x16x16xf32>
    %367 = vector.shape_cast %366 : vector<1x16x16xf32> to vector<16x16xf32>
    %c33 = arith.constant 33 : index
    %368 = memref.load %arg8[%c33] : memref<162xf32, #tpu.memory_space<smem>>
    %369 = vector.broadcast %368 : f32 to vector<16x16xf32>
    %370 = arith.mulf %367, %369 : vector<16x16xf32>
    %371 = arith.addf %365, %370 : vector<16x16xf32>
    %c0_220 = arith.constant 0 : index
    %c3_221 = arith.constant 3 : index
    %c7_222 = arith.constant 7 : index
    %372 = vector.load %arg12[%c0_220, %c3_221, %c7_222] : memref<2x24x128xf32, #tpu.memory_space<vmem>>, vector<1x16x16xf32>
    %373 = vector.shape_cast %372 : vector<1x16x16xf32> to vector<16x16xf32>
    %c34 = arith.constant 34 : index
    %374 = memref.load %arg8[%c34] : memref<162xf32, #tpu.memory_space<smem>>
    %375 = vector.broadcast %374 : f32 to vector<16x16xf32>
    %376 = arith.mulf %373, %375 : vector<16x16xf32>
    %377 = arith.addf %371, %376 : vector<16x16xf32>
    %c0_223 = arith.constant 0 : index
    %c3_224 = arith.constant 3 : index
    %c8_225 = arith.constant 8 : index
    %378 = vector.load %arg12[%c0_223, %c3_224, %c8_225] : memref<2x24x128xf32, #tpu.memory_space<vmem>>, vector<1x16x16xf32>
    %379 = vector.shape_cast %378 : vector<1x16x16xf32> to vector<16x16xf32>
    %c35 = arith.constant 35 : index
    %380 = memref.load %arg8[%c35] : memref<162xf32, #tpu.memory_space<smem>>
    %381 = vector.broadcast %380 : f32 to vector<16x16xf32>
    %382 = arith.mulf %379, %381 : vector<16x16xf32>
    %383 = arith.addf %377, %382 : vector<16x16xf32>
    %c0_226 = arith.constant 0 : index
    %c4_227 = arith.constant 4 : index
    %c0_228 = arith.constant 0 : index
    %384 = vector.load %arg12[%c0_226, %c4_227, %c0_228] : memref<2x24x128xf32, #tpu.memory_space<vmem>>, vector<1x16x16xf32>
    %385 = vector.shape_cast %384 : vector<1x16x16xf32> to vector<16x16xf32>
    %c36 = arith.constant 36 : index
    %386 = memref.load %arg8[%c36] : memref<162xf32, #tpu.memory_space<smem>>
    %387 = vector.broadcast %386 : f32 to vector<16x16xf32>
    %388 = arith.mulf %385, %387 : vector<16x16xf32>
    %389 = arith.addf %383, %388 : vector<16x16xf32>
    %c0_229 = arith.constant 0 : index
    %c4_230 = arith.constant 4 : index
    %c1_231 = arith.constant 1 : index
    %390 = vector.load %arg12[%c0_229, %c4_230, %c1_231] : memref<2x24x128xf32, #tpu.memory_space<vmem>>, vector<1x16x16xf32>
    %391 = vector.shape_cast %390 : vector<1x16x16xf32> to vector<16x16xf32>
    %c37 = arith.constant 37 : index
    %392 = memref.load %arg8[%c37] : memref<162xf32, #tpu.memory_space<smem>>
    %393 = vector.broadcast %392 : f32 to vector<16x16xf32>
    %394 = arith.mulf %391, %393 : vector<16x16xf32>
    %395 = arith.addf %389, %394 : vector<16x16xf32>
    %c0_232 = arith.constant 0 : index
    %c4_233 = arith.constant 4 : index
    %c2_234 = arith.constant 2 : index
    %396 = vector.load %arg12[%c0_232, %c4_233, %c2_234] : memref<2x24x128xf32, #tpu.memory_space<vmem>>, vector<1x16x16xf32>
    %397 = vector.shape_cast %396 : vector<1x16x16xf32> to vector<16x16xf32>
    %c38 = arith.constant 38 : index
    %398 = memref.load %arg8[%c38] : memref<162xf32, #tpu.memory_space<smem>>
    %399 = vector.broadcast %398 : f32 to vector<16x16xf32>
    %400 = arith.mulf %397, %399 : vector<16x16xf32>
    %401 = arith.addf %395, %400 : vector<16x16xf32>
    %c0_235 = arith.constant 0 : index
    %c4_236 = arith.constant 4 : index
    %c3_237 = arith.constant 3 : index
    %402 = vector.load %arg12[%c0_235, %c4_236, %c3_237] : memref<2x24x128xf32, #tpu.memory_space<vmem>>, vector<1x16x16xf32>
    %403 = vector.shape_cast %402 : vector<1x16x16xf32> to vector<16x16xf32>
    %c39 = arith.constant 39 : index
    %404 = memref.load %arg8[%c39] : memref<162xf32, #tpu.memory_space<smem>>
    %405 = vector.broadcast %404 : f32 to vector<16x16xf32>
    %406 = arith.mulf %403, %405 : vector<16x16xf32>
    %407 = arith.addf %401, %406 : vector<16x16xf32>
    %c0_238 = arith.constant 0 : index
    %c4_239 = arith.constant 4 : index
    %c4_240 = arith.constant 4 : index
    %408 = vector.load %arg12[%c0_238, %c4_239, %c4_240] : memref<2x24x128xf32, #tpu.memory_space<vmem>>, vector<1x16x16xf32>
    %409 = vector.shape_cast %408 : vector<1x16x16xf32> to vector<16x16xf32>
    %c40 = arith.constant 40 : index
    %410 = memref.load %arg8[%c40] : memref<162xf32, #tpu.memory_space<smem>>
    %411 = vector.broadcast %410 : f32 to vector<16x16xf32>
    %412 = arith.mulf %409, %411 : vector<16x16xf32>
    %413 = arith.addf %407, %412 : vector<16x16xf32>
    %c0_241 = arith.constant 0 : index
    %c4_242 = arith.constant 4 : index
    %c5_243 = arith.constant 5 : index
    %414 = vector.load %arg12[%c0_241, %c4_242, %c5_243] : memref<2x24x128xf32, #tpu.memory_space<vmem>>, vector<1x16x16xf32>
    %415 = vector.shape_cast %414 : vector<1x16x16xf32> to vector<16x16xf32>
    %c41 = arith.constant 41 : index
    %416 = memref.load %arg8[%c41] : memref<162xf32, #tpu.memory_space<smem>>
    %417 = vector.broadcast %416 : f32 to vector<16x16xf32>
    %418 = arith.mulf %415, %417 : vector<16x16xf32>
    %419 = arith.addf %413, %418 : vector<16x16xf32>
    %c0_244 = arith.constant 0 : index
    %c4_245 = arith.constant 4 : index
    %c6_246 = arith.constant 6 : index
    %420 = vector.load %arg12[%c0_244, %c4_245, %c6_246] : memref<2x24x128xf32, #tpu.memory_space<vmem>>, vector<1x16x16xf32>
    %421 = vector.shape_cast %420 : vector<1x16x16xf32> to vector<16x16xf32>
    %c42 = arith.constant 42 : index
    %422 = memref.load %arg8[%c42] : memref<162xf32, #tpu.memory_space<smem>>
    %423 = vector.broadcast %422 : f32 to vector<16x16xf32>
    %424 = arith.mulf %421, %423 : vector<16x16xf32>
    %425 = arith.addf %419, %424 : vector<16x16xf32>
    %c0_247 = arith.constant 0 : index
    %c4_248 = arith.constant 4 : index
    %c7_249 = arith.constant 7 : index
    %426 = vector.load %arg12[%c0_247, %c4_248, %c7_249] : memref<2x24x128xf32, #tpu.memory_space<vmem>>, vector<1x16x16xf32>
    %427 = vector.shape_cast %426 : vector<1x16x16xf32> to vector<16x16xf32>
    %c43 = arith.constant 43 : index
    %428 = memref.load %arg8[%c43] : memref<162xf32, #tpu.memory_space<smem>>
    %429 = vector.broadcast %428 : f32 to vector<16x16xf32>
    %430 = arith.mulf %427, %429 : vector<16x16xf32>
    %431 = arith.addf %425, %430 : vector<16x16xf32>
    %c0_250 = arith.constant 0 : index
    %c4_251 = arith.constant 4 : index
    %c8_252 = arith.constant 8 : index
    %432 = vector.load %arg12[%c0_250, %c4_251, %c8_252] : memref<2x24x128xf32, #tpu.memory_space<vmem>>, vector<1x16x16xf32>
    %433 = vector.shape_cast %432 : vector<1x16x16xf32> to vector<16x16xf32>
    %c44 = arith.constant 44 : index
    %434 = memref.load %arg8[%c44] : memref<162xf32, #tpu.memory_space<smem>>
    %435 = vector.broadcast %434 : f32 to vector<16x16xf32>
    %436 = arith.mulf %433, %435 : vector<16x16xf32>
    %437 = arith.addf %431, %436 : vector<16x16xf32>
    %c0_253 = arith.constant 0 : index
    %c5_254 = arith.constant 5 : index
    %c0_255 = arith.constant 0 : index
    %438 = vector.load %arg12[%c0_253, %c5_254, %c0_255] : memref<2x24x128xf32, #tpu.memory_space<vmem>>, vector<1x16x16xf32>
    %439 = vector.shape_cast %438 : vector<1x16x16xf32> to vector<16x16xf32>
    %c45 = arith.constant 45 : index
    %440 = memref.load %arg8[%c45] : memref<162xf32, #tpu.memory_space<smem>>
    %441 = vector.broadcast %440 : f32 to vector<16x16xf32>
    %442 = arith.mulf %439, %441 : vector<16x16xf32>
    %443 = arith.addf %437, %442 : vector<16x16xf32>
    %c0_256 = arith.constant 0 : index
    %c5_257 = arith.constant 5 : index
    %c1_258 = arith.constant 1 : index
    %444 = vector.load %arg12[%c0_256, %c5_257, %c1_258] : memref<2x24x128xf32, #tpu.memory_space<vmem>>, vector<1x16x16xf32>
    %445 = vector.shape_cast %444 : vector<1x16x16xf32> to vector<16x16xf32>
    %c46 = arith.constant 46 : index
    %446 = memref.load %arg8[%c46] : memref<162xf32, #tpu.memory_space<smem>>
    %447 = vector.broadcast %446 : f32 to vector<16x16xf32>
    %448 = arith.mulf %445, %447 : vector<16x16xf32>
    %449 = arith.addf %443, %448 : vector<16x16xf32>
    %c0_259 = arith.constant 0 : index
    %c5_260 = arith.constant 5 : index
    %c2_261 = arith.constant 2 : index
    %450 = vector.load %arg12[%c0_259, %c5_260, %c2_261] : memref<2x24x128xf32, #tpu.memory_space<vmem>>, vector<1x16x16xf32>
    %451 = vector.shape_cast %450 : vector<1x16x16xf32> to vector<16x16xf32>
    %c47 = arith.constant 47 : index
    %452 = memref.load %arg8[%c47] : memref<162xf32, #tpu.memory_space<smem>>
    %453 = vector.broadcast %452 : f32 to vector<16x16xf32>
    %454 = arith.mulf %451, %453 : vector<16x16xf32>
    %455 = arith.addf %449, %454 : vector<16x16xf32>
    %c0_262 = arith.constant 0 : index
    %c5_263 = arith.constant 5 : index
    %c3_264 = arith.constant 3 : index
    %456 = vector.load %arg12[%c0_262, %c5_263, %c3_264] : memref<2x24x128xf32, #tpu.memory_space<vmem>>, vector<1x16x16xf32>
    %457 = vector.shape_cast %456 : vector<1x16x16xf32> to vector<16x16xf32>
    %c48 = arith.constant 48 : index
    %458 = memref.load %arg8[%c48] : memref<162xf32, #tpu.memory_space<smem>>
    %459 = vector.broadcast %458 : f32 to vector<16x16xf32>
    %460 = arith.mulf %457, %459 : vector<16x16xf32>
    %461 = arith.addf %455, %460 : vector<16x16xf32>
    %c0_265 = arith.constant 0 : index
    %c5_266 = arith.constant 5 : index
    %c4_267 = arith.constant 4 : index
    %462 = vector.load %arg12[%c0_265, %c5_266, %c4_267] : memref<2x24x128xf32, #tpu.memory_space<vmem>>, vector<1x16x16xf32>
    %463 = vector.shape_cast %462 : vector<1x16x16xf32> to vector<16x16xf32>
    %c49 = arith.constant 49 : index
    %464 = memref.load %arg8[%c49] : memref<162xf32, #tpu.memory_space<smem>>
    %465 = vector.broadcast %464 : f32 to vector<16x16xf32>
    %466 = arith.mulf %463, %465 : vector<16x16xf32>
    %467 = arith.addf %461, %466 : vector<16x16xf32>
    %c0_268 = arith.constant 0 : index
    %c5_269 = arith.constant 5 : index
    %c5_270 = arith.constant 5 : index
    %468 = vector.load %arg12[%c0_268, %c5_269, %c5_270] : memref<2x24x128xf32, #tpu.memory_space<vmem>>, vector<1x16x16xf32>
    %469 = vector.shape_cast %468 : vector<1x16x16xf32> to vector<16x16xf32>
    %c50 = arith.constant 50 : index
    %470 = memref.load %arg8[%c50] : memref<162xf32, #tpu.memory_space<smem>>
    %471 = vector.broadcast %470 : f32 to vector<16x16xf32>
    %472 = arith.mulf %469, %471 : vector<16x16xf32>
    %473 = arith.addf %467, %472 : vector<16x16xf32>
    %c0_271 = arith.constant 0 : index
    %c5_272 = arith.constant 5 : index
    %c6_273 = arith.constant 6 : index
    %474 = vector.load %arg12[%c0_271, %c5_272, %c6_273] : memref<2x24x128xf32, #tpu.memory_space<vmem>>, vector<1x16x16xf32>
    %475 = vector.shape_cast %474 : vector<1x16x16xf32> to vector<16x16xf32>
    %c51 = arith.constant 51 : index
    %476 = memref.load %arg8[%c51] : memref<162xf32, #tpu.memory_space<smem>>
    %477 = vector.broadcast %476 : f32 to vector<16x16xf32>
    %478 = arith.mulf %475, %477 : vector<16x16xf32>
    %479 = arith.addf %473, %478 : vector<16x16xf32>
    %c0_274 = arith.constant 0 : index
    %c5_275 = arith.constant 5 : index
    %c7_276 = arith.constant 7 : index
    %480 = vector.load %arg12[%c0_274, %c5_275, %c7_276] : memref<2x24x128xf32, #tpu.memory_space<vmem>>, vector<1x16x16xf32>
    %481 = vector.shape_cast %480 : vector<1x16x16xf32> to vector<16x16xf32>
    %c52 = arith.constant 52 : index
    %482 = memref.load %arg8[%c52] : memref<162xf32, #tpu.memory_space<smem>>
    %483 = vector.broadcast %482 : f32 to vector<16x16xf32>
    %484 = arith.mulf %481, %483 : vector<16x16xf32>
    %485 = arith.addf %479, %484 : vector<16x16xf32>
    %c0_277 = arith.constant 0 : index
    %c5_278 = arith.constant 5 : index
    %c8_279 = arith.constant 8 : index
    %486 = vector.load %arg12[%c0_277, %c5_278, %c8_279] : memref<2x24x128xf32, #tpu.memory_space<vmem>>, vector<1x16x16xf32>
    %487 = vector.shape_cast %486 : vector<1x16x16xf32> to vector<16x16xf32>
    %c53 = arith.constant 53 : index
    %488 = memref.load %arg8[%c53] : memref<162xf32, #tpu.memory_space<smem>>
    %489 = vector.broadcast %488 : f32 to vector<16x16xf32>
    %490 = arith.mulf %487, %489 : vector<16x16xf32>
    %491 = arith.addf %485, %490 : vector<16x16xf32>
    %c0_280 = arith.constant 0 : index
    %c6_281 = arith.constant 6 : index
    %c0_282 = arith.constant 0 : index
    %492 = vector.load %arg12[%c0_280, %c6_281, %c0_282] : memref<2x24x128xf32, #tpu.memory_space<vmem>>, vector<1x16x16xf32>
    %493 = vector.shape_cast %492 : vector<1x16x16xf32> to vector<16x16xf32>
    %c54 = arith.constant 54 : index
    %494 = memref.load %arg8[%c54] : memref<162xf32, #tpu.memory_space<smem>>
    %495 = vector.broadcast %494 : f32 to vector<16x16xf32>
    %496 = arith.mulf %493, %495 : vector<16x16xf32>
    %497 = arith.addf %491, %496 : vector<16x16xf32>
    %c0_283 = arith.constant 0 : index
    %c6_284 = arith.constant 6 : index
    %c1_285 = arith.constant 1 : index
    %498 = vector.load %arg12[%c0_283, %c6_284, %c1_285] : memref<2x24x128xf32, #tpu.memory_space<vmem>>, vector<1x16x16xf32>
    %499 = vector.shape_cast %498 : vector<1x16x16xf32> to vector<16x16xf32>
    %c55 = arith.constant 55 : index
    %500 = memref.load %arg8[%c55] : memref<162xf32, #tpu.memory_space<smem>>
    %501 = vector.broadcast %500 : f32 to vector<16x16xf32>
    %502 = arith.mulf %499, %501 : vector<16x16xf32>
    %503 = arith.addf %497, %502 : vector<16x16xf32>
    %c0_286 = arith.constant 0 : index
    %c6_287 = arith.constant 6 : index
    %c2_288 = arith.constant 2 : index
    %504 = vector.load %arg12[%c0_286, %c6_287, %c2_288] : memref<2x24x128xf32, #tpu.memory_space<vmem>>, vector<1x16x16xf32>
    %505 = vector.shape_cast %504 : vector<1x16x16xf32> to vector<16x16xf32>
    %c56 = arith.constant 56 : index
    %506 = memref.load %arg8[%c56] : memref<162xf32, #tpu.memory_space<smem>>
    %507 = vector.broadcast %506 : f32 to vector<16x16xf32>
    %508 = arith.mulf %505, %507 : vector<16x16xf32>
    %509 = arith.addf %503, %508 : vector<16x16xf32>
    %c0_289 = arith.constant 0 : index
    %c6_290 = arith.constant 6 : index
    %c3_291 = arith.constant 3 : index
    %510 = vector.load %arg12[%c0_289, %c6_290, %c3_291] : memref<2x24x128xf32, #tpu.memory_space<vmem>>, vector<1x16x16xf32>
    %511 = vector.shape_cast %510 : vector<1x16x16xf32> to vector<16x16xf32>
    %c57 = arith.constant 57 : index
    %512 = memref.load %arg8[%c57] : memref<162xf32, #tpu.memory_space<smem>>
    %513 = vector.broadcast %512 : f32 to vector<16x16xf32>
    %514 = arith.mulf %511, %513 : vector<16x16xf32>
    %515 = arith.addf %509, %514 : vector<16x16xf32>
    %c0_292 = arith.constant 0 : index
    %c6_293 = arith.constant 6 : index
    %c4_294 = arith.constant 4 : index
    %516 = vector.load %arg12[%c0_292, %c6_293, %c4_294] : memref<2x24x128xf32, #tpu.memory_space<vmem>>, vector<1x16x16xf32>
    %517 = vector.shape_cast %516 : vector<1x16x16xf32> to vector<16x16xf32>
    %c58 = arith.constant 58 : index
    %518 = memref.load %arg8[%c58] : memref<162xf32, #tpu.memory_space<smem>>
    %519 = vector.broadcast %518 : f32 to vector<16x16xf32>
    %520 = arith.mulf %517, %519 : vector<16x16xf32>
    %521 = arith.addf %515, %520 : vector<16x16xf32>
    %c0_295 = arith.constant 0 : index
    %c6_296 = arith.constant 6 : index
    %c5_297 = arith.constant 5 : index
    %522 = vector.load %arg12[%c0_295, %c6_296, %c5_297] : memref<2x24x128xf32, #tpu.memory_space<vmem>>, vector<1x16x16xf32>
    %523 = vector.shape_cast %522 : vector<1x16x16xf32> to vector<16x16xf32>
    %c59 = arith.constant 59 : index
    %524 = memref.load %arg8[%c59] : memref<162xf32, #tpu.memory_space<smem>>
    %525 = vector.broadcast %524 : f32 to vector<16x16xf32>
    %526 = arith.mulf %523, %525 : vector<16x16xf32>
    %527 = arith.addf %521, %526 : vector<16x16xf32>
    %c0_298 = arith.constant 0 : index
    %c6_299 = arith.constant 6 : index
    %c6_300 = arith.constant 6 : index
    %528 = vector.load %arg12[%c0_298, %c6_299, %c6_300] : memref<2x24x128xf32, #tpu.memory_space<vmem>>, vector<1x16x16xf32>
    %529 = vector.shape_cast %528 : vector<1x16x16xf32> to vector<16x16xf32>
    %c60 = arith.constant 60 : index
    %530 = memref.load %arg8[%c60] : memref<162xf32, #tpu.memory_space<smem>>
    %531 = vector.broadcast %530 : f32 to vector<16x16xf32>
    %532 = arith.mulf %529, %531 : vector<16x16xf32>
    %533 = arith.addf %527, %532 : vector<16x16xf32>
    %c0_301 = arith.constant 0 : index
    %c6_302 = arith.constant 6 : index
    %c7_303 = arith.constant 7 : index
    %534 = vector.load %arg12[%c0_301, %c6_302, %c7_303] : memref<2x24x128xf32, #tpu.memory_space<vmem>>, vector<1x16x16xf32>
    %535 = vector.shape_cast %534 : vector<1x16x16xf32> to vector<16x16xf32>
    %c61 = arith.constant 61 : index
    %536 = memref.load %arg8[%c61] : memref<162xf32, #tpu.memory_space<smem>>
    %537 = vector.broadcast %536 : f32 to vector<16x16xf32>
    %538 = arith.mulf %535, %537 : vector<16x16xf32>
    %539 = arith.addf %533, %538 : vector<16x16xf32>
    %c0_304 = arith.constant 0 : index
    %c6_305 = arith.constant 6 : index
    %c8_306 = arith.constant 8 : index
    %540 = vector.load %arg12[%c0_304, %c6_305, %c8_306] : memref<2x24x128xf32, #tpu.memory_space<vmem>>, vector<1x16x16xf32>
    %541 = vector.shape_cast %540 : vector<1x16x16xf32> to vector<16x16xf32>
    %c62 = arith.constant 62 : index
    %542 = memref.load %arg8[%c62] : memref<162xf32, #tpu.memory_space<smem>>
    %543 = vector.broadcast %542 : f32 to vector<16x16xf32>
    %544 = arith.mulf %541, %543 : vector<16x16xf32>
    %545 = arith.addf %539, %544 : vector<16x16xf32>
    %c0_307 = arith.constant 0 : index
    %c7_308 = arith.constant 7 : index
    %c0_309 = arith.constant 0 : index
    %546 = vector.load %arg12[%c0_307, %c7_308, %c0_309] : memref<2x24x128xf32, #tpu.memory_space<vmem>>, vector<1x16x16xf32>
    %547 = vector.shape_cast %546 : vector<1x16x16xf32> to vector<16x16xf32>
    %c63 = arith.constant 63 : index
    %548 = memref.load %arg8[%c63] : memref<162xf32, #tpu.memory_space<smem>>
    %549 = vector.broadcast %548 : f32 to vector<16x16xf32>
    %550 = arith.mulf %547, %549 : vector<16x16xf32>
    %551 = arith.addf %545, %550 : vector<16x16xf32>
    %c0_310 = arith.constant 0 : index
    %c7_311 = arith.constant 7 : index
    %c1_312 = arith.constant 1 : index
    %552 = vector.load %arg12[%c0_310, %c7_311, %c1_312] : memref<2x24x128xf32, #tpu.memory_space<vmem>>, vector<1x16x16xf32>
    %553 = vector.shape_cast %552 : vector<1x16x16xf32> to vector<16x16xf32>
    %c64 = arith.constant 64 : index
    %554 = memref.load %arg8[%c64] : memref<162xf32, #tpu.memory_space<smem>>
    %555 = vector.broadcast %554 : f32 to vector<16x16xf32>
    %556 = arith.mulf %553, %555 : vector<16x16xf32>
    %557 = arith.addf %551, %556 : vector<16x16xf32>
    %c0_313 = arith.constant 0 : index
    %c7_314 = arith.constant 7 : index
    %c2_315 = arith.constant 2 : index
    %558 = vector.load %arg12[%c0_313, %c7_314, %c2_315] : memref<2x24x128xf32, #tpu.memory_space<vmem>>, vector<1x16x16xf32>
    %559 = vector.shape_cast %558 : vector<1x16x16xf32> to vector<16x16xf32>
    %c65 = arith.constant 65 : index
    %560 = memref.load %arg8[%c65] : memref<162xf32, #tpu.memory_space<smem>>
    %561 = vector.broadcast %560 : f32 to vector<16x16xf32>
    %562 = arith.mulf %559, %561 : vector<16x16xf32>
    %563 = arith.addf %557, %562 : vector<16x16xf32>
    %c0_316 = arith.constant 0 : index
    %c7_317 = arith.constant 7 : index
    %c3_318 = arith.constant 3 : index
    %564 = vector.load %arg12[%c0_316, %c7_317, %c3_318] : memref<2x24x128xf32, #tpu.memory_space<vmem>>, vector<1x16x16xf32>
    %565 = vector.shape_cast %564 : vector<1x16x16xf32> to vector<16x16xf32>
    %c66 = arith.constant 66 : index
    %566 = memref.load %arg8[%c66] : memref<162xf32, #tpu.memory_space<smem>>
    %567 = vector.broadcast %566 : f32 to vector<16x16xf32>
    %568 = arith.mulf %565, %567 : vector<16x16xf32>
    %569 = arith.addf %563, %568 : vector<16x16xf32>
    %c0_319 = arith.constant 0 : index
    %c7_320 = arith.constant 7 : index
    %c4_321 = arith.constant 4 : index
    %570 = vector.load %arg12[%c0_319, %c7_320, %c4_321] : memref<2x24x128xf32, #tpu.memory_space<vmem>>, vector<1x16x16xf32>
    %571 = vector.shape_cast %570 : vector<1x16x16xf32> to vector<16x16xf32>
    %c67 = arith.constant 67 : index
    %572 = memref.load %arg8[%c67] : memref<162xf32, #tpu.memory_space<smem>>
    %573 = vector.broadcast %572 : f32 to vector<16x16xf32>
    %574 = arith.mulf %571, %573 : vector<16x16xf32>
    %575 = arith.addf %569, %574 : vector<16x16xf32>
    %c0_322 = arith.constant 0 : index
    %c7_323 = arith.constant 7 : index
    %c5_324 = arith.constant 5 : index
    %576 = vector.load %arg12[%c0_322, %c7_323, %c5_324] : memref<2x24x128xf32, #tpu.memory_space<vmem>>, vector<1x16x16xf32>
    %577 = vector.shape_cast %576 : vector<1x16x16xf32> to vector<16x16xf32>
    %c68 = arith.constant 68 : index
    %578 = memref.load %arg8[%c68] : memref<162xf32, #tpu.memory_space<smem>>
    %579 = vector.broadcast %578 : f32 to vector<16x16xf32>
    %580 = arith.mulf %577, %579 : vector<16x16xf32>
    %581 = arith.addf %575, %580 : vector<16x16xf32>
    %c0_325 = arith.constant 0 : index
    %c7_326 = arith.constant 7 : index
    %c6_327 = arith.constant 6 : index
    %582 = vector.load %arg12[%c0_325, %c7_326, %c6_327] : memref<2x24x128xf32, #tpu.memory_space<vmem>>, vector<1x16x16xf32>
    %583 = vector.shape_cast %582 : vector<1x16x16xf32> to vector<16x16xf32>
    %c69 = arith.constant 69 : index
    %584 = memref.load %arg8[%c69] : memref<162xf32, #tpu.memory_space<smem>>
    %585 = vector.broadcast %584 : f32 to vector<16x16xf32>
    %586 = arith.mulf %583, %585 : vector<16x16xf32>
    %587 = arith.addf %581, %586 : vector<16x16xf32>
    %c0_328 = arith.constant 0 : index
    %c7_329 = arith.constant 7 : index
    %c7_330 = arith.constant 7 : index
    %588 = vector.load %arg12[%c0_328, %c7_329, %c7_330] : memref<2x24x128xf32, #tpu.memory_space<vmem>>, vector<1x16x16xf32>
    %589 = vector.shape_cast %588 : vector<1x16x16xf32> to vector<16x16xf32>
    %c70 = arith.constant 70 : index
    %590 = memref.load %arg8[%c70] : memref<162xf32, #tpu.memory_space<smem>>
    %591 = vector.broadcast %590 : f32 to vector<16x16xf32>
    %592 = arith.mulf %589, %591 : vector<16x16xf32>
    %593 = arith.addf %587, %592 : vector<16x16xf32>
    %c0_331 = arith.constant 0 : index
    %c7_332 = arith.constant 7 : index
    %c8_333 = arith.constant 8 : index
    %594 = vector.load %arg12[%c0_331, %c7_332, %c8_333] : memref<2x24x128xf32, #tpu.memory_space<vmem>>, vector<1x16x16xf32>
    %595 = vector.shape_cast %594 : vector<1x16x16xf32> to vector<16x16xf32>
    %c71 = arith.constant 71 : index
    %596 = memref.load %arg8[%c71] : memref<162xf32, #tpu.memory_space<smem>>
    %597 = vector.broadcast %596 : f32 to vector<16x16xf32>
    %598 = arith.mulf %595, %597 : vector<16x16xf32>
    %599 = arith.addf %593, %598 : vector<16x16xf32>
    %c0_334 = arith.constant 0 : index
    %c8_335 = arith.constant 8 : index
    %c0_336 = arith.constant 0 : index
    %600 = vector.load %arg12[%c0_334, %c8_335, %c0_336] : memref<2x24x128xf32, #tpu.memory_space<vmem>>, vector<1x16x16xf32>
    %601 = vector.shape_cast %600 : vector<1x16x16xf32> to vector<16x16xf32>
    %c72 = arith.constant 72 : index
    %602 = memref.load %arg8[%c72] : memref<162xf32, #tpu.memory_space<smem>>
    %603 = vector.broadcast %602 : f32 to vector<16x16xf32>
    %604 = arith.mulf %601, %603 : vector<16x16xf32>
    %605 = arith.addf %599, %604 : vector<16x16xf32>
    %c0_337 = arith.constant 0 : index
    %c8_338 = arith.constant 8 : index
    %c1_339 = arith.constant 1 : index
    %606 = vector.load %arg12[%c0_337, %c8_338, %c1_339] : memref<2x24x128xf32, #tpu.memory_space<vmem>>, vector<1x16x16xf32>
    %607 = vector.shape_cast %606 : vector<1x16x16xf32> to vector<16x16xf32>
    %c73 = arith.constant 73 : index
    %608 = memref.load %arg8[%c73] : memref<162xf32, #tpu.memory_space<smem>>
    %609 = vector.broadcast %608 : f32 to vector<16x16xf32>
    %610 = arith.mulf %607, %609 : vector<16x16xf32>
    %611 = arith.addf %605, %610 : vector<16x16xf32>
    %c0_340 = arith.constant 0 : index
    %c8_341 = arith.constant 8 : index
    %c2_342 = arith.constant 2 : index
    %612 = vector.load %arg12[%c0_340, %c8_341, %c2_342] : memref<2x24x128xf32, #tpu.memory_space<vmem>>, vector<1x16x16xf32>
    %613 = vector.shape_cast %612 : vector<1x16x16xf32> to vector<16x16xf32>
    %c74 = arith.constant 74 : index
    %614 = memref.load %arg8[%c74] : memref<162xf32, #tpu.memory_space<smem>>
    %615 = vector.broadcast %614 : f32 to vector<16x16xf32>
    %616 = arith.mulf %613, %615 : vector<16x16xf32>
    %617 = arith.addf %611, %616 : vector<16x16xf32>
    %c0_343 = arith.constant 0 : index
    %c8_344 = arith.constant 8 : index
    %c3_345 = arith.constant 3 : index
    %618 = vector.load %arg12[%c0_343, %c8_344, %c3_345] : memref<2x24x128xf32, #tpu.memory_space<vmem>>, vector<1x16x16xf32>
    %619 = vector.shape_cast %618 : vector<1x16x16xf32> to vector<16x16xf32>
    %c75 = arith.constant 75 : index
    %620 = memref.load %arg8[%c75] : memref<162xf32, #tpu.memory_space<smem>>
    %621 = vector.broadcast %620 : f32 to vector<16x16xf32>
    %622 = arith.mulf %619, %621 : vector<16x16xf32>
    %623 = arith.addf %617, %622 : vector<16x16xf32>
    %c0_346 = arith.constant 0 : index
    %c8_347 = arith.constant 8 : index
    %c4_348 = arith.constant 4 : index
    %624 = vector.load %arg12[%c0_346, %c8_347, %c4_348] : memref<2x24x128xf32, #tpu.memory_space<vmem>>, vector<1x16x16xf32>
    %625 = vector.shape_cast %624 : vector<1x16x16xf32> to vector<16x16xf32>
    %c76 = arith.constant 76 : index
    %626 = memref.load %arg8[%c76] : memref<162xf32, #tpu.memory_space<smem>>
    %627 = vector.broadcast %626 : f32 to vector<16x16xf32>
    %628 = arith.mulf %625, %627 : vector<16x16xf32>
    %629 = arith.addf %623, %628 : vector<16x16xf32>
    %c0_349 = arith.constant 0 : index
    %c8_350 = arith.constant 8 : index
    %c5_351 = arith.constant 5 : index
    %630 = vector.load %arg12[%c0_349, %c8_350, %c5_351] : memref<2x24x128xf32, #tpu.memory_space<vmem>>, vector<1x16x16xf32>
    %631 = vector.shape_cast %630 : vector<1x16x16xf32> to vector<16x16xf32>
    %c77 = arith.constant 77 : index
    %632 = memref.load %arg8[%c77] : memref<162xf32, #tpu.memory_space<smem>>
    %633 = vector.broadcast %632 : f32 to vector<16x16xf32>
    %634 = arith.mulf %631, %633 : vector<16x16xf32>
    %635 = arith.addf %629, %634 : vector<16x16xf32>
    %c0_352 = arith.constant 0 : index
    %c8_353 = arith.constant 8 : index
    %c6_354 = arith.constant 6 : index
    %636 = vector.load %arg12[%c0_352, %c8_353, %c6_354] : memref<2x24x128xf32, #tpu.memory_space<vmem>>, vector<1x16x16xf32>
    %637 = vector.shape_cast %636 : vector<1x16x16xf32> to vector<16x16xf32>
    %c78 = arith.constant 78 : index
    %638 = memref.load %arg8[%c78] : memref<162xf32, #tpu.memory_space<smem>>
    %639 = vector.broadcast %638 : f32 to vector<16x16xf32>
    %640 = arith.mulf %637, %639 : vector<16x16xf32>
    %641 = arith.addf %635, %640 : vector<16x16xf32>
    %c0_355 = arith.constant 0 : index
    %c8_356 = arith.constant 8 : index
    %c7_357 = arith.constant 7 : index
    %642 = vector.load %arg12[%c0_355, %c8_356, %c7_357] : memref<2x24x128xf32, #tpu.memory_space<vmem>>, vector<1x16x16xf32>
    %643 = vector.shape_cast %642 : vector<1x16x16xf32> to vector<16x16xf32>
    %c79 = arith.constant 79 : index
    %644 = memref.load %arg8[%c79] : memref<162xf32, #tpu.memory_space<smem>>
    %645 = vector.broadcast %644 : f32 to vector<16x16xf32>
    %646 = arith.mulf %643, %645 : vector<16x16xf32>
    %647 = arith.addf %641, %646 : vector<16x16xf32>
    %c0_358 = arith.constant 0 : index
    %c8_359 = arith.constant 8 : index
    %c8_360 = arith.constant 8 : index
    %648 = vector.load %arg12[%c0_358, %c8_359, %c8_360] : memref<2x24x128xf32, #tpu.memory_space<vmem>>, vector<1x16x16xf32>
    %649 = vector.shape_cast %648 : vector<1x16x16xf32> to vector<16x16xf32>
    %c80 = arith.constant 80 : index
    %650 = memref.load %arg8[%c80] : memref<162xf32, #tpu.memory_space<smem>>
    %651 = vector.broadcast %650 : f32 to vector<16x16xf32>
    %652 = arith.mulf %649, %651 : vector<16x16xf32>
    %653 = arith.addf %647, %652 : vector<16x16xf32>
    %c1_361 = arith.constant 1 : index
    %c0_362 = arith.constant 0 : index
    %c0_363 = arith.constant 0 : index
    %654 = vector.load %arg12[%c1_361, %c0_362, %c0_363] : memref<2x24x128xf32, #tpu.memory_space<vmem>>, vector<1x16x16xf32>
    %655 = vector.shape_cast %654 : vector<1x16x16xf32> to vector<16x16xf32>
    %c81 = arith.constant 81 : index
    %656 = memref.load %arg8[%c81] : memref<162xf32, #tpu.memory_space<smem>>
    %657 = vector.broadcast %656 : f32 to vector<16x16xf32>
    %658 = arith.mulf %655, %657 : vector<16x16xf32>
    %659 = arith.addf %653, %658 : vector<16x16xf32>
    %c1_364 = arith.constant 1 : index
    %c0_365 = arith.constant 0 : index
    %c1_366 = arith.constant 1 : index
    %660 = vector.load %arg12[%c1_364, %c0_365, %c1_366] : memref<2x24x128xf32, #tpu.memory_space<vmem>>, vector<1x16x16xf32>
    %661 = vector.shape_cast %660 : vector<1x16x16xf32> to vector<16x16xf32>
    %c82 = arith.constant 82 : index
    %662 = memref.load %arg8[%c82] : memref<162xf32, #tpu.memory_space<smem>>
    %663 = vector.broadcast %662 : f32 to vector<16x16xf32>
    %664 = arith.mulf %661, %663 : vector<16x16xf32>
    %665 = arith.addf %659, %664 : vector<16x16xf32>
    %c1_367 = arith.constant 1 : index
    %c0_368 = arith.constant 0 : index
    %c2_369 = arith.constant 2 : index
    %666 = vector.load %arg12[%c1_367, %c0_368, %c2_369] : memref<2x24x128xf32, #tpu.memory_space<vmem>>, vector<1x16x16xf32>
    %667 = vector.shape_cast %666 : vector<1x16x16xf32> to vector<16x16xf32>
    %c83 = arith.constant 83 : index
    %668 = memref.load %arg8[%c83] : memref<162xf32, #tpu.memory_space<smem>>
    %669 = vector.broadcast %668 : f32 to vector<16x16xf32>
    %670 = arith.mulf %667, %669 : vector<16x16xf32>
    %671 = arith.addf %665, %670 : vector<16x16xf32>
    %c1_370 = arith.constant 1 : index
    %c0_371 = arith.constant 0 : index
    %c3_372 = arith.constant 3 : index
    %672 = vector.load %arg12[%c1_370, %c0_371, %c3_372] : memref<2x24x128xf32, #tpu.memory_space<vmem>>, vector<1x16x16xf32>
    %673 = vector.shape_cast %672 : vector<1x16x16xf32> to vector<16x16xf32>
    %c84 = arith.constant 84 : index
    %674 = memref.load %arg8[%c84] : memref<162xf32, #tpu.memory_space<smem>>
    %675 = vector.broadcast %674 : f32 to vector<16x16xf32>
    %676 = arith.mulf %673, %675 : vector<16x16xf32>
    %677 = arith.addf %671, %676 : vector<16x16xf32>
    %c1_373 = arith.constant 1 : index
    %c0_374 = arith.constant 0 : index
    %c4_375 = arith.constant 4 : index
    %678 = vector.load %arg12[%c1_373, %c0_374, %c4_375] : memref<2x24x128xf32, #tpu.memory_space<vmem>>, vector<1x16x16xf32>
    %679 = vector.shape_cast %678 : vector<1x16x16xf32> to vector<16x16xf32>
    %c85 = arith.constant 85 : index
    %680 = memref.load %arg8[%c85] : memref<162xf32, #tpu.memory_space<smem>>
    %681 = vector.broadcast %680 : f32 to vector<16x16xf32>
    %682 = arith.mulf %679, %681 : vector<16x16xf32>
    %683 = arith.addf %677, %682 : vector<16x16xf32>
    %c1_376 = arith.constant 1 : index
    %c0_377 = arith.constant 0 : index
    %c5_378 = arith.constant 5 : index
    %684 = vector.load %arg12[%c1_376, %c0_377, %c5_378] : memref<2x24x128xf32, #tpu.memory_space<vmem>>, vector<1x16x16xf32>
    %685 = vector.shape_cast %684 : vector<1x16x16xf32> to vector<16x16xf32>
    %c86 = arith.constant 86 : index
    %686 = memref.load %arg8[%c86] : memref<162xf32, #tpu.memory_space<smem>>
    %687 = vector.broadcast %686 : f32 to vector<16x16xf32>
    %688 = arith.mulf %685, %687 : vector<16x16xf32>
    %689 = arith.addf %683, %688 : vector<16x16xf32>
    %c1_379 = arith.constant 1 : index
    %c0_380 = arith.constant 0 : index
    %c6_381 = arith.constant 6 : index
    %690 = vector.load %arg12[%c1_379, %c0_380, %c6_381] : memref<2x24x128xf32, #tpu.memory_space<vmem>>, vector<1x16x16xf32>
    %691 = vector.shape_cast %690 : vector<1x16x16xf32> to vector<16x16xf32>
    %c87 = arith.constant 87 : index
    %692 = memref.load %arg8[%c87] : memref<162xf32, #tpu.memory_space<smem>>
    %693 = vector.broadcast %692 : f32 to vector<16x16xf32>
    %694 = arith.mulf %691, %693 : vector<16x16xf32>
    %695 = arith.addf %689, %694 : vector<16x16xf32>
    %c1_382 = arith.constant 1 : index
    %c0_383 = arith.constant 0 : index
    %c7_384 = arith.constant 7 : index
    %696 = vector.load %arg12[%c1_382, %c0_383, %c7_384] : memref<2x24x128xf32, #tpu.memory_space<vmem>>, vector<1x16x16xf32>
    %697 = vector.shape_cast %696 : vector<1x16x16xf32> to vector<16x16xf32>
    %c88 = arith.constant 88 : index
    %698 = memref.load %arg8[%c88] : memref<162xf32, #tpu.memory_space<smem>>
    %699 = vector.broadcast %698 : f32 to vector<16x16xf32>
    %700 = arith.mulf %697, %699 : vector<16x16xf32>
    %701 = arith.addf %695, %700 : vector<16x16xf32>
    %c1_385 = arith.constant 1 : index
    %c0_386 = arith.constant 0 : index
    %c8_387 = arith.constant 8 : index
    %702 = vector.load %arg12[%c1_385, %c0_386, %c8_387] : memref<2x24x128xf32, #tpu.memory_space<vmem>>, vector<1x16x16xf32>
    %703 = vector.shape_cast %702 : vector<1x16x16xf32> to vector<16x16xf32>
    %c89 = arith.constant 89 : index
    %704 = memref.load %arg8[%c89] : memref<162xf32, #tpu.memory_space<smem>>
    %705 = vector.broadcast %704 : f32 to vector<16x16xf32>
    %706 = arith.mulf %703, %705 : vector<16x16xf32>
    %707 = arith.addf %701, %706 : vector<16x16xf32>
    %c1_388 = arith.constant 1 : index
    %c1_389 = arith.constant 1 : index
    %c0_390 = arith.constant 0 : index
    %708 = vector.load %arg12[%c1_388, %c1_389, %c0_390] : memref<2x24x128xf32, #tpu.memory_space<vmem>>, vector<1x16x16xf32>
    %709 = vector.shape_cast %708 : vector<1x16x16xf32> to vector<16x16xf32>
    %c90 = arith.constant 90 : index
    %710 = memref.load %arg8[%c90] : memref<162xf32, #tpu.memory_space<smem>>
    %711 = vector.broadcast %710 : f32 to vector<16x16xf32>
    %712 = arith.mulf %709, %711 : vector<16x16xf32>
    %713 = arith.addf %707, %712 : vector<16x16xf32>
    %c1_391 = arith.constant 1 : index
    %c1_392 = arith.constant 1 : index
    %c1_393 = arith.constant 1 : index
    %714 = vector.load %arg12[%c1_391, %c1_392, %c1_393] : memref<2x24x128xf32, #tpu.memory_space<vmem>>, vector<1x16x16xf32>
    %715 = vector.shape_cast %714 : vector<1x16x16xf32> to vector<16x16xf32>
    %c91 = arith.constant 91 : index
    %716 = memref.load %arg8[%c91] : memref<162xf32, #tpu.memory_space<smem>>
    %717 = vector.broadcast %716 : f32 to vector<16x16xf32>
    %718 = arith.mulf %715, %717 : vector<16x16xf32>
    %719 = arith.addf %713, %718 : vector<16x16xf32>
    %c1_394 = arith.constant 1 : index
    %c1_395 = arith.constant 1 : index
    %c2_396 = arith.constant 2 : index
    %720 = vector.load %arg12[%c1_394, %c1_395, %c2_396] : memref<2x24x128xf32, #tpu.memory_space<vmem>>, vector<1x16x16xf32>
    %721 = vector.shape_cast %720 : vector<1x16x16xf32> to vector<16x16xf32>
    %c92 = arith.constant 92 : index
    %722 = memref.load %arg8[%c92] : memref<162xf32, #tpu.memory_space<smem>>
    %723 = vector.broadcast %722 : f32 to vector<16x16xf32>
    %724 = arith.mulf %721, %723 : vector<16x16xf32>
    %725 = arith.addf %719, %724 : vector<16x16xf32>
    %c1_397 = arith.constant 1 : index
    %c1_398 = arith.constant 1 : index
    %c3_399 = arith.constant 3 : index
    %726 = vector.load %arg12[%c1_397, %c1_398, %c3_399] : memref<2x24x128xf32, #tpu.memory_space<vmem>>, vector<1x16x16xf32>
    %727 = vector.shape_cast %726 : vector<1x16x16xf32> to vector<16x16xf32>
    %c93 = arith.constant 93 : index
    %728 = memref.load %arg8[%c93] : memref<162xf32, #tpu.memory_space<smem>>
    %729 = vector.broadcast %728 : f32 to vector<16x16xf32>
    %730 = arith.mulf %727, %729 : vector<16x16xf32>
    %731 = arith.addf %725, %730 : vector<16x16xf32>
    %c1_400 = arith.constant 1 : index
    %c1_401 = arith.constant 1 : index
    %c4_402 = arith.constant 4 : index
    %732 = vector.load %arg12[%c1_400, %c1_401, %c4_402] : memref<2x24x128xf32, #tpu.memory_space<vmem>>, vector<1x16x16xf32>
    %733 = vector.shape_cast %732 : vector<1x16x16xf32> to vector<16x16xf32>
    %c94 = arith.constant 94 : index
    %734 = memref.load %arg8[%c94] : memref<162xf32, #tpu.memory_space<smem>>
    %735 = vector.broadcast %734 : f32 to vector<16x16xf32>
    %736 = arith.mulf %733, %735 : vector<16x16xf32>
    %737 = arith.addf %731, %736 : vector<16x16xf32>
    %c1_403 = arith.constant 1 : index
    %c1_404 = arith.constant 1 : index
    %c5_405 = arith.constant 5 : index
    %738 = vector.load %arg12[%c1_403, %c1_404, %c5_405] : memref<2x24x128xf32, #tpu.memory_space<vmem>>, vector<1x16x16xf32>
    %739 = vector.shape_cast %738 : vector<1x16x16xf32> to vector<16x16xf32>
    %c95 = arith.constant 95 : index
    %740 = memref.load %arg8[%c95] : memref<162xf32, #tpu.memory_space<smem>>
    %741 = vector.broadcast %740 : f32 to vector<16x16xf32>
    %742 = arith.mulf %739, %741 : vector<16x16xf32>
    %743 = arith.addf %737, %742 : vector<16x16xf32>
    %c1_406 = arith.constant 1 : index
    %c1_407 = arith.constant 1 : index
    %c6_408 = arith.constant 6 : index
    %744 = vector.load %arg12[%c1_406, %c1_407, %c6_408] : memref<2x24x128xf32, #tpu.memory_space<vmem>>, vector<1x16x16xf32>
    %745 = vector.shape_cast %744 : vector<1x16x16xf32> to vector<16x16xf32>
    %c96 = arith.constant 96 : index
    %746 = memref.load %arg8[%c96] : memref<162xf32, #tpu.memory_space<smem>>
    %747 = vector.broadcast %746 : f32 to vector<16x16xf32>
    %748 = arith.mulf %745, %747 : vector<16x16xf32>
    %749 = arith.addf %743, %748 : vector<16x16xf32>
    %c1_409 = arith.constant 1 : index
    %c1_410 = arith.constant 1 : index
    %c7_411 = arith.constant 7 : index
    %750 = vector.load %arg12[%c1_409, %c1_410, %c7_411] : memref<2x24x128xf32, #tpu.memory_space<vmem>>, vector<1x16x16xf32>
    %751 = vector.shape_cast %750 : vector<1x16x16xf32> to vector<16x16xf32>
    %c97 = arith.constant 97 : index
    %752 = memref.load %arg8[%c97] : memref<162xf32, #tpu.memory_space<smem>>
    %753 = vector.broadcast %752 : f32 to vector<16x16xf32>
    %754 = arith.mulf %751, %753 : vector<16x16xf32>
    %755 = arith.addf %749, %754 : vector<16x16xf32>
    %c1_412 = arith.constant 1 : index
    %c1_413 = arith.constant 1 : index
    %c8_414 = arith.constant 8 : index
    %756 = vector.load %arg12[%c1_412, %c1_413, %c8_414] : memref<2x24x128xf32, #tpu.memory_space<vmem>>, vector<1x16x16xf32>
    %757 = vector.shape_cast %756 : vector<1x16x16xf32> to vector<16x16xf32>
    %c98 = arith.constant 98 : index
    %758 = memref.load %arg8[%c98] : memref<162xf32, #tpu.memory_space<smem>>
    %759 = vector.broadcast %758 : f32 to vector<16x16xf32>
    %760 = arith.mulf %757, %759 : vector<16x16xf32>
    %761 = arith.addf %755, %760 : vector<16x16xf32>
    %c1_415 = arith.constant 1 : index
    %c2_416 = arith.constant 2 : index
    %c0_417 = arith.constant 0 : index
    %762 = vector.load %arg12[%c1_415, %c2_416, %c0_417] : memref<2x24x128xf32, #tpu.memory_space<vmem>>, vector<1x16x16xf32>
    %763 = vector.shape_cast %762 : vector<1x16x16xf32> to vector<16x16xf32>
    %c99 = arith.constant 99 : index
    %764 = memref.load %arg8[%c99] : memref<162xf32, #tpu.memory_space<smem>>
    %765 = vector.broadcast %764 : f32 to vector<16x16xf32>
    %766 = arith.mulf %763, %765 : vector<16x16xf32>
    %767 = arith.addf %761, %766 : vector<16x16xf32>
    %c1_418 = arith.constant 1 : index
    %c2_419 = arith.constant 2 : index
    %c1_420 = arith.constant 1 : index
    %768 = vector.load %arg12[%c1_418, %c2_419, %c1_420] : memref<2x24x128xf32, #tpu.memory_space<vmem>>, vector<1x16x16xf32>
    %769 = vector.shape_cast %768 : vector<1x16x16xf32> to vector<16x16xf32>
    %c100 = arith.constant 100 : index
    %770 = memref.load %arg8[%c100] : memref<162xf32, #tpu.memory_space<smem>>
    %771 = vector.broadcast %770 : f32 to vector<16x16xf32>
    %772 = arith.mulf %769, %771 : vector<16x16xf32>
    %773 = arith.addf %767, %772 : vector<16x16xf32>
    %c1_421 = arith.constant 1 : index
    %c2_422 = arith.constant 2 : index
    %c2_423 = arith.constant 2 : index
    %774 = vector.load %arg12[%c1_421, %c2_422, %c2_423] : memref<2x24x128xf32, #tpu.memory_space<vmem>>, vector<1x16x16xf32>
    %775 = vector.shape_cast %774 : vector<1x16x16xf32> to vector<16x16xf32>
    %c101 = arith.constant 101 : index
    %776 = memref.load %arg8[%c101] : memref<162xf32, #tpu.memory_space<smem>>
    %777 = vector.broadcast %776 : f32 to vector<16x16xf32>
    %778 = arith.mulf %775, %777 : vector<16x16xf32>
    %779 = arith.addf %773, %778 : vector<16x16xf32>
    %c1_424 = arith.constant 1 : index
    %c2_425 = arith.constant 2 : index
    %c3_426 = arith.constant 3 : index
    %780 = vector.load %arg12[%c1_424, %c2_425, %c3_426] : memref<2x24x128xf32, #tpu.memory_space<vmem>>, vector<1x16x16xf32>
    %781 = vector.shape_cast %780 : vector<1x16x16xf32> to vector<16x16xf32>
    %c102 = arith.constant 102 : index
    %782 = memref.load %arg8[%c102] : memref<162xf32, #tpu.memory_space<smem>>
    %783 = vector.broadcast %782 : f32 to vector<16x16xf32>
    %784 = arith.mulf %781, %783 : vector<16x16xf32>
    %785 = arith.addf %779, %784 : vector<16x16xf32>
    %c1_427 = arith.constant 1 : index
    %c2_428 = arith.constant 2 : index
    %c4_429 = arith.constant 4 : index
    %786 = vector.load %arg12[%c1_427, %c2_428, %c4_429] : memref<2x24x128xf32, #tpu.memory_space<vmem>>, vector<1x16x16xf32>
    %787 = vector.shape_cast %786 : vector<1x16x16xf32> to vector<16x16xf32>
    %c103 = arith.constant 103 : index
    %788 = memref.load %arg8[%c103] : memref<162xf32, #tpu.memory_space<smem>>
    %789 = vector.broadcast %788 : f32 to vector<16x16xf32>
    %790 = arith.mulf %787, %789 : vector<16x16xf32>
    %791 = arith.addf %785, %790 : vector<16x16xf32>
    %c1_430 = arith.constant 1 : index
    %c2_431 = arith.constant 2 : index
    %c5_432 = arith.constant 5 : index
    %792 = vector.load %arg12[%c1_430, %c2_431, %c5_432] : memref<2x24x128xf32, #tpu.memory_space<vmem>>, vector<1x16x16xf32>
    %793 = vector.shape_cast %792 : vector<1x16x16xf32> to vector<16x16xf32>
    %c104 = arith.constant 104 : index
    %794 = memref.load %arg8[%c104] : memref<162xf32, #tpu.memory_space<smem>>
    %795 = vector.broadcast %794 : f32 to vector<16x16xf32>
    %796 = arith.mulf %793, %795 : vector<16x16xf32>
    %797 = arith.addf %791, %796 : vector<16x16xf32>
    %c1_433 = arith.constant 1 : index
    %c2_434 = arith.constant 2 : index
    %c6_435 = arith.constant 6 : index
    %798 = vector.load %arg12[%c1_433, %c2_434, %c6_435] : memref<2x24x128xf32, #tpu.memory_space<vmem>>, vector<1x16x16xf32>
    %799 = vector.shape_cast %798 : vector<1x16x16xf32> to vector<16x16xf32>
    %c105 = arith.constant 105 : index
    %800 = memref.load %arg8[%c105] : memref<162xf32, #tpu.memory_space<smem>>
    %801 = vector.broadcast %800 : f32 to vector<16x16xf32>
    %802 = arith.mulf %799, %801 : vector<16x16xf32>
    %803 = arith.addf %797, %802 : vector<16x16xf32>
    %c1_436 = arith.constant 1 : index
    %c2_437 = arith.constant 2 : index
    %c7_438 = arith.constant 7 : index
    %804 = vector.load %arg12[%c1_436, %c2_437, %c7_438] : memref<2x24x128xf32, #tpu.memory_space<vmem>>, vector<1x16x16xf32>
    %805 = vector.shape_cast %804 : vector<1x16x16xf32> to vector<16x16xf32>
    %c106 = arith.constant 106 : index
    %806 = memref.load %arg8[%c106] : memref<162xf32, #tpu.memory_space<smem>>
    %807 = vector.broadcast %806 : f32 to vector<16x16xf32>
    %808 = arith.mulf %805, %807 : vector<16x16xf32>
    %809 = arith.addf %803, %808 : vector<16x16xf32>
    %c1_439 = arith.constant 1 : index
    %c2_440 = arith.constant 2 : index
    %c8_441 = arith.constant 8 : index
    %810 = vector.load %arg12[%c1_439, %c2_440, %c8_441] : memref<2x24x128xf32, #tpu.memory_space<vmem>>, vector<1x16x16xf32>
    %811 = vector.shape_cast %810 : vector<1x16x16xf32> to vector<16x16xf32>
    %c107 = arith.constant 107 : index
    %812 = memref.load %arg8[%c107] : memref<162xf32, #tpu.memory_space<smem>>
    %813 = vector.broadcast %812 : f32 to vector<16x16xf32>
    %814 = arith.mulf %811, %813 : vector<16x16xf32>
    %815 = arith.addf %809, %814 : vector<16x16xf32>
    %c1_442 = arith.constant 1 : index
    %c3_443 = arith.constant 3 : index
    %c0_444 = arith.constant 0 : index
    %816 = vector.load %arg12[%c1_442, %c3_443, %c0_444] : memref<2x24x128xf32, #tpu.memory_space<vmem>>, vector<1x16x16xf32>
    %817 = vector.shape_cast %816 : vector<1x16x16xf32> to vector<16x16xf32>
    %c108 = arith.constant 108 : index
    %818 = memref.load %arg8[%c108] : memref<162xf32, #tpu.memory_space<smem>>
    %819 = vector.broadcast %818 : f32 to vector<16x16xf32>
    %820 = arith.mulf %817, %819 : vector<16x16xf32>
    %821 = arith.addf %815, %820 : vector<16x16xf32>
    %c1_445 = arith.constant 1 : index
    %c3_446 = arith.constant 3 : index
    %c1_447 = arith.constant 1 : index
    %822 = vector.load %arg12[%c1_445, %c3_446, %c1_447] : memref<2x24x128xf32, #tpu.memory_space<vmem>>, vector<1x16x16xf32>
    %823 = vector.shape_cast %822 : vector<1x16x16xf32> to vector<16x16xf32>
    %c109 = arith.constant 109 : index
    %824 = memref.load %arg8[%c109] : memref<162xf32, #tpu.memory_space<smem>>
    %825 = vector.broadcast %824 : f32 to vector<16x16xf32>
    %826 = arith.mulf %823, %825 : vector<16x16xf32>
    %827 = arith.addf %821, %826 : vector<16x16xf32>
    %c1_448 = arith.constant 1 : index
    %c3_449 = arith.constant 3 : index
    %c2_450 = arith.constant 2 : index
    %828 = vector.load %arg12[%c1_448, %c3_449, %c2_450] : memref<2x24x128xf32, #tpu.memory_space<vmem>>, vector<1x16x16xf32>
    %829 = vector.shape_cast %828 : vector<1x16x16xf32> to vector<16x16xf32>
    %c110 = arith.constant 110 : index
    %830 = memref.load %arg8[%c110] : memref<162xf32, #tpu.memory_space<smem>>
    %831 = vector.broadcast %830 : f32 to vector<16x16xf32>
    %832 = arith.mulf %829, %831 : vector<16x16xf32>
    %833 = arith.addf %827, %832 : vector<16x16xf32>
    %c1_451 = arith.constant 1 : index
    %c3_452 = arith.constant 3 : index
    %c3_453 = arith.constant 3 : index
    %834 = vector.load %arg12[%c1_451, %c3_452, %c3_453] : memref<2x24x128xf32, #tpu.memory_space<vmem>>, vector<1x16x16xf32>
    %835 = vector.shape_cast %834 : vector<1x16x16xf32> to vector<16x16xf32>
    %c111 = arith.constant 111 : index
    %836 = memref.load %arg8[%c111] : memref<162xf32, #tpu.memory_space<smem>>
    %837 = vector.broadcast %836 : f32 to vector<16x16xf32>
    %838 = arith.mulf %835, %837 : vector<16x16xf32>
    %839 = arith.addf %833, %838 : vector<16x16xf32>
    %c1_454 = arith.constant 1 : index
    %c3_455 = arith.constant 3 : index
    %c4_456 = arith.constant 4 : index
    %840 = vector.load %arg12[%c1_454, %c3_455, %c4_456] : memref<2x24x128xf32, #tpu.memory_space<vmem>>, vector<1x16x16xf32>
    %841 = vector.shape_cast %840 : vector<1x16x16xf32> to vector<16x16xf32>
    %c112 = arith.constant 112 : index
    %842 = memref.load %arg8[%c112] : memref<162xf32, #tpu.memory_space<smem>>
    %843 = vector.broadcast %842 : f32 to vector<16x16xf32>
    %844 = arith.mulf %841, %843 : vector<16x16xf32>
    %845 = arith.addf %839, %844 : vector<16x16xf32>
    %c1_457 = arith.constant 1 : index
    %c3_458 = arith.constant 3 : index
    %c5_459 = arith.constant 5 : index
    %846 = vector.load %arg12[%c1_457, %c3_458, %c5_459] : memref<2x24x128xf32, #tpu.memory_space<vmem>>, vector<1x16x16xf32>
    %847 = vector.shape_cast %846 : vector<1x16x16xf32> to vector<16x16xf32>
    %c113 = arith.constant 113 : index
    %848 = memref.load %arg8[%c113] : memref<162xf32, #tpu.memory_space<smem>>
    %849 = vector.broadcast %848 : f32 to vector<16x16xf32>
    %850 = arith.mulf %847, %849 : vector<16x16xf32>
    %851 = arith.addf %845, %850 : vector<16x16xf32>
    %c1_460 = arith.constant 1 : index
    %c3_461 = arith.constant 3 : index
    %c6_462 = arith.constant 6 : index
    %852 = vector.load %arg12[%c1_460, %c3_461, %c6_462] : memref<2x24x128xf32, #tpu.memory_space<vmem>>, vector<1x16x16xf32>
    %853 = vector.shape_cast %852 : vector<1x16x16xf32> to vector<16x16xf32>
    %c114 = arith.constant 114 : index
    %854 = memref.load %arg8[%c114] : memref<162xf32, #tpu.memory_space<smem>>
    %855 = vector.broadcast %854 : f32 to vector<16x16xf32>
    %856 = arith.mulf %853, %855 : vector<16x16xf32>
    %857 = arith.addf %851, %856 : vector<16x16xf32>
    %c1_463 = arith.constant 1 : index
    %c3_464 = arith.constant 3 : index
    %c7_465 = arith.constant 7 : index
    %858 = vector.load %arg12[%c1_463, %c3_464, %c7_465] : memref<2x24x128xf32, #tpu.memory_space<vmem>>, vector<1x16x16xf32>
    %859 = vector.shape_cast %858 : vector<1x16x16xf32> to vector<16x16xf32>
    %c115 = arith.constant 115 : index
    %860 = memref.load %arg8[%c115] : memref<162xf32, #tpu.memory_space<smem>>
    %861 = vector.broadcast %860 : f32 to vector<16x16xf32>
    %862 = arith.mulf %859, %861 : vector<16x16xf32>
    %863 = arith.addf %857, %862 : vector<16x16xf32>
    %c1_466 = arith.constant 1 : index
    %c3_467 = arith.constant 3 : index
    %c8_468 = arith.constant 8 : index
    %864 = vector.load %arg12[%c1_466, %c3_467, %c8_468] : memref<2x24x128xf32, #tpu.memory_space<vmem>>, vector<1x16x16xf32>
    %865 = vector.shape_cast %864 : vector<1x16x16xf32> to vector<16x16xf32>
    %c116 = arith.constant 116 : index
    %866 = memref.load %arg8[%c116] : memref<162xf32, #tpu.memory_space<smem>>
    %867 = vector.broadcast %866 : f32 to vector<16x16xf32>
    %868 = arith.mulf %865, %867 : vector<16x16xf32>
    %869 = arith.addf %863, %868 : vector<16x16xf32>
    %c1_469 = arith.constant 1 : index
    %c4_470 = arith.constant 4 : index
    %c0_471 = arith.constant 0 : index
    %870 = vector.load %arg12[%c1_469, %c4_470, %c0_471] : memref<2x24x128xf32, #tpu.memory_space<vmem>>, vector<1x16x16xf32>
    %871 = vector.shape_cast %870 : vector<1x16x16xf32> to vector<16x16xf32>
    %c117 = arith.constant 117 : index
    %872 = memref.load %arg8[%c117] : memref<162xf32, #tpu.memory_space<smem>>
    %873 = vector.broadcast %872 : f32 to vector<16x16xf32>
    %874 = arith.mulf %871, %873 : vector<16x16xf32>
    %875 = arith.addf %869, %874 : vector<16x16xf32>
    %c1_472 = arith.constant 1 : index
    %c4_473 = arith.constant 4 : index
    %c1_474 = arith.constant 1 : index
    %876 = vector.load %arg12[%c1_472, %c4_473, %c1_474] : memref<2x24x128xf32, #tpu.memory_space<vmem>>, vector<1x16x16xf32>
    %877 = vector.shape_cast %876 : vector<1x16x16xf32> to vector<16x16xf32>
    %c118 = arith.constant 118 : index
    %878 = memref.load %arg8[%c118] : memref<162xf32, #tpu.memory_space<smem>>
    %879 = vector.broadcast %878 : f32 to vector<16x16xf32>
    %880 = arith.mulf %877, %879 : vector<16x16xf32>
    %881 = arith.addf %875, %880 : vector<16x16xf32>
    %c1_475 = arith.constant 1 : index
    %c4_476 = arith.constant 4 : index
    %c2_477 = arith.constant 2 : index
    %882 = vector.load %arg12[%c1_475, %c4_476, %c2_477] : memref<2x24x128xf32, #tpu.memory_space<vmem>>, vector<1x16x16xf32>
    %883 = vector.shape_cast %882 : vector<1x16x16xf32> to vector<16x16xf32>
    %c119 = arith.constant 119 : index
    %884 = memref.load %arg8[%c119] : memref<162xf32, #tpu.memory_space<smem>>
    %885 = vector.broadcast %884 : f32 to vector<16x16xf32>
    %886 = arith.mulf %883, %885 : vector<16x16xf32>
    %887 = arith.addf %881, %886 : vector<16x16xf32>
    %c1_478 = arith.constant 1 : index
    %c4_479 = arith.constant 4 : index
    %c3_480 = arith.constant 3 : index
    %888 = vector.load %arg12[%c1_478, %c4_479, %c3_480] : memref<2x24x128xf32, #tpu.memory_space<vmem>>, vector<1x16x16xf32>
    %889 = vector.shape_cast %888 : vector<1x16x16xf32> to vector<16x16xf32>
    %c120 = arith.constant 120 : index
    %890 = memref.load %arg8[%c120] : memref<162xf32, #tpu.memory_space<smem>>
    %891 = vector.broadcast %890 : f32 to vector<16x16xf32>
    %892 = arith.mulf %889, %891 : vector<16x16xf32>
    %893 = arith.addf %887, %892 : vector<16x16xf32>
    %c1_481 = arith.constant 1 : index
    %c4_482 = arith.constant 4 : index
    %c4_483 = arith.constant 4 : index
    %894 = vector.load %arg12[%c1_481, %c4_482, %c4_483] : memref<2x24x128xf32, #tpu.memory_space<vmem>>, vector<1x16x16xf32>
    %895 = vector.shape_cast %894 : vector<1x16x16xf32> to vector<16x16xf32>
    %c121 = arith.constant 121 : index
    %896 = memref.load %arg8[%c121] : memref<162xf32, #tpu.memory_space<smem>>
    %897 = vector.broadcast %896 : f32 to vector<16x16xf32>
    %898 = arith.mulf %895, %897 : vector<16x16xf32>
    %899 = arith.addf %893, %898 : vector<16x16xf32>
    %c1_484 = arith.constant 1 : index
    %c4_485 = arith.constant 4 : index
    %c5_486 = arith.constant 5 : index
    %900 = vector.load %arg12[%c1_484, %c4_485, %c5_486] : memref<2x24x128xf32, #tpu.memory_space<vmem>>, vector<1x16x16xf32>
    %901 = vector.shape_cast %900 : vector<1x16x16xf32> to vector<16x16xf32>
    %c122 = arith.constant 122 : index
    %902 = memref.load %arg8[%c122] : memref<162xf32, #tpu.memory_space<smem>>
    %903 = vector.broadcast %902 : f32 to vector<16x16xf32>
    %904 = arith.mulf %901, %903 : vector<16x16xf32>
    %905 = arith.addf %899, %904 : vector<16x16xf32>
    %c1_487 = arith.constant 1 : index
    %c4_488 = arith.constant 4 : index
    %c6_489 = arith.constant 6 : index
    %906 = vector.load %arg12[%c1_487, %c4_488, %c6_489] : memref<2x24x128xf32, #tpu.memory_space<vmem>>, vector<1x16x16xf32>
    %907 = vector.shape_cast %906 : vector<1x16x16xf32> to vector<16x16xf32>
    %c123 = arith.constant 123 : index
    %908 = memref.load %arg8[%c123] : memref<162xf32, #tpu.memory_space<smem>>
    %909 = vector.broadcast %908 : f32 to vector<16x16xf32>
    %910 = arith.mulf %907, %909 : vector<16x16xf32>
    %911 = arith.addf %905, %910 : vector<16x16xf32>
    %c1_490 = arith.constant 1 : index
    %c4_491 = arith.constant 4 : index
    %c7_492 = arith.constant 7 : index
    %912 = vector.load %arg12[%c1_490, %c4_491, %c7_492] : memref<2x24x128xf32, #tpu.memory_space<vmem>>, vector<1x16x16xf32>
    %913 = vector.shape_cast %912 : vector<1x16x16xf32> to vector<16x16xf32>
    %c124 = arith.constant 124 : index
    %914 = memref.load %arg8[%c124] : memref<162xf32, #tpu.memory_space<smem>>
    %915 = vector.broadcast %914 : f32 to vector<16x16xf32>
    %916 = arith.mulf %913, %915 : vector<16x16xf32>
    %917 = arith.addf %911, %916 : vector<16x16xf32>
    %c1_493 = arith.constant 1 : index
    %c4_494 = arith.constant 4 : index
    %c8_495 = arith.constant 8 : index
    %918 = vector.load %arg12[%c1_493, %c4_494, %c8_495] : memref<2x24x128xf32, #tpu.memory_space<vmem>>, vector<1x16x16xf32>
    %919 = vector.shape_cast %918 : vector<1x16x16xf32> to vector<16x16xf32>
    %c125 = arith.constant 125 : index
    %920 = memref.load %arg8[%c125] : memref<162xf32, #tpu.memory_space<smem>>
    %921 = vector.broadcast %920 : f32 to vector<16x16xf32>
    %922 = arith.mulf %919, %921 : vector<16x16xf32>
    %923 = arith.addf %917, %922 : vector<16x16xf32>
    %c1_496 = arith.constant 1 : index
    %c5_497 = arith.constant 5 : index
    %c0_498 = arith.constant 0 : index
    %924 = vector.load %arg12[%c1_496, %c5_497, %c0_498] : memref<2x24x128xf32, #tpu.memory_space<vmem>>, vector<1x16x16xf32>
    %925 = vector.shape_cast %924 : vector<1x16x16xf32> to vector<16x16xf32>
    %c126 = arith.constant 126 : index
    %926 = memref.load %arg8[%c126] : memref<162xf32, #tpu.memory_space<smem>>
    %927 = vector.broadcast %926 : f32 to vector<16x16xf32>
    %928 = arith.mulf %925, %927 : vector<16x16xf32>
    %929 = arith.addf %923, %928 : vector<16x16xf32>
    %c1_499 = arith.constant 1 : index
    %c5_500 = arith.constant 5 : index
    %c1_501 = arith.constant 1 : index
    %930 = vector.load %arg12[%c1_499, %c5_500, %c1_501] : memref<2x24x128xf32, #tpu.memory_space<vmem>>, vector<1x16x16xf32>
    %931 = vector.shape_cast %930 : vector<1x16x16xf32> to vector<16x16xf32>
    %c127 = arith.constant 127 : index
    %932 = memref.load %arg8[%c127] : memref<162xf32, #tpu.memory_space<smem>>
    %933 = vector.broadcast %932 : f32 to vector<16x16xf32>
    %934 = arith.mulf %931, %933 : vector<16x16xf32>
    %935 = arith.addf %929, %934 : vector<16x16xf32>
    %c1_502 = arith.constant 1 : index
    %c5_503 = arith.constant 5 : index
    %c2_504 = arith.constant 2 : index
    %936 = vector.load %arg12[%c1_502, %c5_503, %c2_504] : memref<2x24x128xf32, #tpu.memory_space<vmem>>, vector<1x16x16xf32>
    %937 = vector.shape_cast %936 : vector<1x16x16xf32> to vector<16x16xf32>
    %c128 = arith.constant 128 : index
    %938 = memref.load %arg8[%c128] : memref<162xf32, #tpu.memory_space<smem>>
    %939 = vector.broadcast %938 : f32 to vector<16x16xf32>
    %940 = arith.mulf %937, %939 : vector<16x16xf32>
    %941 = arith.addf %935, %940 : vector<16x16xf32>
    %c1_505 = arith.constant 1 : index
    %c5_506 = arith.constant 5 : index
    %c3_507 = arith.constant 3 : index
    %942 = vector.load %arg12[%c1_505, %c5_506, %c3_507] : memref<2x24x128xf32, #tpu.memory_space<vmem>>, vector<1x16x16xf32>
    %943 = vector.shape_cast %942 : vector<1x16x16xf32> to vector<16x16xf32>
    %c129 = arith.constant 129 : index
    %944 = memref.load %arg8[%c129] : memref<162xf32, #tpu.memory_space<smem>>
    %945 = vector.broadcast %944 : f32 to vector<16x16xf32>
    %946 = arith.mulf %943, %945 : vector<16x16xf32>
    %947 = arith.addf %941, %946 : vector<16x16xf32>
    %c1_508 = arith.constant 1 : index
    %c5_509 = arith.constant 5 : index
    %c4_510 = arith.constant 4 : index
    %948 = vector.load %arg12[%c1_508, %c5_509, %c4_510] : memref<2x24x128xf32, #tpu.memory_space<vmem>>, vector<1x16x16xf32>
    %949 = vector.shape_cast %948 : vector<1x16x16xf32> to vector<16x16xf32>
    %c130 = arith.constant 130 : index
    %950 = memref.load %arg8[%c130] : memref<162xf32, #tpu.memory_space<smem>>
    %951 = vector.broadcast %950 : f32 to vector<16x16xf32>
    %952 = arith.mulf %949, %951 : vector<16x16xf32>
    %953 = arith.addf %947, %952 : vector<16x16xf32>
    %c1_511 = arith.constant 1 : index
    %c5_512 = arith.constant 5 : index
    %c5_513 = arith.constant 5 : index
    %954 = vector.load %arg12[%c1_511, %c5_512, %c5_513] : memref<2x24x128xf32, #tpu.memory_space<vmem>>, vector<1x16x16xf32>
    %955 = vector.shape_cast %954 : vector<1x16x16xf32> to vector<16x16xf32>
    %c131 = arith.constant 131 : index
    %956 = memref.load %arg8[%c131] : memref<162xf32, #tpu.memory_space<smem>>
    %957 = vector.broadcast %956 : f32 to vector<16x16xf32>
    %958 = arith.mulf %955, %957 : vector<16x16xf32>
    %959 = arith.addf %953, %958 : vector<16x16xf32>
    %c1_514 = arith.constant 1 : index
    %c5_515 = arith.constant 5 : index
    %c6_516 = arith.constant 6 : index
    %960 = vector.load %arg12[%c1_514, %c5_515, %c6_516] : memref<2x24x128xf32, #tpu.memory_space<vmem>>, vector<1x16x16xf32>
    %961 = vector.shape_cast %960 : vector<1x16x16xf32> to vector<16x16xf32>
    %c132 = arith.constant 132 : index
    %962 = memref.load %arg8[%c132] : memref<162xf32, #tpu.memory_space<smem>>
    %963 = vector.broadcast %962 : f32 to vector<16x16xf32>
    %964 = arith.mulf %961, %963 : vector<16x16xf32>
    %965 = arith.addf %959, %964 : vector<16x16xf32>
    %c1_517 = arith.constant 1 : index
    %c5_518 = arith.constant 5 : index
    %c7_519 = arith.constant 7 : index
    %966 = vector.load %arg12[%c1_517, %c5_518, %c7_519] : memref<2x24x128xf32, #tpu.memory_space<vmem>>, vector<1x16x16xf32>
    %967 = vector.shape_cast %966 : vector<1x16x16xf32> to vector<16x16xf32>
    %c133 = arith.constant 133 : index
    %968 = memref.load %arg8[%c133] : memref<162xf32, #tpu.memory_space<smem>>
    %969 = vector.broadcast %968 : f32 to vector<16x16xf32>
    %970 = arith.mulf %967, %969 : vector<16x16xf32>
    %971 = arith.addf %965, %970 : vector<16x16xf32>
    %c1_520 = arith.constant 1 : index
    %c5_521 = arith.constant 5 : index
    %c8_522 = arith.constant 8 : index
    %972 = vector.load %arg12[%c1_520, %c5_521, %c8_522] : memref<2x24x128xf32, #tpu.memory_space<vmem>>, vector<1x16x16xf32>
    %973 = vector.shape_cast %972 : vector<1x16x16xf32> to vector<16x16xf32>
    %c134 = arith.constant 134 : index
    %974 = memref.load %arg8[%c134] : memref<162xf32, #tpu.memory_space<smem>>
    %975 = vector.broadcast %974 : f32 to vector<16x16xf32>
    %976 = arith.mulf %973, %975 : vector<16x16xf32>
    %977 = arith.addf %971, %976 : vector<16x16xf32>
    %c1_523 = arith.constant 1 : index
    %c6_524 = arith.constant 6 : index
    %c0_525 = arith.constant 0 : index
    %978 = vector.load %arg12[%c1_523, %c6_524, %c0_525] : memref<2x24x128xf32, #tpu.memory_space<vmem>>, vector<1x16x16xf32>
    %979 = vector.shape_cast %978 : vector<1x16x16xf32> to vector<16x16xf32>
    %c135 = arith.constant 135 : index
    %980 = memref.load %arg8[%c135] : memref<162xf32, #tpu.memory_space<smem>>
    %981 = vector.broadcast %980 : f32 to vector<16x16xf32>
    %982 = arith.mulf %979, %981 : vector<16x16xf32>
    %983 = arith.addf %977, %982 : vector<16x16xf32>
    %c1_526 = arith.constant 1 : index
    %c6_527 = arith.constant 6 : index
    %c1_528 = arith.constant 1 : index
    %984 = vector.load %arg12[%c1_526, %c6_527, %c1_528] : memref<2x24x128xf32, #tpu.memory_space<vmem>>, vector<1x16x16xf32>
    %985 = vector.shape_cast %984 : vector<1x16x16xf32> to vector<16x16xf32>
    %c136 = arith.constant 136 : index
    %986 = memref.load %arg8[%c136] : memref<162xf32, #tpu.memory_space<smem>>
    %987 = vector.broadcast %986 : f32 to vector<16x16xf32>
    %988 = arith.mulf %985, %987 : vector<16x16xf32>
    %989 = arith.addf %983, %988 : vector<16x16xf32>
    %c1_529 = arith.constant 1 : index
    %c6_530 = arith.constant 6 : index
    %c2_531 = arith.constant 2 : index
    %990 = vector.load %arg12[%c1_529, %c6_530, %c2_531] : memref<2x24x128xf32, #tpu.memory_space<vmem>>, vector<1x16x16xf32>
    %991 = vector.shape_cast %990 : vector<1x16x16xf32> to vector<16x16xf32>
    %c137 = arith.constant 137 : index
    %992 = memref.load %arg8[%c137] : memref<162xf32, #tpu.memory_space<smem>>
    %993 = vector.broadcast %992 : f32 to vector<16x16xf32>
    %994 = arith.mulf %991, %993 : vector<16x16xf32>
    %995 = arith.addf %989, %994 : vector<16x16xf32>
    %c1_532 = arith.constant 1 : index
    %c6_533 = arith.constant 6 : index
    %c3_534 = arith.constant 3 : index
    %996 = vector.load %arg12[%c1_532, %c6_533, %c3_534] : memref<2x24x128xf32, #tpu.memory_space<vmem>>, vector<1x16x16xf32>
    %997 = vector.shape_cast %996 : vector<1x16x16xf32> to vector<16x16xf32>
    %c138 = arith.constant 138 : index
    %998 = memref.load %arg8[%c138] : memref<162xf32, #tpu.memory_space<smem>>
    %999 = vector.broadcast %998 : f32 to vector<16x16xf32>
    %1000 = arith.mulf %997, %999 : vector<16x16xf32>
    %1001 = arith.addf %995, %1000 : vector<16x16xf32>
    %c1_535 = arith.constant 1 : index
    %c6_536 = arith.constant 6 : index
    %c4_537 = arith.constant 4 : index
    %1002 = vector.load %arg12[%c1_535, %c6_536, %c4_537] : memref<2x24x128xf32, #tpu.memory_space<vmem>>, vector<1x16x16xf32>
    %1003 = vector.shape_cast %1002 : vector<1x16x16xf32> to vector<16x16xf32>
    %c139 = arith.constant 139 : index
    %1004 = memref.load %arg8[%c139] : memref<162xf32, #tpu.memory_space<smem>>
    %1005 = vector.broadcast %1004 : f32 to vector<16x16xf32>
    %1006 = arith.mulf %1003, %1005 : vector<16x16xf32>
    %1007 = arith.addf %1001, %1006 : vector<16x16xf32>
    %c1_538 = arith.constant 1 : index
    %c6_539 = arith.constant 6 : index
    %c5_540 = arith.constant 5 : index
    %1008 = vector.load %arg12[%c1_538, %c6_539, %c5_540] : memref<2x24x128xf32, #tpu.memory_space<vmem>>, vector<1x16x16xf32>
    %1009 = vector.shape_cast %1008 : vector<1x16x16xf32> to vector<16x16xf32>
    %c140 = arith.constant 140 : index
    %1010 = memref.load %arg8[%c140] : memref<162xf32, #tpu.memory_space<smem>>
    %1011 = vector.broadcast %1010 : f32 to vector<16x16xf32>
    %1012 = arith.mulf %1009, %1011 : vector<16x16xf32>
    %1013 = arith.addf %1007, %1012 : vector<16x16xf32>
    %c1_541 = arith.constant 1 : index
    %c6_542 = arith.constant 6 : index
    %c6_543 = arith.constant 6 : index
    %1014 = vector.load %arg12[%c1_541, %c6_542, %c6_543] : memref<2x24x128xf32, #tpu.memory_space<vmem>>, vector<1x16x16xf32>
    %1015 = vector.shape_cast %1014 : vector<1x16x16xf32> to vector<16x16xf32>
    %c141 = arith.constant 141 : index
    %1016 = memref.load %arg8[%c141] : memref<162xf32, #tpu.memory_space<smem>>
    %1017 = vector.broadcast %1016 : f32 to vector<16x16xf32>
    %1018 = arith.mulf %1015, %1017 : vector<16x16xf32>
    %1019 = arith.addf %1013, %1018 : vector<16x16xf32>
    %c1_544 = arith.constant 1 : index
    %c6_545 = arith.constant 6 : index
    %c7_546 = arith.constant 7 : index
    %1020 = vector.load %arg12[%c1_544, %c6_545, %c7_546] : memref<2x24x128xf32, #tpu.memory_space<vmem>>, vector<1x16x16xf32>
    %1021 = vector.shape_cast %1020 : vector<1x16x16xf32> to vector<16x16xf32>
    %c142 = arith.constant 142 : index
    %1022 = memref.load %arg8[%c142] : memref<162xf32, #tpu.memory_space<smem>>
    %1023 = vector.broadcast %1022 : f32 to vector<16x16xf32>
    %1024 = arith.mulf %1021, %1023 : vector<16x16xf32>
    %1025 = arith.addf %1019, %1024 : vector<16x16xf32>
    %c1_547 = arith.constant 1 : index
    %c6_548 = arith.constant 6 : index
    %c8_549 = arith.constant 8 : index
    %1026 = vector.load %arg12[%c1_547, %c6_548, %c8_549] : memref<2x24x128xf32, #tpu.memory_space<vmem>>, vector<1x16x16xf32>
    %1027 = vector.shape_cast %1026 : vector<1x16x16xf32> to vector<16x16xf32>
    %c143 = arith.constant 143 : index
    %1028 = memref.load %arg8[%c143] : memref<162xf32, #tpu.memory_space<smem>>
    %1029 = vector.broadcast %1028 : f32 to vector<16x16xf32>
    %1030 = arith.mulf %1027, %1029 : vector<16x16xf32>
    %1031 = arith.addf %1025, %1030 : vector<16x16xf32>
    %c1_550 = arith.constant 1 : index
    %c7_551 = arith.constant 7 : index
    %c0_552 = arith.constant 0 : index
    %1032 = vector.load %arg12[%c1_550, %c7_551, %c0_552] : memref<2x24x128xf32, #tpu.memory_space<vmem>>, vector<1x16x16xf32>
    %1033 = vector.shape_cast %1032 : vector<1x16x16xf32> to vector<16x16xf32>
    %c144 = arith.constant 144 : index
    %1034 = memref.load %arg8[%c144] : memref<162xf32, #tpu.memory_space<smem>>
    %1035 = vector.broadcast %1034 : f32 to vector<16x16xf32>
    %1036 = arith.mulf %1033, %1035 : vector<16x16xf32>
    %1037 = arith.addf %1031, %1036 : vector<16x16xf32>
    %c1_553 = arith.constant 1 : index
    %c7_554 = arith.constant 7 : index
    %c1_555 = arith.constant 1 : index
    %1038 = vector.load %arg12[%c1_553, %c7_554, %c1_555] : memref<2x24x128xf32, #tpu.memory_space<vmem>>, vector<1x16x16xf32>
    %1039 = vector.shape_cast %1038 : vector<1x16x16xf32> to vector<16x16xf32>
    %c145 = arith.constant 145 : index
    %1040 = memref.load %arg8[%c145] : memref<162xf32, #tpu.memory_space<smem>>
    %1041 = vector.broadcast %1040 : f32 to vector<16x16xf32>
    %1042 = arith.mulf %1039, %1041 : vector<16x16xf32>
    %1043 = arith.addf %1037, %1042 : vector<16x16xf32>
    %c1_556 = arith.constant 1 : index
    %c7_557 = arith.constant 7 : index
    %c2_558 = arith.constant 2 : index
    %1044 = vector.load %arg12[%c1_556, %c7_557, %c2_558] : memref<2x24x128xf32, #tpu.memory_space<vmem>>, vector<1x16x16xf32>
    %1045 = vector.shape_cast %1044 : vector<1x16x16xf32> to vector<16x16xf32>
    %c146 = arith.constant 146 : index
    %1046 = memref.load %arg8[%c146] : memref<162xf32, #tpu.memory_space<smem>>
    %1047 = vector.broadcast %1046 : f32 to vector<16x16xf32>
    %1048 = arith.mulf %1045, %1047 : vector<16x16xf32>
    %1049 = arith.addf %1043, %1048 : vector<16x16xf32>
    %c1_559 = arith.constant 1 : index
    %c7_560 = arith.constant 7 : index
    %c3_561 = arith.constant 3 : index
    %1050 = vector.load %arg12[%c1_559, %c7_560, %c3_561] : memref<2x24x128xf32, #tpu.memory_space<vmem>>, vector<1x16x16xf32>
    %1051 = vector.shape_cast %1050 : vector<1x16x16xf32> to vector<16x16xf32>
    %c147 = arith.constant 147 : index
    %1052 = memref.load %arg8[%c147] : memref<162xf32, #tpu.memory_space<smem>>
    %1053 = vector.broadcast %1052 : f32 to vector<16x16xf32>
    %1054 = arith.mulf %1051, %1053 : vector<16x16xf32>
    %1055 = arith.addf %1049, %1054 : vector<16x16xf32>
    %c1_562 = arith.constant 1 : index
    %c7_563 = arith.constant 7 : index
    %c4_564 = arith.constant 4 : index
    %1056 = vector.load %arg12[%c1_562, %c7_563, %c4_564] : memref<2x24x128xf32, #tpu.memory_space<vmem>>, vector<1x16x16xf32>
    %1057 = vector.shape_cast %1056 : vector<1x16x16xf32> to vector<16x16xf32>
    %c148 = arith.constant 148 : index
    %1058 = memref.load %arg8[%c148] : memref<162xf32, #tpu.memory_space<smem>>
    %1059 = vector.broadcast %1058 : f32 to vector<16x16xf32>
    %1060 = arith.mulf %1057, %1059 : vector<16x16xf32>
    %1061 = arith.addf %1055, %1060 : vector<16x16xf32>
    %c1_565 = arith.constant 1 : index
    %c7_566 = arith.constant 7 : index
    %c5_567 = arith.constant 5 : index
    %1062 = vector.load %arg12[%c1_565, %c7_566, %c5_567] : memref<2x24x128xf32, #tpu.memory_space<vmem>>, vector<1x16x16xf32>
    %1063 = vector.shape_cast %1062 : vector<1x16x16xf32> to vector<16x16xf32>
    %c149 = arith.constant 149 : index
    %1064 = memref.load %arg8[%c149] : memref<162xf32, #tpu.memory_space<smem>>
    %1065 = vector.broadcast %1064 : f32 to vector<16x16xf32>
    %1066 = arith.mulf %1063, %1065 : vector<16x16xf32>
    %1067 = arith.addf %1061, %1066 : vector<16x16xf32>
    %c1_568 = arith.constant 1 : index
    %c7_569 = arith.constant 7 : index
    %c6_570 = arith.constant 6 : index
    %1068 = vector.load %arg12[%c1_568, %c7_569, %c6_570] : memref<2x24x128xf32, #tpu.memory_space<vmem>>, vector<1x16x16xf32>
    %1069 = vector.shape_cast %1068 : vector<1x16x16xf32> to vector<16x16xf32>
    %c150 = arith.constant 150 : index
    %1070 = memref.load %arg8[%c150] : memref<162xf32, #tpu.memory_space<smem>>
    %1071 = vector.broadcast %1070 : f32 to vector<16x16xf32>
    %1072 = arith.mulf %1069, %1071 : vector<16x16xf32>
    %1073 = arith.addf %1067, %1072 : vector<16x16xf32>
    %c1_571 = arith.constant 1 : index
    %c7_572 = arith.constant 7 : index
    %c7_573 = arith.constant 7 : index
    %1074 = vector.load %arg12[%c1_571, %c7_572, %c7_573] : memref<2x24x128xf32, #tpu.memory_space<vmem>>, vector<1x16x16xf32>
    %1075 = vector.shape_cast %1074 : vector<1x16x16xf32> to vector<16x16xf32>
    %c151 = arith.constant 151 : index
    %1076 = memref.load %arg8[%c151] : memref<162xf32, #tpu.memory_space<smem>>
    %1077 = vector.broadcast %1076 : f32 to vector<16x16xf32>
    %1078 = arith.mulf %1075, %1077 : vector<16x16xf32>
    %1079 = arith.addf %1073, %1078 : vector<16x16xf32>
    %c1_574 = arith.constant 1 : index
    %c7_575 = arith.constant 7 : index
    %c8_576 = arith.constant 8 : index
    %1080 = vector.load %arg12[%c1_574, %c7_575, %c8_576] : memref<2x24x128xf32, #tpu.memory_space<vmem>>, vector<1x16x16xf32>
    %1081 = vector.shape_cast %1080 : vector<1x16x16xf32> to vector<16x16xf32>
    %c152 = arith.constant 152 : index
    %1082 = memref.load %arg8[%c152] : memref<162xf32, #tpu.memory_space<smem>>
    %1083 = vector.broadcast %1082 : f32 to vector<16x16xf32>
    %1084 = arith.mulf %1081, %1083 : vector<16x16xf32>
    %1085 = arith.addf %1079, %1084 : vector<16x16xf32>
    %c1_577 = arith.constant 1 : index
    %c8_578 = arith.constant 8 : index
    %c0_579 = arith.constant 0 : index
    %1086 = vector.load %arg12[%c1_577, %c8_578, %c0_579] : memref<2x24x128xf32, #tpu.memory_space<vmem>>, vector<1x16x16xf32>
    %1087 = vector.shape_cast %1086 : vector<1x16x16xf32> to vector<16x16xf32>
    %c153 = arith.constant 153 : index
    %1088 = memref.load %arg8[%c153] : memref<162xf32, #tpu.memory_space<smem>>
    %1089 = vector.broadcast %1088 : f32 to vector<16x16xf32>
    %1090 = arith.mulf %1087, %1089 : vector<16x16xf32>
    %1091 = arith.addf %1085, %1090 : vector<16x16xf32>
    %c1_580 = arith.constant 1 : index
    %c8_581 = arith.constant 8 : index
    %c1_582 = arith.constant 1 : index
    %1092 = vector.load %arg12[%c1_580, %c8_581, %c1_582] : memref<2x24x128xf32, #tpu.memory_space<vmem>>, vector<1x16x16xf32>
    %1093 = vector.shape_cast %1092 : vector<1x16x16xf32> to vector<16x16xf32>
    %c154 = arith.constant 154 : index
    %1094 = memref.load %arg8[%c154] : memref<162xf32, #tpu.memory_space<smem>>
    %1095 = vector.broadcast %1094 : f32 to vector<16x16xf32>
    %1096 = arith.mulf %1093, %1095 : vector<16x16xf32>
    %1097 = arith.addf %1091, %1096 : vector<16x16xf32>
    %c1_583 = arith.constant 1 : index
    %c8_584 = arith.constant 8 : index
    %c2_585 = arith.constant 2 : index
    %1098 = vector.load %arg12[%c1_583, %c8_584, %c2_585] : memref<2x24x128xf32, #tpu.memory_space<vmem>>, vector<1x16x16xf32>
    %1099 = vector.shape_cast %1098 : vector<1x16x16xf32> to vector<16x16xf32>
    %c155 = arith.constant 155 : index
    %1100 = memref.load %arg8[%c155] : memref<162xf32, #tpu.memory_space<smem>>
    %1101 = vector.broadcast %1100 : f32 to vector<16x16xf32>
    %1102 = arith.mulf %1099, %1101 : vector<16x16xf32>
    %1103 = arith.addf %1097, %1102 : vector<16x16xf32>
    %c1_586 = arith.constant 1 : index
    %c8_587 = arith.constant 8 : index
    %c3_588 = arith.constant 3 : index
    %1104 = vector.load %arg12[%c1_586, %c8_587, %c3_588] : memref<2x24x128xf32, #tpu.memory_space<vmem>>, vector<1x16x16xf32>
    %1105 = vector.shape_cast %1104 : vector<1x16x16xf32> to vector<16x16xf32>
    %c156 = arith.constant 156 : index
    %1106 = memref.load %arg8[%c156] : memref<162xf32, #tpu.memory_space<smem>>
    %1107 = vector.broadcast %1106 : f32 to vector<16x16xf32>
    %1108 = arith.mulf %1105, %1107 : vector<16x16xf32>
    %1109 = arith.addf %1103, %1108 : vector<16x16xf32>
    %c1_589 = arith.constant 1 : index
    %c8_590 = arith.constant 8 : index
    %c4_591 = arith.constant 4 : index
    %1110 = vector.load %arg12[%c1_589, %c8_590, %c4_591] : memref<2x24x128xf32, #tpu.memory_space<vmem>>, vector<1x16x16xf32>
    %1111 = vector.shape_cast %1110 : vector<1x16x16xf32> to vector<16x16xf32>
    %c157 = arith.constant 157 : index
    %1112 = memref.load %arg8[%c157] : memref<162xf32, #tpu.memory_space<smem>>
    %1113 = vector.broadcast %1112 : f32 to vector<16x16xf32>
    %1114 = arith.mulf %1111, %1113 : vector<16x16xf32>
    %1115 = arith.addf %1109, %1114 : vector<16x16xf32>
    %c1_592 = arith.constant 1 : index
    %c8_593 = arith.constant 8 : index
    %c5_594 = arith.constant 5 : index
    %1116 = vector.load %arg12[%c1_592, %c8_593, %c5_594] : memref<2x24x128xf32, #tpu.memory_space<vmem>>, vector<1x16x16xf32>
    %1117 = vector.shape_cast %1116 : vector<1x16x16xf32> to vector<16x16xf32>
    %c158 = arith.constant 158 : index
    %1118 = memref.load %arg8[%c158] : memref<162xf32, #tpu.memory_space<smem>>
    %1119 = vector.broadcast %1118 : f32 to vector<16x16xf32>
    %1120 = arith.mulf %1117, %1119 : vector<16x16xf32>
    %1121 = arith.addf %1115, %1120 : vector<16x16xf32>
    %c1_595 = arith.constant 1 : index
    %c8_596 = arith.constant 8 : index
    %c6_597 = arith.constant 6 : index
    %1122 = vector.load %arg12[%c1_595, %c8_596, %c6_597] : memref<2x24x128xf32, #tpu.memory_space<vmem>>, vector<1x16x16xf32>
    %1123 = vector.shape_cast %1122 : vector<1x16x16xf32> to vector<16x16xf32>
    %c159 = arith.constant 159 : index
    %1124 = memref.load %arg8[%c159] : memref<162xf32, #tpu.memory_space<smem>>
    %1125 = vector.broadcast %1124 : f32 to vector<16x16xf32>
    %1126 = arith.mulf %1123, %1125 : vector<16x16xf32>
    %1127 = arith.addf %1121, %1126 : vector<16x16xf32>
    %c1_598 = arith.constant 1 : index
    %c8_599 = arith.constant 8 : index
    %c7_600 = arith.constant 7 : index
    %1128 = vector.load %arg12[%c1_598, %c8_599, %c7_600] : memref<2x24x128xf32, #tpu.memory_space<vmem>>, vector<1x16x16xf32>
    %1129 = vector.shape_cast %1128 : vector<1x16x16xf32> to vector<16x16xf32>
    %c160 = arith.constant 160 : index
    %1130 = memref.load %arg8[%c160] : memref<162xf32, #tpu.memory_space<smem>>
    %1131 = vector.broadcast %1130 : f32 to vector<16x16xf32>
    %1132 = arith.mulf %1129, %1131 : vector<16x16xf32>
    %1133 = arith.addf %1127, %1132 : vector<16x16xf32>
    %c1_601 = arith.constant 1 : index
    %c8_602 = arith.constant 8 : index
    %c8_603 = arith.constant 8 : index
    %1134 = vector.load %arg12[%c1_601, %c8_602, %c8_603] : memref<2x24x128xf32, #tpu.memory_space<vmem>>, vector<1x16x16xf32>
    %1135 = vector.shape_cast %1134 : vector<1x16x16xf32> to vector<16x16xf32>
    %c161 = arith.constant 161 : index
    %1136 = memref.load %arg8[%c161] : memref<162xf32, #tpu.memory_space<smem>>
    %1137 = vector.broadcast %1136 : f32 to vector<16x16xf32>
    %1138 = arith.mulf %1135, %1137 : vector<16x16xf32>
    %1139 = arith.addf %1133, %1138 : vector<16x16xf32>
    %1140 = arith.negf %1139 : vector<16x16xf32>
    %1141 = math.exp %1140 : vector<16x16xf32>
    %cst_604 = arith.constant 1.000000e+00 : f32
    %1142 = vector.broadcast %cst_604 : f32 to vector<16x16xf32>
    %1143 = arith.addf %1142, %1141 : vector<16x16xf32>
    %1144 = arith.divf %1142, %1143 : vector<16x16xf32>
    %1145 = vector.extract_strided_slice %1144 {offsets = [0, 0], sizes = [1, 16], strides = [1, 1]} : vector<16x16xf32> to vector<1x16xf32>
    %c0_605 = arith.constant 0 : index
    %c0_606 = arith.constant 0 : index
    %1146 = vector.load %arg13[%c0_605, %c0_606] : memref<1x256xf32, #tpu.memory_space<vmem>>, vector<1x16xf32>
    tpu.vector_store %arg13[%c0_605, %c0_606], %1145 {strides = array<i32>} : memref<1x256xf32, #tpu.memory_space<vmem>>, vector<1x16xf32>,
    %1147 = vector.extract_strided_slice %1144 {offsets = [1, 0], sizes = [1, 16], strides = [1, 1]} : vector<16x16xf32> to vector<1x16xf32>
    %c0_607 = arith.constant 0 : index
    %c16_608 = arith.constant 16 : index
    %1148 = vector.load %arg13[%c0_607, %c16_608] : memref<1x256xf32, #tpu.memory_space<vmem>>, vector<1x16xf32>
    tpu.vector_store %arg13[%c0_607, %c16_608], %1147 {strides = array<i32>} : memref<1x256xf32, #tpu.memory_space<vmem>>, vector<1x16xf32>,
    %1149 = vector.extract_strided_slice %1144 {offsets = [2, 0], sizes = [1, 16], strides = [1, 1]} : vector<16x16xf32> to vector<1x16xf32>
    %c0_609 = arith.constant 0 : index
    %c32_610 = arith.constant 32 : index
    %1150 = vector.load %arg13[%c0_609, %c32_610] : memref<1x256xf32, #tpu.memory_space<vmem>>, vector<1x16xf32>
    tpu.vector_store %arg13[%c0_609, %c32_610], %1149 {strides = array<i32>} : memref<1x256xf32, #tpu.memory_space<vmem>>, vector<1x16xf32>,
    %1151 = vector.extract_strided_slice %1144 {offsets = [3, 0], sizes = [1, 16], strides = [1, 1]} : vector<16x16xf32> to vector<1x16xf32>
    %c0_611 = arith.constant 0 : index
    %c48_612 = arith.constant 48 : index
    %1152 = vector.load %arg13[%c0_611, %c48_612] : memref<1x256xf32, #tpu.memory_space<vmem>>, vector<1x16xf32>
    tpu.vector_store %arg13[%c0_611, %c48_612], %1151 {strides = array<i32>} : memref<1x256xf32, #tpu.memory_space<vmem>>, vector<1x16xf32>,
    %1153 = vector.extract_strided_slice %1144 {offsets = [4, 0], sizes = [1, 16], strides = [1, 1]} : vector<16x16xf32> to vector<1x16xf32>
    %c0_613 = arith.constant 0 : index
    %c64_614 = arith.constant 64 : index
    %1154 = vector.load %arg13[%c0_613, %c64_614] : memref<1x256xf32, #tpu.memory_space<vmem>>, vector<1x16xf32>
    tpu.vector_store %arg13[%c0_613, %c64_614], %1153 {strides = array<i32>} : memref<1x256xf32, #tpu.memory_space<vmem>>, vector<1x16xf32>,
    %1155 = vector.extract_strided_slice %1144 {offsets = [5, 0], sizes = [1, 16], strides = [1, 1]} : vector<16x16xf32> to vector<1x16xf32>
    %c0_615 = arith.constant 0 : index
    %c80_616 = arith.constant 80 : index
    %1156 = vector.load %arg13[%c0_615, %c80_616] : memref<1x256xf32, #tpu.memory_space<vmem>>, vector<1x16xf32>
    tpu.vector_store %arg13[%c0_615, %c80_616], %1155 {strides = array<i32>} : memref<1x256xf32, #tpu.memory_space<vmem>>, vector<1x16xf32>,
    %1157 = vector.extract_strided_slice %1144 {offsets = [6, 0], sizes = [1, 16], strides = [1, 1]} : vector<16x16xf32> to vector<1x16xf32>
    %c0_617 = arith.constant 0 : index
    %c96_618 = arith.constant 96 : index
    %1158 = vector.load %arg13[%c0_617, %c96_618] : memref<1x256xf32, #tpu.memory_space<vmem>>, vector<1x16xf32>
    tpu.vector_store %arg13[%c0_617, %c96_618], %1157 {strides = array<i32>} : memref<1x256xf32, #tpu.memory_space<vmem>>, vector<1x16xf32>,
    %1159 = vector.extract_strided_slice %1144 {offsets = [7, 0], sizes = [1, 16], strides = [1, 1]} : vector<16x16xf32> to vector<1x16xf32>
    %c0_619 = arith.constant 0 : index
    %c112_620 = arith.constant 112 : index
    %1160 = vector.load %arg13[%c0_619, %c112_620] : memref<1x256xf32, #tpu.memory_space<vmem>>, vector<1x16xf32>
    tpu.vector_store %arg13[%c0_619, %c112_620], %1159 {strides = array<i32>} : memref<1x256xf32, #tpu.memory_space<vmem>>, vector<1x16xf32>,
    %1161 = vector.extract_strided_slice %1144 {offsets = [8, 0], sizes = [1, 16], strides = [1, 1]} : vector<16x16xf32> to vector<1x16xf32>
    %c0_621 = arith.constant 0 : index
    %c128_622 = arith.constant 128 : index
    %1162 = vector.load %arg13[%c0_621, %c128_622] : memref<1x256xf32, #tpu.memory_space<vmem>>, vector<1x16xf32>
    tpu.vector_store %arg13[%c0_621, %c128_622], %1161 {strides = array<i32>} : memref<1x256xf32, #tpu.memory_space<vmem>>, vector<1x16xf32>,
    %1163 = vector.extract_strided_slice %1144 {offsets = [9, 0], sizes = [1, 16], strides = [1, 1]} : vector<16x16xf32> to vector<1x16xf32>
    %c0_623 = arith.constant 0 : index
    %c144_624 = arith.constant 144 : index
    %1164 = vector.load %arg13[%c0_623, %c144_624] : memref<1x256xf32, #tpu.memory_space<vmem>>, vector<1x16xf32>
    tpu.vector_store %arg13[%c0_623, %c144_624], %1163 {strides = array<i32>} : memref<1x256xf32, #tpu.memory_space<vmem>>, vector<1x16xf32>,
    %1165 = vector.extract_strided_slice %1144 {offsets = [10, 0], sizes = [1, 16], strides = [1, 1]} : vector<16x16xf32> to vector<1x16xf32>
    %c0_625 = arith.constant 0 : index
    %c160_626 = arith.constant 160 : index
    %1166 = vector.load %arg13[%c0_625, %c160_626] : memref<1x256xf32, #tpu.memory_space<vmem>>, vector<1x16xf32>
    tpu.vector_store %arg13[%c0_625, %c160_626], %1165 {strides = array<i32>} : memref<1x256xf32, #tpu.memory_space<vmem>>, vector<1x16xf32>,
    %1167 = vector.extract_strided_slice %1144 {offsets = [11, 0], sizes = [1, 16], strides = [1, 1]} : vector<16x16xf32> to vector<1x16xf32>
    %c0_627 = arith.constant 0 : index
    %c176 = arith.constant 176 : index
    %1168 = vector.load %arg13[%c0_627, %c176] : memref<1x256xf32, #tpu.memory_space<vmem>>, vector<1x16xf32>
    tpu.vector_store %arg13[%c0_627, %c176], %1167 {strides = array<i32>} : memref<1x256xf32, #tpu.memory_space<vmem>>, vector<1x16xf32>,
    %1169 = vector.extract_strided_slice %1144 {offsets = [12, 0], sizes = [1, 16], strides = [1, 1]} : vector<16x16xf32> to vector<1x16xf32>
    %c0_628 = arith.constant 0 : index
    %c192 = arith.constant 192 : index
    %1170 = vector.load %arg13[%c0_628, %c192] : memref<1x256xf32, #tpu.memory_space<vmem>>, vector<1x16xf32>
    tpu.vector_store %arg13[%c0_628, %c192], %1169 {strides = array<i32>} : memref<1x256xf32, #tpu.memory_space<vmem>>, vector<1x16xf32>,
    %1171 = vector.extract_strided_slice %1144 {offsets = [13, 0], sizes = [1, 16], strides = [1, 1]} : vector<16x16xf32> to vector<1x16xf32>
    %c0_629 = arith.constant 0 : index
    %c208 = arith.constant 208 : index
    %1172 = vector.load %arg13[%c0_629, %c208] : memref<1x256xf32, #tpu.memory_space<vmem>>, vector<1x16xf32>
    tpu.vector_store %arg13[%c0_629, %c208], %1171 {strides = array<i32>} : memref<1x256xf32, #tpu.memory_space<vmem>>, vector<1x16xf32>,
    %1173 = vector.extract_strided_slice %1144 {offsets = [14, 0], sizes = [1, 16], strides = [1, 1]} : vector<16x16xf32> to vector<1x16xf32>
    %c0_630 = arith.constant 0 : index
    %c224 = arith.constant 224 : index
    %1174 = vector.load %arg13[%c0_630, %c224] : memref<1x256xf32, #tpu.memory_space<vmem>>, vector<1x16xf32>
    tpu.vector_store %arg13[%c0_630, %c224], %1173 {strides = array<i32>} : memref<1x256xf32, #tpu.memory_space<vmem>>, vector<1x16xf32>,
    %1175 = vector.extract_strided_slice %1144 {offsets = [15, 0], sizes = [1, 16], strides = [1, 1]} : vector<16x16xf32> to vector<1x16xf32>
    %c0_631 = arith.constant 0 : index
    %c240 = arith.constant 240 : index
    %1176 = vector.load %arg13[%c0_631, %c240] : memref<1x256xf32, #tpu.memory_space<vmem>>, vector<1x16xf32>
    tpu.vector_store %arg13[%c0_631, %c240], %1175 {strides = array<i32>} : memref<1x256xf32, #tpu.memory_space<vmem>>, vector<1x16xf32>,
    %c0_632 = arith.constant 0 : index
    %1177 = memref.load %arg10[%c0_632] : memref<1xf32, #tpu.memory_space<smem>>
    %c0_633 = arith.constant 0 : index
    %c0_634 = arith.constant 0 : index
    %1178 = vector.load %arg13[%c0_633, %c0_634] : memref<1x256xf32, #tpu.memory_space<vmem>>, vector<1x256xf32>
    %1179 = vector.broadcast %1177 : f32 to vector<1x256xf32>
    %1180 = arith.mulf %1179, %1178 : vector<1x256xf32>
    %1181 = vector.broadcast %1180 : vector<1x256xf32> to vector<16x256xf32>
    %1182 = arith.mulf %30, %1181 : vector<16x256xf32>
    %cst_635 = arith.constant dense<0.000000e+00> : vector<16xf32>
    %1183 = vector.multi_reduction <add>, %1182, %cst_635 [1] : vector<16x256xf32> to vector<16xf32>
    %1184 = vector.shape_cast %1183 : vector<16xf32> to vector<16x1xf32>
    %cst_636 = arith.constant 2.560000e+02 : f32
    %1185 = vector.broadcast %cst_636 : f32 to vector<16x1xf32>
    %1186 = arith.divf %1184, %1185 : vector<16x1xf32>
    %c0_637 = arith.constant 0 : index
    %c0_638 = arith.constant 0 : index
    %1187 = vector.load %arg5[%c0_637, %c0_638] : memref<16x16xf32, #tpu.memory_space<vmem>>, vector<16x16xf32>
    %cst_639 = arith.constant dense<0.000000e+00> : vector<16x1xf32>
    %1188 = tpu.matmul %1187, %1186, %cst_639 {dimension_numbers = #tpu.dot_dimension_numbers<[1], [0], [0], [1], [0, 0, 1, 1], [], []>} : vector<16x16xf32>, vector<16x1xf32>, vector<16x1xf32> -> vector<16x1xf32>
    %c0_640 = arith.constant 0 : index
    %c0_641 = arith.constant 0 : index
    %1189 = vector.load %arg7[%c0_640, %c0_641] : memref<16x1xf32, #tpu.memory_space<vmem>>, vector<16x1xf32>
    %1190 = arith.addf %1188, %1189 : vector<16x1xf32>
    %c0_642 = arith.constant 0 : index
    %c0_643 = arith.constant 0 : index
    %1191 = vector.load %arg4[%c0_642, %c0_643] : memref<16x16xf32, #tpu.memory_space<vmem>>, vector<16x16xf32>
    %cst_644 = arith.constant dense<0.000000e+00> : vector<16x256xf32>
    %1192 = tpu.matmul %1191, %1182, %cst_644 {dimension_numbers = #tpu.dot_dimension_numbers<[1], [0], [0], [1], [0, 0, 1, 1], [], []>} : vector<16x16xf32>, vector<16x256xf32>, vector<16x256xf32> -> vector<16x256xf32>
    %c0_645 = arith.constant 0 : index
    %c0_646 = arith.constant 0 : index
    %1193 = vector.load %arg6[%c0_645, %c0_646] : memref<16x16xf32, #tpu.memory_space<vmem>>, vector<16x16xf32>
    %cst_647 = arith.constant dense<0.000000e+00> : vector<16x256xf32>
    %1194 = tpu.matmul %1193, %1, %cst_647 {dimension_numbers = #tpu.dot_dimension_numbers<[1], [0], [0], [1], [0, 0, 1, 1], [], []>} : vector<16x16xf32>, vector<16x256xf32>, vector<16x256xf32> -> vector<16x256xf32>
    %1195 = arith.addf %1192, %1194 : vector<16x256xf32>
    %1196 = vector.broadcast %1190 : vector<16x1xf32> to vector<16x256xf32>
    %1197 = arith.addf %1195, %1196 : vector<16x256xf32>
    %c0_648 = arith.constant 0 : index
    %c0_649 = arith.constant 0 : index
    %c0_650 = arith.constant 0 : index
    %1198 = vector.load %arg11[%c0_648, %c0_649, %c0_650] : memref<1x16x256xf32, #tpu.memory_space<vmem>>, vector<1x16x256xf32>
    %1199 = vector.shape_cast %1198 : vector<1x16x256xf32> to vector<16x256xf32>
    %1200 = vector.shape_cast %1197 : vector<16x256xf32> to vector<1x16x256xf32>
    tpu.vector_store %arg11[%c0_648, %c0_649, %c0_650], %1200 {strides = array<i32>} : memref<1x16x256xf32, #tpu.memory_space<vmem>>, vector<1x16x256xf32>,
    return
  }
  func.func @transform_0(%arg0: i32) -> (i32, i32, i32) {
    %c0_i32 = arith.constant 0 : i32
    %c0_i32_0 = arith.constant 0 : i32
    %c0_i32_1 = arith.constant 0 : i32
    return %arg0, %c0_i32, %c0_i32_0 : i32, i32, i32
  }
  func.func @transform_1(%arg0: i32) -> (i32, i32) {
    %c0_i32 = arith.constant 0 : i32
    %c0_i32_0 = arith.constant 0 : i32
    %c0_i32_1 = arith.constant 0 : i32
    return %c0_i32, %c0_i32_0 : i32, i32
  }
  func.func @transform_2(%arg0: i32) -> (i32, i32) {
    %c0_i32 = arith.constant 0 : i32
    %c0_i32_0 = arith.constant 0 : i32
    %c0_i32_1 = arith.constant 0 : i32
    return %c0_i32, %c0_i32_0 : i32, i32
  }
  func.func @transform_3(%arg0: i32) -> (i32, i32) {
    %c0_i32 = arith.constant 0 : i32
    %c0_i32_0 = arith.constant 0 : i32
    %c0_i32_1 = arith.constant 0 : i32
    return %c0_i32, %c0_i32_0 : i32, i32
  }
  func.func @transform_4(%arg0: i32) -> (i32, i32) {
    %c0_i32 = arith.constant 0 : i32
    %c0_i32_0 = arith.constant 0 : i32
    %c0_i32_1 = arith.constant 0 : i32
    return %c0_i32, %c0_i32_0 : i32, i32
  }
  func.func @transform_5(%arg0: i32) -> (i32, i32) {
    %c0_i32 = arith.constant 0 : i32
    %c0_i32_0 = arith.constant 0 : i32
    %c0_i32_1 = arith.constant 0 : i32
    return %c0_i32, %c0_i32_0 : i32, i32
  }
  func.func @transform_6(%arg0: i32) -> (i32, i32) {
    %c0_i32 = arith.constant 0 : i32
    %c0_i32_0 = arith.constant 0 : i32
    %c0_i32_1 = arith.constant 0 : i32
    return %c0_i32, %c0_i32_0 : i32, i32
  }
  func.func @transform_7(%arg0: i32) -> i32 {
    %c0_i32 = arith.constant 0 : i32
    %c0_i32_0 = arith.constant 0 : i32
    return %c0_i32 : i32
  }
  func.func @transform_8(%arg0: i32) -> i32 {
    %c0_i32 = arith.constant 0 : i32
    %c0_i32_0 = arith.constant 0 : i32
    return %c0_i32 : i32
  }
  func.func @transform_9(%arg0: i32) -> i32 {
    %c0_i32 = arith.constant 0 : i32
    %c0_i32_0 = arith.constant 0 : i32
    return %c0_i32 : i32
  }
  func.func @transform_10(%arg0: i32) -> (i32, i32, i32) {
    %c0_i32 = arith.constant 0 : i32
    %c0_i32_0 = arith.constant 0 : i32
    %c0_i32_1 = arith.constant 0 : i32
    return %arg0, %c0_i32, %c0_i32_0 : i32, i32, i32
  }
}

</mosaic_0001>

<llo_original>
// kernel: tpu_custom_call.1
$region0: #{tpu_custom_call.1}
  #allocation0 [shape = 'u32[]', space=smem, size = 0x4, offset = 0x4, fixed_abs, tag = 'smem constant byte address 0x4 - core index']
  #allocation1 [shape = 'u32[144,128]{1,0:T(1,128)}', space=vmem, size = 0x12000, scoped, tag = 'internal scratch']
  #allocation2 [shape = 'f32[2,24,128]{2,1,0:T(8,128)}', space=vmem, size = 0x6000, scoped, tag = 'scratch operand']
  #allocation3 [shape = 'f32[1,256]{1,0:T(1,128)}', space=vmem, size = 0x400, scoped, tag = 'scratch operand']
  #allocation4 [shape = 'f32[1]{0:T(128)S(6)}', space=smem, size = 0x200, scoped, tag = 'scoped memory for tpu_custom_call.1']
  #allocation5 [shape = 'f32[1]{0:T(128)S(6)}', space=smem, size = 0x200, scoped, tag = 'scoped memory for tpu_custom_call.1']
  %s0 = inlined_call_operand.hbm [shape: f32[2,16,256], index: 0, kind: input, shape index: {}]
  %s1 = inlined_call_operand.vmem [shape: f32[16,2], index: 1, kind: input, shape index: {}]
  %s2 = inlined_call_operand.vmem [shape: f32[16,2], index: 2, kind: input, shape index: {}]
  %s3 = inlined_call_operand.vmem [shape: f32[16,16], index: 3, kind: input, shape index: {}]
  %s4 = inlined_call_operand.vmem [shape: f32[16,16], index: 4, kind: input, shape index: {}]
  %s5 = inlined_call_operand.vmem [shape: f32[16,16], index: 5, kind: input, shape index: {}]
  %s6 = inlined_call_operand.vmem [shape: f32[16,1], index: 6, kind: input, shape index: {}]
  %s7 = inlined_call_operand.vmem [shape: f32[162], index: 7, kind: input, shape index: {}]
  %s8 = inlined_call_operand.<no memory space> [shape: f32[1], index: 8, kind: input, shape index: {}]
  %s9 = inlined_call_operand.<no memory space> [shape: f32[1], index: 9, kind: input, shape index: {}]
  %s10 = inlined_call_operand.hbm [shape: f32[2,16,256], index: 10, kind: output, shape index: {}]
  %s11 = sld [smem:[#allocation0]]
  $region81: #{tpu_custom_call.1} parent=0
    _
  %s13 = ssub.s32 1, %s11
  %s14 = scalar_select 0, %s13, %s11
  %15 = sst [smem:[#allocation4]] %s8
  %16 = sst [smem:[#allocation5]] %s9
  $region1: #{tpu_custom_call.1} parent=0
    #allocation6 [shape = 'u8[32768]{0}', space=vmem, size = 0x8000, scoped, tag = 'input window, operand 0']
    #allocation7 [shape = 's32[2]{0}', space=sflag, size = 0x8, scoped, tag = 'scoped memory for tpu_custom_call.1']
    #allocation8 [shape = 's32[2]{0}', space=sflag, size = 0x8, scoped, tag = 'scoped memory for tpu_custom_call.1']
    #allocation9 [shape = 's32[2]{0}', space=sflag, size = 0x8, scoped, tag = 'scoped memory for tpu_custom_call.1']
    #allocation10 [shape = 'u8[1024]{0}', space=smem, size = 0x400, scoped, tag = 'input window, operand 7, single buffered']
    #allocation11 [shape = 'u8[32768]{0}', space=vmem, size = 0x8000, scoped, tag = 'output window, operand 0']
    %17 = vsyncpa [#allocation7], 0
    %s18 = scalar_lea.sflag [#allocation7], 1
    %19 = vsyncpa %s18, 0
    %20 = vsyncpa [#allocation9], 0
    %21 = vsyncpa [#allocation8], 0
    %s22 = scalar_lea.sflag [#allocation8], 1
    %23 = vsyncpa %s22, 0
    loop: start=0, step=1, limit=4
    $region2: #{tpu_custom_call.1} parent=1 // loop_pre_header
      _
    $region3: #{tpu_custom_call.1} parent=1 // loop_header
      %s25 = sphi 0, %s29
      %p26 = scmp.ge.s32.totalorder %s25, 4
      %s35 = sphi 0, %s37
      %s38 = sphi 0, %s35
      %s39 = sphi 0, %s38
      %s55 = sphi 0, %s39
      %s59 = sphi 0, %s59
      %s61 = sphi 0, %s59
      %s62 = sphi 0, %s61
      %s76 = sphi 0, %s62
      %s80 = sphi 0, %s80
      %s82 = sphi 0, %s80
      %s83 = sphi 0, %s82
      %s97 = sphi 0, %s83
      %s101 = sphi 0, %s101
      %s103 = sphi 0, %s101
      %s104 = sphi 0, %s103
      %s118 = sphi 0, %s104
      %s122 = sphi 0, %s122
      %s124 = sphi 0, %s122
      %s125 = sphi 0, %s124
      %s139 = sphi 0, %s125
      %s143 = sphi 0, %s143
      %s145 = sphi 0, %s143
      %s146 = sphi 0, %s145
      %s160 = sphi 0, %s146
      %s164 = sphi 0, %s164
      %s166 = sphi 0, %s164
      %s167 = sphi 0, %s166
      %s181 = sphi 0, %s167
      %s185 = sphi 0, %s185
      %s187 = sphi 0, %s185
      %s188 = sphi 0, %s187
      %s202 = sphi 0, %s188
      %s206 = sphi 0, %s206
      %s208 = sphi 0, %s206
      %s209 = sphi 0, %s208
      %s223 = sphi 0, %s209
      %s227 = sphi 0, %s227
      %s229 = sphi 0, %s227
      %s230 = sphi 0, %s229
      %s244 = sphi 0, %s230
      %s250 = sphi 0, %s252
      %s253 = sphi 0, %s250
      %s254 = sphi 0, %s253
      %s270 = sphi 0, %s254
    $region4: #{tpu_custom_call.1} parent=1 // loop_header_branch
      %28 = sbr.rel (%p26) target = $region8
    $region5: #{tpu_custom_call.1} parent=1 // loop_body
      %s30 = ssub.s32 %s25, 1
      %s31 = ssub.s32 %s25, 2
      %s32 = sadd.s32 %s25, 1
      %s33 = ssub.s32 %s25, %s32
      %p34 = scmp.eq.s32.totalorder %s33, 0
      %s36 = sadd.s32 %s35, 1
      %s37 = scalar_select %p34, %s35, %s36
      %p40 = pneg %p34
      %p41 = scmp.eq.s32.totalorder %s25, 1
      %p42 = por %p40, %p41
      %p43 = scmp.ne.s32.totalorder %s35, %s38
      %p44 = scmp.eq.s32.totalorder %s25, 0
      %p45 = por %p43, %p44
      %p46 = scmp.ne.s32.totalorder %s35, %s38
      %p47 = scmp.eq.s32.totalorder %s30, 1
      %p48 = por %p46, %p47
      %p49 = scmp.ne.s32.totalorder %s38, %s39
      %p50 = scmp.eq.s32.totalorder %s30, 0
      %p51 = por %p49, %p50
      %p52 = scmp.ne.s32.totalorder %s38, %s39
      %p53 = scmp.eq.s32.totalorder %s31, 1
      %p54 = por %p52, %p53
      %p56 = scmp.ne.s32.totalorder %s39, %s55
      %p57 = scmp.eq.s32.totalorder %s31, 0
      %p58 = por %p56, %p57
      %s60 = sadd.s32 %s59, 1
      %p63 = scmp.eq.s32.totalorder %s25, 1
      %p64 = scmp.ne.s32.totalorder %s59, %s61
      %p65 = scmp.eq.s32.totalorder %s25, 0
      %p66 = por %p64, %p65
      %p67 = scmp.ne.s32.totalorder %s59, %s61
      %p68 = scmp.eq.s32.totalorder %s30, 1
      %p69 = por %p67, %p68
      %p70 = scmp.ne.s32.totalorder %s61, %s62
      %p71 = scmp.eq.s32.totalorder %s30, 0
      %p72 = por %p70, %p71
      %p73 = scmp.ne.s32.totalorder %s61, %s62
      %p74 = scmp.eq.s32.totalorder %s31, 1
      %p75 = por %p73, %p74
      %p77 = scmp.ne.s32.totalorder %s62, %s76
      %p78 = scmp.eq.s32.totalorder %s31, 0
      %p79 = por %p77, %p78
      %s81 = sadd.s32 %s80, 1
      %p84 = scmp.eq.s32.totalorder %s25, 1
      %p85 = scmp.ne.s32.totalorder %s80, %s82
      %p86 = scmp.eq.s32.totalorder %s25, 0
      %p87 = por %p85, %p86
      %p88 = scmp.ne.s32.totalorder %s80, %s82
      %p89 = scmp.eq.s32.totalorder %s30, 1
      %p90 = por %p88, %p89
      %p91 = scmp.ne.s32.totalorder %s82, %s83
      %p92 = scmp.eq.s32.totalorder %s30, 0
      %p93 = por %p91, %p92
      %p94 = scmp.ne.s32.totalorder %s82, %s83
      %p95 = scmp.eq.s32.totalorder %s31, 1
      %p96 = por %p94, %p95
      %p98 = scmp.ne.s32.totalorder %s83, %s97
      %p99 = scmp.eq.s32.totalorder %s31, 0
      %p100 = por %p98, %p99
      %s102 = sadd.s32 %s101, 1
      %p105 = scmp.eq.s32.totalorder %s25, 1
      %p106 = scmp.ne.s32.totalorder %s101, %s103
      %p107 = scmp.eq.s32.totalorder %s25, 0
      %p108 = por %p106, %p107
      %p109 = scmp.ne.s32.totalorder %s101, %s103
      %p110 = scmp.eq.s32.totalorder %s30, 1
      %p111 = por %p109, %p110
      %p112 = scmp.ne.s32.totalorder %s103, %s104
      %p113 = scmp.eq.s32.totalorder %s30, 0
      %p114 = por %p112, %p113
      %p115 = scmp.ne.s32.totalorder %s103, %s104
      %p116 = scmp.eq.s32.totalorder %s31, 1
      %p117 = por %p115, %p116
      %p119 = scmp.ne.s32.totalorder %s104, %s118
      %p120 = scmp.eq.s32.totalorder %s31, 0
      %p121 = por %p119, %p120
      %s123 = sadd.s32 %s122, 1
      %p126 = scmp.eq.s32.totalorder %s25, 1
      %p127 = scmp.ne.s32.totalorder %s122, %s124
      %p128 = scmp.eq.s32.totalorder %s25, 0
      %p129 = por %p127, %p128
      %p130 = scmp.ne.s32.totalorder %s122, %s124
      %p131 = scmp.eq.s32.totalorder %s30, 1
      %p132 = por %p130, %p131
      %p133 = scmp.ne.s32.totalorder %s124, %s125
      %p134 = scmp.eq.s32.totalorder %s30, 0
      %p135 = por %p133, %p134
      %p136 = scmp.ne.s32.totalorder %s124, %s125
      %p137 = scmp.eq.s32.totalorder %s31, 1
      %p138 = por %p136, %p137
      %p140 = scmp.ne.s32.totalorder %s125, %s139
      %p141 = scmp.eq.s32.totalorder %s31, 0
      %p142 = por %p140, %p141
      %s144 = sadd.s32 %s143, 1
      %p147 = scmp.eq.s32.totalorder %s25, 1
      %p148 = scmp.ne.s32.totalorder %s143, %s145
      %p149 = scmp.eq.s32.totalorder %s25, 0
      %p150 = por %p148, %p149
      %p151 = scmp.ne.s32.totalorder %s143, %s145
      %p152 = scmp.eq.s32.totalorder %s30, 1
      %p153 = por %p151, %p152
      %p154 = scmp.ne.s32.totalorder %s145, %s146
      %p155 = scmp.eq.s32.totalorder %s30, 0
      %p156 = por %p154, %p155
      %p157 = scmp.ne.s32.totalorder %s145, %s146
      %p158 = scmp.eq.s32.totalorder %s31, 1
      %p159 = por %p157, %p158
      %p161 = scmp.ne.s32.totalorder %s146, %s160
      %p162 = scmp.eq.s32.totalorder %s31, 0
      %p163 = por %p161, %p162
      %s165 = sadd.s32 %s164, 1
      %p168 = scmp.eq.s32.totalorder %s25, 1
      %p169 = scmp.ne.s32.totalorder %s164, %s166
      %p170 = scmp.eq.s32.totalorder %s25, 0
      %p171 = por %p169, %p170
      %p172 = scmp.ne.s32.totalorder %s164, %s166
      %p173 = scmp.eq.s32.totalorder %s30, 1
      %p174 = por %p172, %p173
      %p175 = scmp.ne.s32.totalorder %s166, %s167
      %p176 = scmp.eq.s32.totalorder %s30, 0
      %p177 = por %p175, %p176
      %p178 = scmp.ne.s32.totalorder %s166, %s167
      %p179 = scmp.eq.s32.totalorder %s31, 1
      %p180 = por %p178, %p179
      %p182 = scmp.ne.s32.totalorder %s167, %s181
      %p183 = scmp.eq.s32.totalorder %s31, 0
      %p184 = por %p182, %p183
      %s186 = sadd.s32 %s185, 1
      %p189 = scmp.eq.s32.totalorder %s25, 1
      %p190 = scmp.ne.s32.totalorder %s185, %s187
      %p191 = scmp.eq.s32.totalorder %s25, 0
      %p192 = por %p190, %p191
      %p193 = scmp.ne.s32.totalorder %s185, %s187
      %p194 = scmp.eq.s32.totalorder %s30, 1
      %p195 = por %p193, %p194
      %p196 = scmp.ne.s32.totalorder %s187, %s188
      %p197 = scmp.eq.s32.totalorder %s30, 0
      %p198 = por %p196, %p197
      %p199 = scmp.ne.s32.totalorder %s187, %s188
      %p200 = scmp.eq.s32.totalorder %s31, 1
      %p201 = por %p199, %p200
      %p203 = scmp.ne.s32.totalorder %s188, %s202
      %p204 = scmp.eq.s32.totalorder %s31, 0
      %p205 = por %p203, %p204
      %s207 = sadd.s32 %s206, 1
      %p210 = scmp.eq.s32.totalorder %s25, 1
      %p211 = scmp.ne.s32.totalorder %s206, %s208
      %p212 = scmp.eq.s32.totalorder %s25, 0
      %p213 = por %p211, %p212
      %p214 = scmp.ne.s32.totalorder %s206, %s208
      %p215 = scmp.eq.s32.totalorder %s30, 1
      %p216 = por %p214, %p215
      %p217 = scmp.ne.s32.totalorder %s208, %s209
      %p218 = scmp.eq.s32.totalorder %s30, 0
      %p219 = por %p217, %p218
      %p220 = scmp.ne.s32.totalorder %s208, %s209
      %p221 = scmp.eq.s32.totalorder %s31, 1
      %p222 = por %p220, %p221
      %p224 = scmp.ne.s32.totalorder %s209, %s223
      %p225 = scmp.eq.s32.totalorder %s31, 0
      %p226 = por %p224, %p225
      %s228 = sadd.s32 %s227, 1
      %p231 = scmp.eq.s32.totalorder %s25, 1
      %p232 = scmp.ne.s32.totalorder %s227, %s229
      %p233 = scmp.eq.s32.totalorder %s25, 0
      %p234 = por %p232, %p233
      %p235 = scmp.ne.s32.totalorder %s227, %s229
      %p236 = scmp.eq.s32.totalorder %s30, 1
      %p237 = por %p235, %p236
      %p238 = scmp.ne.s32.totalorder %s229, %s230
      %p239 = scmp.eq.s32.totalorder %s30, 0
      %p240 = por %p238, %p239
      %p241 = scmp.ne.s32.totalorder %s229, %s230
      %p242 = scmp.eq.s32.totalorder %s31, 1
      %p243 = por %p241, %p242
      %p245 = scmp.ne.s32.totalorder %s230, %s244
      %p246 = scmp.eq.s32.totalorder %s31, 0
      %p247 = por %p245, %p246
      %s248 = ssub.s32 %s25, %s32
      %p249 = scmp.eq.s32.totalorder %s248, 0
      %s251 = sadd.s32 %s250, 1
      %s252 = scalar_select %p249, %s250, %s251
      %p255 = pneg %p249
      %p256 = scmp.eq.s32.totalorder %s25, 1
      %p257 = por %p255, %p256
      %p258 = scmp.ne.s32.totalorder %s250, %s253
      %p259 = scmp.eq.s32.totalorder %s25, 0
      %p260 = por %p258, %p259
      %p261 = scmp.ne.s32.totalorder %s250, %s253
      %p262 = scmp.eq.s32.totalorder %s30, 1
      %p263 = por %p261, %p262
      %p264 = scmp.ne.s32.totalorder %s253, %s254
      %p265 = scmp.eq.s32.totalorder %s30, 0
      %p266 = por %p264, %p265
      %p267 = scmp.ne.s32.totalorder %s253, %s254
      %p268 = scmp.eq.s32.totalorder %s31, 1
      %p269 = por %p267, %p268
      %p271 = scmp.ne.s32.totalorder %s254, %s270
      %p272 = scmp.eq.s32.totalorder %s31, 0
      %p273 = por %p271, %p272
      %p274 = scmp.le.s32.totalorder 1, %s25
      %p275 = scmp.lt.s32.totalorder %s25, 3
      %p276 = pnand %p274, %p275
      %p277 = pneg %p276
      // Predicated region
      $region9: #{tpu_custom_call.1} parent=5 // pred_check
        _
      $region10: #{tpu_custom_call.1} parent=5 // pred_check_branch
        %279 = sbr.rel (%p276) target = $region12
      $region11: #{tpu_custom_call.1} parent=5 // pred_region
        %s280 = ssub.s32 %s25, 1
        // Predicated region
        $region13: #{tpu_custom_call.1} parent=11 // pred_check
          %p281 = pneg %p72
        $region14: #{tpu_custom_call.1} parent=11 // pred_check_branch
          %283 = sbr.rel (%p281) target = $region16
        $region15: #{tpu_custom_call.1} parent=11 // pred_region
          _
        $region16: #{tpu_custom_call.1} parent=11 // pred_fallthru
          _
        // Predicated region
        $region17: #{tpu_custom_call.1} parent=11 // pred_check
          %p284 = pneg %p93
        $region18: #{tpu_custom_call.1} parent=11 // pred_check_branch
          %286 = sbr.rel (%p284) target = $region20
        $region19: #{tpu_custom_call.1} parent=11 // pred_region
          _
        $region20: #{tpu_custom_call.1} parent=11 // pred_fallthru
          _
        // Predicated region
        $region21: #{tpu_custom_call.1} parent=11 // pred_check
          %p287 = pneg %p114
        $region22: #{tpu_custom_call.1} parent=11 // pred_check_branch
          %289 = sbr.rel (%p287) target = $region24
        $region23: #{tpu_custom_call.1} parent=11 // pred_region
          _
        $region24: #{tpu_custom_call.1} parent=11 // pred_fallthru
          _
        // Predicated region
        $region25: #{tpu_custom_call.1} parent=11 // pred_check
          %p290 = pneg %p135
        $region26: #{tpu_custom_call.1} parent=11 // pred_check_branch
          %292 = sbr.rel (%p290) target = $region28
        $region27: #{tpu_custom_call.1} parent=11 // pred_region
          _
        $region28: #{tpu_custom_call.1} parent=11 // pred_fallthru
          _
        // Predicated region
        $region29: #{tpu_custom_call.1} parent=11 // pred_check
          %p293 = pneg %p156
        $region30: #{tpu_custom_call.1} parent=11 // pred_check_branch
          %295 = sbr.rel (%p293) target = $region32
        $region31: #{tpu_custom_call.1} parent=11 // pred_region
          _
        $region32: #{tpu_custom_call.1} parent=11 // pred_fallthru
          _
        // Predicated region
        $region33: #{tpu_custom_call.1} parent=11 // pred_check
          %p296 = pneg %p177
        $region34: #{tpu_custom_call.1} parent=11 // pred_check_branch
          %298 = sbr.rel (%p296) target = $region36
        $region35: #{tpu_custom_call.1} parent=11 // pred_region
          _
        $region36: #{tpu_custom_call.1} parent=11 // pred_fallthru
          _
        // Predicated region
        $region37: #{tpu_custom_call.1} parent=11 // pred_check
          %p299 = pneg %p198
        $region38: #{tpu_custom_call.1} parent=11 // pred_check_branch
          %301 = sbr.rel (%p299) target = $region40
        $region39: #{tpu_custom_call.1} parent=11 // pred_region
          %s303 = ssub.s32 32, 32
          %304 = vsyncadd [#allocation9], %s303
          %s306 = sshll.u32 %s7, 4
          %s307 = int_to_ptr.vmem [resolvable:$true] %s306
          %309 = dma.vmem_to_smem %s307, 32, [#allocation10], [#allocation9]
        $region40: #{tpu_custom_call.1} parent=11 // pred_fallthru
          _
        // Predicated region
        $region41: #{tpu_custom_call.1} parent=11 // pred_check
          %p310 = pneg %p219
        $region42: #{tpu_custom_call.1} parent=11 // pred_check_branch
          %312 = sbr.rel (%p310) target = $region44
        $region43: #{tpu_custom_call.1} parent=11 // pred_region
          _
        $region44: #{tpu_custom_call.1} parent=11 // pred_fallthru
          _
        // Predicated region
        $region45: #{tpu_custom_call.1} parent=11 // pred_check
          %p313 = pneg %p240
        $region46: #{tpu_custom_call.1} parent=11 // pred_check_branch
          %315 = sbr.rel (%p313) target = $region48
        $region47: #{tpu_custom_call.1} parent=11 // pred_region
          _
        $region48: #{tpu_custom_call.1} parent=11 // pred_fallthru
          _
      $region12: #{tpu_custom_call.1} parent=5 // pred_fallthru
        _
      %p316 = scmp.lt.s32.totalorder %s25, 2
      // Predicated region
      $region49: #{tpu_custom_call.1} parent=5 // pred_check
        %p317 = pneg %p316
      $region50: #{tpu_custom_call.1} parent=5 // pred_check_branch
        %319 = sbr.rel (%p317) target = $region52
      $region51: #{tpu_custom_call.1} parent=5 // pred_region
        // Predicated region
        $region53: #{tpu_custom_call.1} parent=51 // pred_check
          %p320 = pneg %p45
        $region54: #{tpu_custom_call.1} parent=51 // pred_check_branch
          %322 = sbr.rel (%p320) target = $region56
        $region55: #{tpu_custom_call.1} parent=51 // pred_region
          %s323 = sand.u32 %s35, 1
          %s324 = scalar_lea.sflag [#allocation7], %s323
          %s325 = sand.u32 %s35, 1
          %s326 = smul.addr %s325, 32
          %s327 = scalar_lea.vmem [#allocation6], %s326
          %s329 = ssub.s32 512, 512
          %330 = vsyncadd %s324, %s329
          %s331 = smul.addr %s25, 4
          %s332 = smul.addr %s331, 128
          %s333 = scalar_lea.hbm %s0, %s332
          %s334 = sshll.u32 %s327, 4
          %s335 = int_to_ptr.vmem [resolvable:$true] %s334
          %340 = dma.hbm_to_vmem [thread:$0]  %s333, 512, %s335, %s324, 256, 256, 16
        $region56: #{tpu_custom_call.1} parent=51 // pred_fallthru
          _
      $region52: #{tpu_custom_call.1} parent=5 // pred_fallthru
        _
      %p341 = scmp.le.s32.totalorder 1, %s25
      %p342 = scmp.lt.s32.totalorder %s25, 3
      %p343 = pnand %p341, %p342
      %p344 = pneg %p343
      // Predicated region
      $region57: #{tpu_custom_call.1} parent=5 // pred_check
        _
      $region58: #{tpu_custom_call.1} parent=5 // pred_check_branch
        %346 = sbr.rel (%p343) target = $region60
      $region59: #{tpu_custom_call.1} parent=5 // pred_region
        %s347 = ssub.s32 %s25, 1
        %s348 = sand.u32 %s38, 1
        %s349 = scalar_lea.sflag [#allocation7], %s348
        %s350 = sand.u32 %s38, 1
        %s351 = smul.addr %s350, 32
        %s352 = scalar_lea.vmem [#allocation6], %s351
        // Predicated region
        $region61: #{tpu_custom_call.1} parent=59 // pred_check
          %p353 = pneg %p51
        $region62: #{tpu_custom_call.1} parent=59 // pred_check_branch
          %355 = sbr.rel (%p353) target = $region64
        $region63: #{tpu_custom_call.1} parent=59 // pred_region
          %356 = dma.done %s349, 512
        $region64: #{tpu_custom_call.1} parent=59 // pred_fallthru
          _
        // Predicated region
        $region65: #{tpu_custom_call.1} parent=59 // pred_check
          %p357 = pneg %p198
        $region66: #{tpu_custom_call.1} parent=59 // pred_check_branch
          %359 = sbr.rel (%p357) target = $region68
        $region67: #{tpu_custom_call.1} parent=59 // pred_region
          %360 = dma.done [#allocation9], 32
        $region68: #{tpu_custom_call.1} parent=59 // pred_fallthru
          _
        %361 = sfence
        %s362 = sand.u32 %s38, 1
        %s363 = scalar_lea.sflag [#allocation7], %s362
        %s364 = sand.u32 %s38, 1
        %s365 = smul.addr %s364, 32
        %s366 = scalar_lea.vmem [#allocation6], %s365
        %p367 = pneg %p51
        %p368 = pneg %p48
        %p369 = pneg %p72
        %p370 = pneg %p69
        %p371 = pneg %p93
        %p372 = pneg %p90
        %p373 = pneg %p114
        %p374 = pneg %p111
        %p375 = pneg %p135
        %p376 = pneg %p132
        %p377 = pneg %p156
        %p378 = pneg %p153
        %p379 = pneg %p177
        %p380 = pneg %p174
        %p381 = pneg %p198
        %p382 = pneg %p195
        %p383 = pneg %p219
        %p384 = pneg %p216
        %p385 = pneg %p240
        %p386 = pneg %p237
        %p387 = pneg %p266
        %p388 = pneg %p263
        %s389 = sand.u32 %s253, 1
        %s390 = scalar_lea.sflag [#allocation8], %s389
        %s391 = sand.u32 %s253, 1
        %s392 = smul.addr %s391, 32
        %s393 = scalar_lea.vmem [#allocation11], %s392
        %v394 = vld [vmem:[%s352] sm:$0xff]
        %v395 = vld [vmem:[%s352 + $0x8] sm:$0xff]
        %v396 = vld [vmem:[%s352 + $0x10] sm:$0xff]
        %v397 = vld [vmem:[%s352 + $0x18] sm:$0xff]
        %v398 = vadd.f32 %v394, %v395
        %399 = vadd.xlane.f32.xlu0 %v398
        %v400 = vpop.xlane.xlu0 %399
        %v401 = vadd.f32 %v396, %v397
        %402 = vadd.xlane.f32.xlu0 %v401
        %v403 = vpop.xlane.xlu0 %402
        %v404 = vrcp.pop 256.0
        %v405 = vmul.f32 %v400, %v404
        %v406 = vmul.f32 %v403, %v404
        %v407 = vmax.f32 %v394, %v395
        %408 = vmax.xlane.f32.xlu0 %v407
        %v409 = vpop.xlane.xlu0 %408
        %v410 = vmax.f32 %v396, %v397
        %411 = vmax.xlane.f32.xlu0 %v410
        %v412 = vpop.xlane.xlu0 %411
        %v413 = vadd.f32 %v405, %v409
        %v414 = vadd.f32 %v406, %v412
        %v415 = vld [vmem:[%s1] sm:$0xff]
        %v416 = vld [vmem:[%s1 + $0x8] sm:$0xff]
        %v417 = vmul.f32 %v415, %v413
        %v418 = vmul.f32 %v416, %v414
        %vm419 = vcmask 15360
        %v420 = vsel %vm419, %v417, 0.0
        %v421 = vsel %vm419, %v418, 0.0
        %v422 = vadd.f32 %v420, %v421
        %v423 = vrot.slane %v422, 4
        %v424 = vadd.f32 %v422, %v423
        %v425 = vrot.slane %v424, 2
        %v426 = vadd.f32 %v424, %v425
        %v427 = vrot.slane %v426, 1
        %v428 = vadd.f32 %v426, %v427
        %v429 = vmax.f32 %v428, 0.0
        %v430 = vld [vmem:[%s2] sm:$0xff]
        %v431 = vld [vmem:[%s2 + $0x8] sm:$0xff]
        %v432 = vmul.f32 %v430, %v429
        %v433 = vmul.f32 %v431, %v429
        %v434 = vsel %vm419, %v432, 0.0
        %435 = vadd.xlane.f32.xlu0 %v434
        %v436 = vpop.xlane.xlu0 %435
        %v437 = vsel %vm419, %v433, 0.0
        %438 = vadd.xlane.f32.xlu0 %v437
        %v439 = vpop.xlane.xlu0 %438
        %v440 = vxor.u32 %v436, 2147483648
        %v441 = vxor.u32 %v439, 2147483648
        %v442 = vmul.f32 %v440, 1.442695
        %v443 = vpow.pop %v442
        %v444 = vmul.f32 %v441, 1.442695
        %v445 = vpow.pop %v444
        %v446 = vadd.f32 %v443, 1.0
        %v447 = vadd.f32 %v445, 1.0
        %v448 = vrcp.pop %v446
        %v449 = vmul.f32 1.0, %v448
        %v450 = vrcp.pop %v447
        %v451 = vmul.f32 1.0, %v450
        %s452 = sld [smem:[#allocation4]]
        %v453 = vstv %s452
        %v454 = vmul.f32 %v453, %v449
        %v455 = vmul.f32 %v453, %v451
        %v456 = vmul.f32 %v394, %v454
        %v457 = vmul.f32 %v395, %v454
        %v458 = vmul.f32 %v396, %v455
        %v459 = vmul.f32 %v397, %v455
        %v460 = vmax.f32 %v456, %v458
        %v461 = vrot.slane %v460, 4
        %v462 = vmax.f32 %v460, %v461
        %v463 = vrot.slane %v462, 2
        %v464 = vmax.f32 %v462, %v463
        %v465 = vrot.slane %v464, 1
        %v466 = vmax.f32 %v464, %v465
        %v467 = vmax.f32 %v457, %v459
        %v468 = vrot.slane %v467, 4
        %v469 = vmax.f32 %v467, %v468
        %v470 = vrot.slane %v469, 2
        %v471 = vmax.f32 %v469, %v470
        %v472 = vrot.slane %v471, 1
        %v473 = vmax.f32 %v471, %v472
        %v474 = vadd.f32 %v456, %v458
        %v475 = vrot.slane %v474, 4
        %v476 = vadd.f32 %v474, %v475
        %v477 = vrot.slane %v476, 2
        %v478 = vadd.f32 %v476, %v477
        %v479 = vrot.slane %v478, 1
        %v480 = vadd.f32 %v478, %v479
        %v481 = vadd.f32 %v457, %v459
        %v482 = vrot.slane %v481, 4
        %v483 = vadd.f32 %v481, %v482
        %v484 = vrot.slane %v483, 2
        %v485 = vadd.f32 %v483, %v484
        %v486 = vrot.slane %v485, 1
        %v487 = vadd.f32 %v485, %v486
        %v488 = vrcp.pop 16.0
        %v489 = vmul.f32 %v480, %v488
        %v490 = vmul.f32 %v487, %v488
        %491 = vst [vmem:[#allocation2] sm:$0xff] 0.0
        %492 = vst [vmem:[#allocation2 + $0x8] sm:$0xff] 0.0
        %493 = vst [vmem:[#allocation2 + $0x10] sm:$0xff] 0.0
        %494 = vst [vmem:[#allocation2 + $0x18] sm:$0xff] 0.0
        %495 = vst [vmem:[#allocation2 + $0x20] sm:$0xff] 0.0
        %496 = vst [vmem:[#allocation2 + $0x28] sm:$0xff] 0.0
        %498 = vrot.lane.b32.xlu0 %v466, 4
        %v499 = vpop.permute.xlu0 %498
        %vm501 = vcmask 155680
        %502 = vst.msk [vmem:[#allocation2 + $0x4] sm:$0x1] %vm501, %v499
        %504 = vrot.lane.b32.xlu0 %v489, 4
        %v505 = vpop.permute.xlu0 %504
        %s507 = scalar_lea.vmem [#allocation2], 24
        %508 = vst.msk [vmem:[%s507 + $0x4] sm:$0x1] %vm501, %v505
        %509 = vrot.lane.b32.xlu0 %v466, 116
        %v510 = vpop.permute.xlu0 %509
        %512 = vst.msk [vmem:[#allocation2 + $0x5] sm:$0x1] %vm501, %v510
        %513 = vrot.lane.b32.xlu0 %v489, 116
        %v514 = vpop.permute.xlu0 %513
        %516 = vst.msk [vmem:[%s507 + $0x5] sm:$0x1] %vm501, %v514
        %517 = vrot.lane.b32.xlu0 %v466, 100
        %v518 = vpop.permute.xlu0 %517
        %520 = vst.msk [vmem:[#allocation2 + $0x6] sm:$0x1] %vm501, %v518
        %521 = vrot.lane.b32.xlu0 %v489, 100
        %v522 = vpop.permute.xlu0 %521
        %524 = vst.msk [vmem:[%s507 + $0x6] sm:$0x1] %vm501, %v522
        %525 = vrot.lane.b32.xlu0 %v466, 84
        %v526 = vpop.permute.xlu0 %525
        %528 = vst.msk [vmem:[#allocation2 + $0x7] sm:$0x1] %vm501, %v526
        %529 = vrot.lane.b32.xlu0 %v489, 84
        %v530 = vpop.permute.xlu0 %529
        %532 = vst.msk [vmem:[%s507 + $0x7] sm:$0x1] %vm501, %v530
        %533 = vrot.lane.b32.xlu0 %v466, 68
        %v534 = vpop.permute.xlu0 %533
        %536 = vst.msk [vmem:[#allocation2 + $0x8] sm:$0x1] %vm501, %v534
        %537 = vrot.lane.b32.xlu0 %v489, 68
        %v538 = vpop.permute.xlu0 %537
        %540 = vst.msk [vmem:[%s507 + $0x8] sm:$0x1] %vm501, %v538
        %541 = vrot.lane.b32.xlu0 %v466, 52
        %v542 = vpop.permute.xlu0 %541
        %544 = vst.msk [vmem:[#allocation2 + $0x9] sm:$0x1] %vm501, %v542
        %545 = vrot.lane.b32.xlu0 %v489, 52
        %v546 = vpop.permute.xlu0 %545
        %548 = vst.msk [vmem:[%s507 + $0x9] sm:$0x1] %vm501, %v546
        %549 = vrot.lane.b32.xlu0 %v466, 36
        %v550 = vpop.permute.xlu0 %549
        %552 = vst.msk [vmem:[#allocation2 + $0xa] sm:$0x1] %vm501, %v550
        %553 = vrot.lane.b32.xlu0 %v489, 36
        %v554 = vpop.permute.xlu0 %553
        %556 = vst.msk [vmem:[%s507 + $0xa] sm:$0x1] %vm501, %v554
        %557 = vrot.lane.b32.xlu0 %v466, 20
        %v558 = vpop.permute.xlu0 %557
        %560 = vst.msk [vmem:[#allocation2 + $0xb] sm:$0x1] %vm501, %v558
        %561 = vrot.lane.b32.xlu0 %v489, 20
        %v562 = vpop.permute.xlu0 %561
        %564 = vst.msk [vmem:[%s507 + $0xb] sm:$0x1] %vm501, %v562
        %566 = vrot.lane.b32.xlu0 %v473, 4
        %v567 = vpop.permute.xlu0 %566
        %569 = vst.msk [vmem:[#allocation2 + $0xc] sm:$0x1] %vm501, %v567
        %571 = vrot.lane.b32.xlu0 %v490, 4
        %v572 = vpop.permute.xlu0 %571
        %574 = vst.msk [vmem:[%s507 + $0xc] sm:$0x1] %vm501, %v572
        %575 = vrot.lane.b32.xlu0 %v473, 116
        %v576 = vpop.permute.xlu0 %575
        %578 = vst.msk [vmem:[#allocation2 + $0xd] sm:$0x1] %vm501, %v576
        %579 = vrot.lane.b32.xlu0 %v490, 116
        %v580 = vpop.permute.xlu0 %579
        %582 = vst.msk [vmem:[%s507 + $0xd] sm:$0x1] %vm501, %v580
        %583 = vrot.lane.b32.xlu0 %v473, 100
        %v584 = vpop.permute.xlu0 %583
        %586 = vst.msk [vmem:[#allocation2 + $0xe] sm:$0x1] %vm501, %v584
        %587 = vrot.lane.b32.xlu0 %v490, 100
        %v588 = vpop.permute.xlu0 %587
        %590 = vst.msk [vmem:[%s507 + $0xe] sm:$0x1] %vm501, %v588
        %591 = vrot.lane.b32.xlu0 %v473, 84
        %v592 = vpop.permute.xlu0 %591
        %594 = vst.msk [vmem:[#allocation2 + $0xf] sm:$0x1] %vm501, %v592
        %595 = vrot.lane.b32.xlu0 %v490, 84
        %v596 = vpop.permute.xlu0 %595
        %598 = vst.msk [vmem:[%s507 + $0xf] sm:$0x1] %vm501, %v596
        %599 = vrot.lane.b32.xlu0 %v473, 68
        %v600 = vpop.permute.xlu0 %599
        %602 = vst.msk [vmem:[#allocation2 + $0x10] sm:$0x1] %vm501, %v600
        %603 = vrot.lane.b32.xlu0 %v490, 68
        %v604 = vpop.permute.xlu0 %603
        %606 = vst.msk [vmem:[%s507 + $0x10] sm:$0x1] %vm501, %v604
        %607 = vrot.lane.b32.xlu0 %v473, 52
        %v608 = vpop.permute.xlu0 %607
        %610 = vst.msk [vmem:[#allocation2 + $0x11] sm:$0x1] %vm501, %v608
        %611 = vrot.lane.b32.xlu0 %v490, 52
        %v612 = vpop.permute.xlu0 %611
        %614 = vst.msk [vmem:[%s507 + $0x11] sm:$0x1] %vm501, %v612
        %615 = vrot.lane.b32.xlu0 %v473, 36
        %v616 = vpop.permute.xlu0 %615
        %618 = vst.msk [vmem:[#allocation2 + $0x12] sm:$0x1] %vm501, %v616
        %619 = vrot.lane.b32.xlu0 %v490, 36
        %v620 = vpop.permute.xlu0 %619
        %622 = vst.msk [vmem:[%s507 + $0x12] sm:$0x1] %vm501, %v620
        %623 = vrot.lane.b32.xlu0 %v473, 20
        %v624 = vpop.permute.xlu0 %623
        %626 = vst.msk [vmem:[#allocation2 + $0x13] sm:$0x1] %vm501, %v624
        %627 = vrot.lane.b32.xlu0 %v490, 20
        %v628 = vpop.permute.xlu0 %627
        %630 = vst.msk [vmem:[%s507 + $0x13] sm:$0x1] %vm501, %v628
        %v631 = vld [vmem:[#allocation2] sm:$0xff]
        %v632 = vld [vmem:[#allocation2 + $0x8] sm:$0xff]
        %s633 = sld [smem:[#allocation10]]
        %v634 = vstv %s633
        %v635 = vmul.f32 %v631, %v634
        %v636 = vmul.f32 %v632, %v634
        %v637 = vadd.f32 %v635, 0.0
        %v638 = vadd.f32 %v636, 0.0
        %s639 = sld [smem:[#allocation10 + $0x1]]
        %v640 = vstv %s639
        %v641 = vmul.f32 %v631, %v640
        %v642 = vmul.f32 %v632, %v640
        %645 = vrot.lane.b32.xlu0 %v641, 127
        %v646 = vpop.permute.xlu0 %645
        %647 = vrot.lane.b32.xlu0 %v642, 127
        %v648 = vpop.permute.xlu0 %647
        %v651 = vadd.f32 %v637, %v646
        %v652 = vadd.f32 %v638, %v648
        %s653 = sld [smem:[#allocation10 + $0x2]]
        %v654 = vstv %s653
        %v655 = vmul.f32 %v631, %v654
        %v656 = vmul.f32 %v632, %v654
        %659 = vrot.lane.b32.xlu0 %v655, 126
        %v660 = vpop.permute.xlu0 %659
        %661 = vrot.lane.b32.xlu0 %v656, 126
        %v662 = vpop.permute.xlu0 %661
        %v665 = vadd.f32 %v651, %v660
        %v666 = vadd.f32 %v652, %v662
        %s667 = sld [smem:[#allocation10 + $0x3]]
        %v668 = vstv %s667
        %v669 = vmul.f32 %v631, %v668
        %v670 = vmul.f32 %v632, %v668
        %673 = vrot.lane.b32.xlu0 %v669, 125
        %v674 = vpop.permute.xlu0 %673
        %675 = vrot.lane.b32.xlu0 %v670, 125
        %v676 = vpop.permute.xlu0 %675
        %v679 = vadd.f32 %v665, %v674
        %v680 = vadd.f32 %v666, %v676
        %s681 = sld [smem:[#allocation10 + $0x4]]
        %v682 = vstv %s681
        %v683 = vmul.f32 %v631, %v682
        %v684 = vmul.f32 %v632, %v682
        %687 = vrot.lane.b32.xlu0 %v683, 124
        %v688 = vpop.permute.xlu0 %687
        %689 = vrot.lane.b32.xlu0 %v684, 124
        %v690 = vpop.permute.xlu0 %689
        %v693 = vadd.f32 %v679, %v688
        %v694 = vadd.f32 %v680, %v690
        %s695 = sld [smem:[#allocation10 + $0x5]]
        %v696 = vstv %s695
        %v697 = vmul.f32 %v631, %v696
        %v698 = vmul.f32 %v632, %v696
        %701 = vrot.lane.b32.xlu0 %v697, 123
        %v702 = vpop.permute.xlu0 %701
        %703 = vrot.lane.b32.xlu0 %v698, 123
        %v704 = vpop.permute.xlu0 %703
        %v707 = vadd.f32 %v693, %v702
        %v708 = vadd.f32 %v694, %v704
        %s709 = sld [smem:[#allocation10 + $0x6]]
        %v710 = vstv %s709
        %v711 = vmul.f32 %v631, %v710
        %v712 = vmul.f32 %v632, %v710
        %715 = vrot.lane.b32.xlu0 %v711, 122
        %v716 = vpop.permute.xlu0 %715
        %717 = vrot.lane.b32.xlu0 %v712, 122
        %v718 = vpop.permute.xlu0 %717
        %v721 = vadd.f32 %v707, %v716
        %v722 = vadd.f32 %v708, %v718
        %s723 = sld [smem:[#allocation10 + $0x7]]
        %v724 = vstv %s723
        %v725 = vmul.f32 %v631, %v724
        %v726 = vmul.f32 %v632, %v724
        %729 = vrot.lane.b32.xlu0 %v725, 121
        %v730 = vpop.permute.xlu0 %729
        %731 = vrot.lane.b32.xlu0 %v726, 121
        %v732 = vpop.permute.xlu0 %731
        %v735 = vadd.f32 %v721, %v730
        %v736 = vadd.f32 %v722, %v732
        %s737 = sld [smem:[#allocation10 + $0x8]]
        %v738 = vstv %s737
        %v739 = vmul.f32 %v631, %v738
        %v740 = vmul.f32 %v632, %v738
        %743 = vrot.lane.b32.xlu0 %v739, 120
        %v744 = vpop.permute.xlu0 %743
        %745 = vrot.lane.b32.xlu0 %v740, 120
        %v746 = vpop.permute.xlu0 %745
        %v749 = vadd.f32 %v735, %v744
        %v750 = vadd.f32 %v736, %v746
        %v751 = vld [vmem:[#allocation2 + $0x1] sm:$0xff]
        %v752 = vld [vmem:[#allocation2 + $0x9] sm:$0xff]
        %s753 = sld [smem:[#allocation10 + $0x9]]
        %v754 = vstv %s753
        %v755 = vmul.f32 %v751, %v754
        %v756 = vmul.f32 %v752, %v754
        %v757 = vadd.f32 %v749, %v755
        %v758 = vadd.f32 %v750, %v756
        %s759 = sld [smem:[#allocation10 + $0xa]]
        %v760 = vstv %s759
        %v761 = vmul.f32 %v751, %v760
        %v762 = vmul.f32 %v752, %v760
        %765 = vrot.lane.b32.xlu0 %v761, 127
        %v766 = vpop.permute.xlu0 %765
        %767 = vrot.lane.b32.xlu0 %v762, 127
        %v768 = vpop.permute.xlu0 %767
        %v771 = vadd.f32 %v757, %v766
        %v772 = vadd.f32 %v758, %v768
        %s773 = sld [smem:[#allocation10 + $0xb]]
        %v774 = vstv %s773
        %v775 = vmul.f32 %v751, %v774
        %v776 = vmul.f32 %v752, %v774
        %779 = vrot.lane.b32.xlu0 %v775, 126
        %v780 = vpop.permute.xlu0 %779
        %781 = vrot.lane.b32.xlu0 %v776, 126
        %v782 = vpop.permute.xlu0 %781
        %v785 = vadd.f32 %v771, %v780
        %v786 = vadd.f32 %v772, %v782
        %s787 = sld [smem:[#allocation10 + $0xc]]
        %v788 = vstv %s787
        %v789 = vmul.f32 %v751, %v788
        %v790 = vmul.f32 %v752, %v788
        %793 = vrot.lane.b32.xlu0 %v789, 125
        %v794 = vpop.permute.xlu0 %793
        %795 = vrot.lane.b32.xlu0 %v790, 125
        %v796 = vpop.permute.xlu0 %795
        %v799 = vadd.f32 %v785, %v794
        %v800 = vadd.f32 %v786, %v796
        %s801 = sld [smem:[#allocation10 + $0xd]]
        %v802 = vstv %s801
        %v803 = vmul.f32 %v751, %v802
        %v804 = vmul.f32 %v752, %v802
        %807 = vrot.lane.b32.xlu0 %v803, 124
        %v808 = vpop.permute.xlu0 %807
        %809 = vrot.lane.b32.xlu0 %v804, 124
        %v810 = vpop.permute.xlu0 %809
        %v813 = vadd.f32 %v799, %v808
        %v814 = vadd.f32 %v800, %v810
        %s815 = sld [smem:[#allocation10 + $0xe]]
        %v816 = vstv %s815
        %v817 = vmul.f32 %v751, %v816
        %v818 = vmul.f32 %v752, %v816
        %821 = vrot.lane.b32.xlu0 %v817, 123
        %v822 = vpop.permute.xlu0 %821
        %823 = vrot.lane.b32.xlu0 %v818, 123
        %v824 = vpop.permute.xlu0 %823
        %v827 = vadd.f32 %v813, %v822
        %v828 = vadd.f32 %v814, %v824
        %s829 = sld [smem:[#allocation10 + $0xf]]
        %v830 = vstv %s829
        %v831 = vmul.f32 %v751, %v830
        %v832 = vmul.f32 %v752, %v830
        %835 = vrot.lane.b32.xlu0 %v831, 122
        %v836 = vpop.permute.xlu0 %835
        %837 = vrot.lane.b32.xlu0 %v832, 122
        %v838 = vpop.permute.xlu0 %837
        %v841 = vadd.f32 %v827, %v836
        %v842 = vadd.f32 %v828, %v838
        %s843 = sld [smem:[#allocation10 + $0x10]]
        %v844 = vstv %s843
        %v845 = vmul.f32 %v751, %v844
        %v846 = vmul.f32 %v752, %v844
        %849 = vrot.lane.b32.xlu0 %v845, 121
        %v850 = vpop.permute.xlu0 %849
        %851 = vrot.lane.b32.xlu0 %v846, 121
        %v852 = vpop.permute.xlu0 %851
        %v855 = vadd.f32 %v841, %v850
        %v856 = vadd.f32 %v842, %v852
        %s857 = sld [smem:[#allocation10 + $0x11]]
        %v858 = vstv %s857
        %v859 = vmul.f32 %v751, %v858
        %v860 = vmul.f32 %v752, %v858
        %863 = vrot.lane.b32.xlu0 %v859, 120
        %v864 = vpop.permute.xlu0 %863
        %865 = vrot.lane.b32.xlu0 %v860, 120
        %v866 = vpop.permute.xlu0 %865
        %v869 = vadd.f32 %v855, %v864
        %v870 = vadd.f32 %v856, %v866
        %v871 = vld [vmem:[#allocation2 + $0x2] sm:$0xff]
        %v872 = vld [vmem:[#allocation2 + $0xa] sm:$0xff]
        %s873 = sld [smem:[#allocation10 + $0x12]]
        %v874 = vstv %s873
        %v875 = vmul.f32 %v871, %v874
        %v876 = vmul.f32 %v872, %v874
        %v877 = vadd.f32 %v869, %v875
        %v878 = vadd.f32 %v870, %v876
        %s879 = sld [smem:[#allocation10 + $0x13]]
        %v880 = vstv %s879
        %v881 = vmul.f32 %v871, %v880
        %v882 = vmul.f32 %v872, %v880
        %885 = vrot.lane.b32.xlu0 %v881, 127
        %v886 = vpop.permute.xlu0 %885
        %887 = vrot.lane.b32.xlu0 %v882, 127
        %v888 = vpop.permute.xlu0 %887
        %v891 = vadd.f32 %v877, %v886
        %v892 = vadd.f32 %v878, %v888
        %s893 = sld [smem:[#allocation10 + $0x14]]
        %v894 = vstv %s893
        %v895 = vmul.f32 %v871, %v894
        %v896 = vmul.f32 %v872, %v894
        %899 = vrot.lane.b32.xlu0 %v895, 126
        %v900 = vpop.permute.xlu0 %899
        %901 = vrot.lane.b32.xlu0 %v896, 126
        %v902 = vpop.permute.xlu0 %901
        %v905 = vadd.f32 %v891, %v900
        %v906 = vadd.f32 %v892, %v902
        %s907 = sld [smem:[#allocation10 + $0x15]]
        %v908 = vstv %s907
        %v909 = vmul.f32 %v871, %v908
        %v910 = vmul.f32 %v872, %v908
        %913 = vrot.lane.b32.xlu0 %v909, 125
        %v914 = vpop.permute.xlu0 %913
        %915 = vrot.lane.b32.xlu0 %v910, 125
        %v916 = vpop.permute.xlu0 %915
        %v919 = vadd.f32 %v905, %v914
        %v920 = vadd.f32 %v906, %v916
        %s921 = sld [smem:[#allocation10 + $0x16]]
        %v922 = vstv %s921
        %v923 = vmul.f32 %v871, %v922
        %v924 = vmul.f32 %v872, %v922
        %927 = vrot.lane.b32.xlu0 %v923, 124
        %v928 = vpop.permute.xlu0 %927
        %929 = vrot.lane.b32.xlu0 %v924, 124
        %v930 = vpop.permute.xlu0 %929
        %v933 = vadd.f32 %v919, %v928
        %v934 = vadd.f32 %v920, %v930
        %s935 = sld [smem:[#allocation10 + $0x17]]
        %v936 = vstv %s935
        %v937 = vmul.f32 %v871, %v936
        %v938 = vmul.f32 %v872, %v936
        %941 = vrot.lane.b32.xlu0 %v937, 123
        %v942 = vpop.permute.xlu0 %941
        %943 = vrot.lane.b32.xlu0 %v938, 123
        %v944 = vpop.permute.xlu0 %943
        %v947 = vadd.f32 %v933, %v942
        %v948 = vadd.f32 %v934, %v944
        %s949 = sld [smem:[#allocation10 + $0x18]]
        %v950 = vstv %s949
        %v951 = vmul.f32 %v871, %v950
        %v952 = vmul.f32 %v872, %v950
        %955 = vrot.lane.b32.xlu0 %v951, 122
        %v956 = vpop.permute.xlu0 %955
        %957 = vrot.lane.b32.xlu0 %v952, 122
        %v958 = vpop.permute.xlu0 %957
        %v961 = vadd.f32 %v947, %v956
        %v962 = vadd.f32 %v948, %v958
        %s963 = sld [smem:[#allocation10 + $0x19]]
        %v964 = vstv %s963
        %v965 = vmul.f32 %v871, %v964
        %v966 = vmul.f32 %v872, %v964
        %969 = vrot.lane.b32.xlu0 %v965, 121
        %v970 = vpop.permute.xlu0 %969
        %971 = vrot.lane.b32.xlu0 %v966, 121
        %v972 = vpop.permute.xlu0 %971
        %v975 = vadd.f32 %v961, %v970
        %v976 = vadd.f32 %v962, %v972
        %s977 = sld [smem:[#allocation10 + $0x1a]]
        %v978 = vstv %s977
        %v979 = vmul.f32 %v871, %v978
        %v980 = vmul.f32 %v872, %v978
        %983 = vrot.lane.b32.xlu0 %v979, 120
        %v984 = vpop.permute.xlu0 %983
        %985 = vrot.lane.b32.xlu0 %v980, 120
        %v986 = vpop.permute.xlu0 %985
        %v989 = vadd.f32 %v975, %v984
        %v990 = vadd.f32 %v976, %v986
        %v991 = vld [vmem:[#allocation2 + $0x3] sm:$0xff]
        %v992 = vld [vmem:[#allocation2 + $0xb] sm:$0xff]
        %s993 = sld [smem:[#allocation10 + $0x1b]]
        %v994 = vstv %s993
        %v995 = vmul.f32 %v991, %v994
        %v996 = vmul.f32 %v992, %v994
        %v997 = vadd.f32 %v989, %v995
        %v998 = vadd.f32 %v990, %v996
        %s999 = sld [smem:[#allocation10 + $0x1c]]
        %v1000 = vstv %s999
        %v1001 = vmul.f32 %v991, %v1000
        %v1002 = vmul.f32 %v992, %v1000
        %1005 = vrot.lane.b32.xlu0 %v1001, 127
        %v1006 = vpop.permute.xlu0 %1005
        %1007 = vrot.lane.b32.xlu0 %v1002, 127
        %v1008 = vpop.permute.xlu0 %1007
        %v1011 = vadd.f32 %v997, %v1006
        %v1012 = vadd.f32 %v998, %v1008
        %s1013 = sld [smem:[#allocation10 + $0x1d]]
        %v1014 = vstv %s1013
        %v1015 = vmul.f32 %v991, %v1014
        %v1016 = vmul.f32 %v992, %v1014
        %1019 = vrot.lane.b32.xlu0 %v1015, 126
        %v1020 = vpop.permute.xlu0 %1019
        %1021 = vrot.lane.b32.xlu0 %v1016, 126
        %v1022 = vpop.permute.xlu0 %1021
        %v1025 = vadd.f32 %v1011, %v1020
        %v1026 = vadd.f32 %v1012, %v1022
        %s1027 = sld [smem:[#allocation10 + $0x1e]]
        %v1028 = vstv %s1027
        %v1029 = vmul.f32 %v991, %v1028
        %v1030 = vmul.f32 %v992, %v1028
        %1033 = vrot.lane.b32.xlu0 %v1029, 125
        %v1034 = vpop.permute.xlu0 %1033
        %1035 = vrot.lane.b32.xlu0 %v1030, 125
        %v1036 = vpop.permute.xlu0 %1035
        %v1039 = vadd.f32 %v1025, %v1034
        %v1040 = vadd.f32 %v1026, %v1036
        %s1041 = sld [smem:[#allocation10 + $0x1f]]
        %v1042 = vstv %s1041
        %v1043 = vmul.f32 %v991, %v1042
        %v1044 = vmul.f32 %v992, %v1042
        %1047 = vrot.lane.b32.xlu0 %v1043, 124
        %v1048 = vpop.permute.xlu0 %1047
        %1049 = vrot.lane.b32.xlu0 %v1044, 124
        %v1050 = vpop.permute.xlu0 %1049
        %v1053 = vadd.f32 %v1039, %v1048
        %v1054 = vadd.f32 %v1040, %v1050
        %s1055 = sld [smem:[#allocation10 + $0x20]]
        %v1056 = vstv %s1055
        %v1057 = vmul.f32 %v991, %v1056
        %v1058 = vmul.f32 %v992, %v1056
        %1061 = vrot.lane.b32.xlu0 %v1057, 123
        %v1062 = vpop.permute.xlu0 %1061
        %1063 = vrot.lane.b32.xlu0 %v1058, 123
        %v1064 = vpop.permute.xlu0 %1063
        %v1067 = vadd.f32 %v1053, %v1062
        %v1068 = vadd.f32 %v1054, %v1064
        %s1069 = sld [smem:[#allocation10 + $0x21]]
        %v1070 = vstv %s1069
        %v1071 = vmul.f32 %v991, %v1070
        %v1072 = vmul.f32 %v992, %v1070
        %1075 = vrot.lane.b32.xlu0 %v1071, 122
        %v1076 = vpop.permute.xlu0 %1075
        %1077 = vrot.lane.b32.xlu0 %v1072, 122
        %v1078 = vpop.permute.xlu0 %1077
        %v1081 = vadd.f32 %v1067, %v1076
        %v1082 = vadd.f32 %v1068, %v1078
        %s1083 = sld [smem:[#allocation10 + $0x22]]
        %v1084 = vstv %s1083
        %v1085 = vmul.f32 %v991, %v1084
        %v1086 = vmul.f32 %v992, %v1084
        %1089 = vrot.lane.b32.xlu0 %v1085, 121
        %v1090 = vpop.permute.xlu0 %1089
        %1091 = vrot.lane.b32.xlu0 %v1086, 121
        %v1092 = vpop.permute.xlu0 %1091
        %v1095 = vadd.f32 %v1081, %v1090
        %v1096 = vadd.f32 %v1082, %v1092
        %s1097 = sld [smem:[#allocation10 + $0x23]]
        %v1098 = vstv %s1097
        %v1099 = vmul.f32 %v991, %v1098
        %v1100 = vmul.f32 %v992, %v1098
        %1103 = vrot.lane.b32.xlu0 %v1099, 120
        %v1104 = vpop.permute.xlu0 %1103
        %1105 = vrot.lane.b32.xlu0 %v1100, 120
        %v1106 = vpop.permute.xlu0 %1105
        %v1109 = vadd.f32 %v1095, %v1104
        %v1110 = vadd.f32 %v1096, %v1106
        %v1111 = vld [vmem:[#allocation2 + $0x4] sm:$0xff]
        %v1112 = vld [vmem:[#allocation2 + $0xc] sm:$0xff]
        %s1113 = sld [smem:[#allocation10 + $0x24]]
        %v1114 = vstv %s1113
        %v1115 = vmul.f32 %v1111, %v1114
        %v1116 = vmul.f32 %v1112, %v1114
        %v1117 = vadd.f32 %v1109, %v1115
        %v1118 = vadd.f32 %v1110, %v1116
        %s1119 = sld [smem:[#allocation10 + $0x25]]
        %v1120 = vstv %s1119
        %v1121 = vmul.f32 %v1111, %v1120
        %v1122 = vmul.f32 %v1112, %v1120
        %1125 = vrot.lane.b32.xlu0 %v1121, 127
        %v1126 = vpop.permute.xlu0 %1125
        %1127 = vrot.lane.b32.xlu0 %v1122, 127
        %v1128 = vpop.permute.xlu0 %1127
        %v1131 = vadd.f32 %v1117, %v1126
        %v1132 = vadd.f32 %v1118, %v1128
        %s1133 = sld [smem:[#allocation10 + $0x26]]
        %v1134 = vstv %s1133
        %v1135 = vmul.f32 %v1111, %v1134
        %v1136 = vmul.f32 %v1112, %v1134
        %1139 = vrot.lane.b32.xlu0 %v1135, 126
        %v1140 = vpop.permute.xlu0 %1139
        %1141 = vrot.lane.b32.xlu0 %v1136, 126
        %v1142 = vpop.permute.xlu0 %1141
        %v1145 = vadd.f32 %v1131, %v1140
        %v1146 = vadd.f32 %v1132, %v1142
        %s1147 = sld [smem:[#allocation10 + $0x27]]
        %v1148 = vstv %s1147
        %v1149 = vmul.f32 %v1111, %v1148
        %v1150 = vmul.f32 %v1112, %v1148
        %1153 = vrot.lane.b32.xlu0 %v1149, 125
        %v1154 = vpop.permute.xlu0 %1153
        %1155 = vrot.lane.b32.xlu0 %v1150, 125
        %v1156 = vpop.permute.xlu0 %1155
        %v1159 = vadd.f32 %v1145, %v1154
        %v1160 = vadd.f32 %v1146, %v1156
        %s1161 = sld [smem:[#allocation10 + $0x28]]
        %v1162 = vstv %s1161
        %v1163 = vmul.f32 %v1111, %v1162
        %v1164 = vmul.f32 %v1112, %v1162
        %1167 = vrot.lane.b32.xlu0 %v1163, 124
        %v1168 = vpop.permute.xlu0 %1167
        %1169 = vrot.lane.b32.xlu0 %v1164, 124
        %v1170 = vpop.permute.xlu0 %1169
        %v1173 = vadd.f32 %v1159, %v1168
        %v1174 = vadd.f32 %v1160, %v1170
        %s1175 = sld [smem:[#allocation10 + $0x29]]
        %v1176 = vstv %s1175
        %v1177 = vmul.f32 %v1111, %v1176
        %v1178 = vmul.f32 %v1112, %v1176
        %1181 = vrot.lane.b32.xlu0 %v1177, 123
        %v1182 = vpop.permute.xlu0 %1181
        %1183 = vrot.lane.b32.xlu0 %v1178, 123
        %v1184 = vpop.permute.xlu0 %1183
        %v1187 = vadd.f32 %v1173, %v1182
        %v1188 = vadd.f32 %v1174, %v1184
        %s1189 = sld [smem:[#allocation10 + $0x2a]]
        %v1190 = vstv %s1189
        %v1191 = vmul.f32 %v1111, %v1190
        %v1192 = vmul.f32 %v1112, %v1190
        %1195 = vrot.lane.b32.xlu0 %v1191, 122
        %v1196 = vpop.permute.xlu0 %1195
        %1197 = vrot.lane.b32.xlu0 %v1192, 122
        %v1198 = vpop.permute.xlu0 %1197
        %v1201 = vadd.f32 %v1187, %v1196
        %v1202 = vadd.f32 %v1188, %v1198
        %s1203 = sld [smem:[#allocation10 + $0x2b]]
        %v1204 = vstv %s1203
        %v1205 = vmul.f32 %v1111, %v1204
        %v1206 = vmul.f32 %v1112, %v1204
        %1209 = vrot.lane.b32.xlu0 %v1205, 121
        %v1210 = vpop.permute.xlu0 %1209
        %1211 = vrot.lane.b32.xlu0 %v1206, 121
        %v1212 = vpop.permute.xlu0 %1211
        %v1215 = vadd.f32 %v1201, %v1210
        %v1216 = vadd.f32 %v1202, %v1212
        %s1217 = sld [smem:[#allocation10 + $0x2c]]
        %v1218 = vstv %s1217
        %v1219 = vmul.f32 %v1111, %v1218
        %v1220 = vmul.f32 %v1112, %v1218
        %1223 = vrot.lane.b32.xlu0 %v1219, 120
        %v1224 = vpop.permute.xlu0 %1223
        %1225 = vrot.lane.b32.xlu0 %v1220, 120
        %v1226 = vpop.permute.xlu0 %1225
        %v1229 = vadd.f32 %v1215, %v1224
        %v1230 = vadd.f32 %v1216, %v1226
        %v1231 = vld [vmem:[#allocation2 + $0x5] sm:$0xff]
        %v1232 = vld [vmem:[#allocation2 + $0xd] sm:$0xff]
        %s1233 = sld [smem:[#allocation10 + $0x2d]]
        %v1234 = vstv %s1233
        %v1235 = vmul.f32 %v1231, %v1234
        %v1236 = vmul.f32 %v1232, %v1234
        %v1237 = vadd.f32 %v1229, %v1235
        %v1238 = vadd.f32 %v1230, %v1236
        %s1239 = sld [smem:[#allocation10 + $0x2e]]
        %v1240 = vstv %s1239
        %v1241 = vmul.f32 %v1231, %v1240
        %v1242 = vmul.f32 %v1232, %v1240
        %1245 = vrot.lane.b32.xlu0 %v1241, 127
        %v1246 = vpop.permute.xlu0 %1245
        %1247 = vrot.lane.b32.xlu0 %v1242, 127
        %v1248 = vpop.permute.xlu0 %1247
        %v1251 = vadd.f32 %v1237, %v1246
        %v1252 = vadd.f32 %v1238, %v1248
        %s1253 = sld [smem:[#allocation10 + $0x2f]]
        %v1254 = vstv %s1253
        %v1255 = vmul.f32 %v1231, %v1254
        %v1256 = vmul.f32 %v1232, %v1254
        %1259 = vrot.lane.b32.xlu0 %v1255, 126
        %v1260 = vpop.permute.xlu0 %1259
        %1261 = vrot.lane.b32.xlu0 %v1256, 126
        %v1262 = vpop.permute.xlu0 %1261
        %v1265 = vadd.f32 %v1251, %v1260
        %v1266 = vadd.f32 %v1252, %v1262
        %s1267 = sld [smem:[#allocation10 + $0x30]]
        %v1268 = vstv %s1267
        %v1269 = vmul.f32 %v1231, %v1268
        %v1270 = vmul.f32 %v1232, %v1268
        %1273 = vrot.lane.b32.xlu0 %v1269, 125
        %v1274 = vpop.permute.xlu0 %1273
        %1275 = vrot.lane.b32.xlu0 %v1270, 125
        %v1276 = vpop.permute.xlu0 %1275
        %v1279 = vadd.f32 %v1265, %v1274
        %v1280 = vadd.f32 %v1266, %v1276
        %s1281 = sld [smem:[#allocation10 + $0x31]]
        %v1282 = vstv %s1281
        %v1283 = vmul.f32 %v1231, %v1282
        %v1284 = vmul.f32 %v1232, %v1282
        %1287 = vrot.lane.b32.xlu0 %v1283, 124
        %v1288 = vpop.permute.xlu0 %1287
        %1289 = vrot.lane.b32.xlu0 %v1284, 124
        %v1290 = vpop.permute.xlu0 %1289
        %v1293 = vadd.f32 %v1279, %v1288
        %v1294 = vadd.f32 %v1280, %v1290
        %s1295 = sld [smem:[#allocation10 + $0x32]]
        %v1296 = vstv %s1295
        %v1297 = vmul.f32 %v1231, %v1296
        %v1298 = vmul.f32 %v1232, %v1296
        %1301 = vrot.lane.b32.xlu0 %v1297, 123
        %v1302 = vpop.permute.xlu0 %1301
        %1303 = vrot.lane.b32.xlu0 %v1298, 123
        %v1304 = vpop.permute.xlu0 %1303
        %v1307 = vadd.f32 %v1293, %v1302
        %v1308 = vadd.f32 %v1294, %v1304
        %s1309 = sld [smem:[#allocation10 + $0x33]]
        %v1310 = vstv %s1309
        %v1311 = vmul.f32 %v1231, %v1310
        %v1312 = vmul.f32 %v1232, %v1310
        %1315 = vrot.lane.b32.xlu0 %v1311, 122
        %v1316 = vpop.permute.xlu0 %1315
        %1317 = vrot.lane.b32.xlu0 %v1312, 122
        %v1318 = vpop.permute.xlu0 %1317
        %v1321 = vadd.f32 %v1307, %v1316
        %v1322 = vadd.f32 %v1308, %v1318
        %s1323 = sld [smem:[#allocation10 + $0x34]]
        %v1324 = vstv %s1323
        %v1325 = vmul.f32 %v1231, %v1324
        %v1326 = vmul.f32 %v1232, %v1324
        %1329 = vrot.lane.b32.xlu0 %v1325, 121
        %v1330 = vpop.permute.xlu0 %1329
        %1331 = vrot.lane.b32.xlu0 %v1326, 121
        %v1332 = vpop.permute.xlu0 %1331
        %v1335 = vadd.f32 %v1321, %v1330
        %v1336 = vadd.f32 %v1322, %v1332
        %s1337 = sld [smem:[#allocation10 + $0x35]]
        %v1338 = vstv %s1337
        %v1339 = vmul.f32 %v1231, %v1338
        %v1340 = vmul.f32 %v1232, %v1338
        %1343 = vrot.lane.b32.xlu0 %v1339, 120
        %v1344 = vpop.permute.xlu0 %1343
        %1345 = vrot.lane.b32.xlu0 %v1340, 120
        %v1346 = vpop.permute.xlu0 %1345
        %v1349 = vadd.f32 %v1335, %v1344
        %v1350 = vadd.f32 %v1336, %v1346
        %v1351 = vld [vmem:[#allocation2 + $0x6] sm:$0xff]
        %v1352 = vld [vmem:[#allocation2 + $0xe] sm:$0xff]
        %s1353 = sld [smem:[#allocation10 + $0x36]]
        %v1354 = vstv %s1353
        %v1355 = vmul.f32 %v1351, %v1354
        %v1356 = vmul.f32 %v1352, %v1354
        %v1357 = vadd.f32 %v1349, %v1355
        %v1358 = vadd.f32 %v1350, %v1356
        %s1359 = sld [smem:[#allocation10 + $0x37]]
        %v1360 = vstv %s1359
        %v1361 = vmul.f32 %v1351, %v1360
        %v1362 = vmul.f32 %v1352, %v1360
        %1365 = vrot.lane.b32.xlu0 %v1361, 127
        %v1366 = vpop.permute.xlu0 %1365
        %1367 = vrot.lane.b32.xlu0 %v1362, 127
        %v1368 = vpop.permute.xlu0 %1367
        %v1371 = vadd.f32 %v1357, %v1366
        %v1372 = vadd.f32 %v1358, %v1368
        %s1373 = sld [smem:[#allocation10 + $0x38]]
        %v1374 = vstv %s1373
        %v1375 = vmul.f32 %v1351, %v1374
        %v1376 = vmul.f32 %v1352, %v1374
        %1379 = vrot.lane.b32.xlu0 %v1375, 126
        %v1380 = vpop.permute.xlu0 %1379
        %1381 = vrot.lane.b32.xlu0 %v1376, 126
        %v1382 = vpop.permute.xlu0 %1381
        %v1385 = vadd.f32 %v1371, %v1380
        %v1386 = vadd.f32 %v1372, %v1382
        %s1387 = sld [smem:[#allocation10 + $0x39]]
        %v1388 = vstv %s1387
        %v1389 = vmul.f32 %v1351, %v1388
        %v1390 = vmul.f32 %v1352, %v1388
        %1393 = vrot.lane.b32.xlu0 %v1389, 125
        %v1394 = vpop.permute.xlu0 %1393
        %1395 = vrot.lane.b32.xlu0 %v1390, 125
        %v1396 = vpop.permute.xlu0 %1395
        %v1399 = vadd.f32 %v1385, %v1394
        %v1400 = vadd.f32 %v1386, %v1396
        %s1401 = sld [smem:[#allocation10 + $0x3a]]
        %v1402 = vstv %s1401
        %v1403 = vmul.f32 %v1351, %v1402
        %v1404 = vmul.f32 %v1352, %v1402
        %1407 = vrot.lane.b32.xlu0 %v1403, 124
        %v1408 = vpop.permute.xlu0 %1407
        %1409 = vrot.lane.b32.xlu0 %v1404, 124
        %v1410 = vpop.permute.xlu0 %1409
        %v1413 = vadd.f32 %v1399, %v1408
        %v1414 = vadd.f32 %v1400, %v1410
        %s1415 = sld [smem:[#allocation10 + $0x3b]]
        %v1416 = vstv %s1415
        %v1417 = vmul.f32 %v1351, %v1416
        %v1418 = vmul.f32 %v1352, %v1416
        %1421 = vrot.lane.b32.xlu0 %v1417, 123
        %v1422 = vpop.permute.xlu0 %1421
        %1423 = vrot.lane.b32.xlu0 %v1418, 123
        %v1424 = vpop.permute.xlu0 %1423
        %v1427 = vadd.f32 %v1413, %v1422
        %v1428 = vadd.f32 %v1414, %v1424
        %s1429 = sld [smem:[#allocation10 + $0x3c]]
        %v1430 = vstv %s1429
        %v1431 = vmul.f32 %v1351, %v1430
        %v1432 = vmul.f32 %v1352, %v1430
        %1435 = vrot.lane.b32.xlu0 %v1431, 122
        %v1436 = vpop.permute.xlu0 %1435
        %1437 = vrot.lane.b32.xlu0 %v1432, 122
        %v1438 = vpop.permute.xlu0 %1437
        %v1441 = vadd.f32 %v1427, %v1436
        %v1442 = vadd.f32 %v1428, %v1438
        %s1443 = sld [smem:[#allocation10 + $0x3d]]
        %v1444 = vstv %s1443
        %v1445 = vmul.f32 %v1351, %v1444
        %v1446 = vmul.f32 %v1352, %v1444
        %1449 = vrot.lane.b32.xlu0 %v1445, 121
        %v1450 = vpop.permute.xlu0 %1449
        %1451 = vrot.lane.b32.xlu0 %v1446, 121
        %v1452 = vpop.permute.xlu0 %1451
        %v1455 = vadd.f32 %v1441, %v1450
        %v1456 = vadd.f32 %v1442, %v1452
        %s1457 = sld [smem:[#allocation10 + $0x3e]]
        %v1458 = vstv %s1457
        %v1459 = vmul.f32 %v1351, %v1458
        %v1460 = vmul.f32 %v1352, %v1458
        %1463 = vrot.lane.b32.xlu0 %v1459, 120
        %v1464 = vpop.permute.xlu0 %1463
        %1465 = vrot.lane.b32.xlu0 %v1460, 120
        %v1466 = vpop.permute.xlu0 %1465
        %v1469 = vadd.f32 %v1455, %v1464
        %v1470 = vadd.f32 %v1456, %v1466
        %v1471 = vld [vmem:[#allocation2 + $0x7] sm:$0xff]
        %v1472 = vld [vmem:[#allocation2 + $0xf] sm:$0xff]
        %s1473 = sld [smem:[#allocation10 + $0x3f]]
        %v1474 = vstv %s1473
        %v1475 = vmul.f32 %v1471, %v1474
        %v1476 = vmul.f32 %v1472, %v1474
        %v1477 = vadd.f32 %v1469, %v1475
        %v1478 = vadd.f32 %v1470, %v1476
        %s1479 = sld [smem:[#allocation10 + $0x40]]
        %v1480 = vstv %s1479
        %v1481 = vmul.f32 %v1471, %v1480
        %v1482 = vmul.f32 %v1472, %v1480
        %1485 = vrot.lane.b32.xlu0 %v1481, 127
        %v1486 = vpop.permute.xlu0 %1485
        %1487 = vrot.lane.b32.xlu0 %v1482, 127
        %v1488 = vpop.permute.xlu0 %1487
        %v1491 = vadd.f32 %v1477, %v1486
        %v1492 = vadd.f32 %v1478, %v1488
        %s1493 = sld [smem:[#allocation10 + $0x41]]
        %v1494 = vstv %s1493
        %v1495 = vmul.f32 %v1471, %v1494
        %v1496 = vmul.f32 %v1472, %v1494
        %1499 = vrot.lane.b32.xlu0 %v1495, 126
        %v1500 = vpop.permute.xlu0 %1499
        %1501 = vrot.lane.b32.xlu0 %v1496, 126
        %v1502 = vpop.permute.xlu0 %1501
        %v1505 = vadd.f32 %v1491, %v1500
        %v1506 = vadd.f32 %v1492, %v1502
        %s1507 = sld [smem:[#allocation10 + $0x42]]
        %v1508 = vstv %s1507
        %v1509 = vmul.f32 %v1471, %v1508
        %v1510 = vmul.f32 %v1472, %v1508
        %1513 = vrot.lane.b32.xlu0 %v1509, 125
        %v1514 = vpop.permute.xlu0 %1513
        %1515 = vrot.lane.b32.xlu0 %v1510, 125
        %v1516 = vpop.permute.xlu0 %1515
        %v1519 = vadd.f32 %v1505, %v1514
        %v1520 = vadd.f32 %v1506, %v1516
        %s1521 = sld [smem:[#allocation10 + $0x43]]
        %v1522 = vstv %s1521
        %v1523 = vmul.f32 %v1471, %v1522
        %v1524 = vmul.f32 %v1472, %v1522
        %1527 = vrot.lane.b32.xlu0 %v1523, 124
        %v1528 = vpop.permute.xlu0 %1527
        %1529 = vrot.lane.b32.xlu0 %v1524, 124
        %v1530 = vpop.permute.xlu0 %1529
        %v1533 = vadd.f32 %v1519, %v1528
        %v1534 = vadd.f32 %v1520, %v1530
        %s1535 = sld [smem:[#allocation10 + $0x44]]
        %v1536 = vstv %s1535
        %v1537 = vmul.f32 %v1471, %v1536
        %v1538 = vmul.f32 %v1472, %v1536
        %1541 = vrot.lane.b32.xlu0 %v1537, 123
        %v1542 = vpop.permute.xlu0 %1541
        %1543 = vrot.lane.b32.xlu0 %v1538, 123
        %v1544 = vpop.permute.xlu0 %1543
        %v1547 = vadd.f32 %v1533, %v1542
        %v1548 = vadd.f32 %v1534, %v1544
        %s1549 = sld [smem:[#allocation10 + $0x45]]
        %v1550 = vstv %s1549
        %v1551 = vmul.f32 %v1471, %v1550
        %v1552 = vmul.f32 %v1472, %v1550
        %1555 = vrot.lane.b32.xlu0 %v1551, 122
        %v1556 = vpop.permute.xlu0 %1555
        %1557 = vrot.lane.b32.xlu0 %v1552, 122
        %v1558 = vpop.permute.xlu0 %1557
        %v1561 = vadd.f32 %v1547, %v1556
        %v1562 = vadd.f32 %v1548, %v1558
        %s1563 = sld [smem:[#allocation10 + $0x46]]
        %v1564 = vstv %s1563
        %v1565 = vmul.f32 %v1471, %v1564
        %v1566 = vmul.f32 %v1472, %v1564
        %1569 = vrot.lane.b32.xlu0 %v1565, 121
        %v1570 = vpop.permute.xlu0 %1569
        %1571 = vrot.lane.b32.xlu0 %v1566, 121
        %v1572 = vpop.permute.xlu0 %1571
        %v1575 = vadd.f32 %v1561, %v1570
        %v1576 = vadd.f32 %v1562, %v1572
        %s1577 = sld [smem:[#allocation10 + $0x47]]
        %v1578 = vstv %s1577
        %v1579 = vmul.f32 %v1471, %v1578
        %v1580 = vmul.f32 %v1472, %v1578
        %1583 = vrot.lane.b32.xlu0 %v1579, 120
        %v1584 = vpop.permute.xlu0 %1583
        %1585 = vrot.lane.b32.xlu0 %v1580, 120
        %v1586 = vpop.permute.xlu0 %1585
        %v1589 = vadd.f32 %v1575, %v1584
        %v1590 = vadd.f32 %v1576, %v1586
        %v1591 = vld [vmem:[#allocation2 + $0x8] sm:$0xff]
        %v1592 = vld [vmem:[#allocation2 + $0x10] sm:$0xff]
        %s1593 = sld [smem:[#allocation10 + $0x48]]
        %v1594 = vstv %s1593
        %v1595 = vmul.f32 %v1591, %v1594
        %v1596 = vmul.f32 %v1592, %v1594
        %v1597 = vadd.f32 %v1589, %v1595
        %v1598 = vadd.f32 %v1590, %v1596
        %s1599 = sld [smem:[#allocation10 + $0x49]]
        %v1600 = vstv %s1599
        %v1601 = vmul.f32 %v1591, %v1600
        %v1602 = vmul.f32 %v1592, %v1600
        %1605 = vrot.lane.b32.xlu0 %v1601, 127
        %v1606 = vpop.permute.xlu0 %1605
        %1607 = vrot.lane.b32.xlu0 %v1602, 127
        %v1608 = vpop.permute.xlu0 %1607
        %v1611 = vadd.f32 %v1597, %v1606
        %v1612 = vadd.f32 %v1598, %v1608
        %s1613 = sld [smem:[#allocation10 + $0x4a]]
        %v1614 = vstv %s1613
        %v1615 = vmul.f32 %v1591, %v1614
        %v1616 = vmul.f32 %v1592, %v1614
        %1619 = vrot.lane.b32.xlu0 %v1615, 126
        %v1620 = vpop.permute.xlu0 %1619
        %1621 = vrot.lane.b32.xlu0 %v1616, 126
        %v1622 = vpop.permute.xlu0 %1621
        %v1625 = vadd.f32 %v1611, %v1620
        %v1626 = vadd.f32 %v1612, %v1622
        %s1627 = sld [smem:[#allocation10 + $0x4b]]
        %v1628 = vstv %s1627
        %v1629 = vmul.f32 %v1591, %v1628
        %v1630 = vmul.f32 %v1592, %v1628
        %1633 = vrot.lane.b32.xlu0 %v1629, 125
        %v1634 = vpop.permute.xlu0 %1633
        %1635 = vrot.lane.b32.xlu0 %v1630, 125
        %v1636 = vpop.permute.xlu0 %1635
        %v1639 = vadd.f32 %v1625, %v1634
        %v1640 = vadd.f32 %v1626, %v1636
        %s1641 = sld [smem:[#allocation10 + $0x4c]]
        %v1642 = vstv %s1641
        %v1643 = vmul.f32 %v1591, %v1642
        %v1644 = vmul.f32 %v1592, %v1642
        %1647 = vrot.lane.b32.xlu0 %v1643, 124
        %v1648 = vpop.permute.xlu0 %1647
        %1649 = vrot.lane.b32.xlu0 %v1644, 124
        %v1650 = vpop.permute.xlu0 %1649
        %v1653 = vadd.f32 %v1639, %v1648
        %v1654 = vadd.f32 %v1640, %v1650
        %s1655 = sld [smem:[#allocation10 + $0x4d]]
        %v1656 = vstv %s1655
        %v1657 = vmul.f32 %v1591, %v1656
        %v1658 = vmul.f32 %v1592, %v1656
        %1661 = vrot.lane.b32.xlu0 %v1657, 123
        %v1662 = vpop.permute.xlu0 %1661
        %1663 = vrot.lane.b32.xlu0 %v1658, 123
        %v1664 = vpop.permute.xlu0 %1663
        %v1667 = vadd.f32 %v1653, %v1662
        %v1668 = vadd.f32 %v1654, %v1664
        %s1669 = sld [smem:[#allocation10 + $0x4e]]
        %v1670 = vstv %s1669
        %v1671 = vmul.f32 %v1591, %v1670
        %v1672 = vmul.f32 %v1592, %v1670
        %1675 = vrot.lane.b32.xlu0 %v1671, 122
        %v1676 = vpop.permute.xlu0 %1675
        %1677 = vrot.lane.b32.xlu0 %v1672, 122
        %v1678 = vpop.permute.xlu0 %1677
        %v1681 = vadd.f32 %v1667, %v1676
        %v1682 = vadd.f32 %v1668, %v1678
        %s1683 = sld [smem:[#allocation10 + $0x4f]]
        %v1684 = vstv %s1683
        %v1685 = vmul.f32 %v1591, %v1684
        %v1686 = vmul.f32 %v1592, %v1684
        %1689 = vrot.lane.b32.xlu0 %v1685, 121
        %v1690 = vpop.permute.xlu0 %1689
        %1691 = vrot.lane.b32.xlu0 %v1686, 121
        %v1692 = vpop.permute.xlu0 %1691
        %v1695 = vadd.f32 %v1681, %v1690
        %v1696 = vadd.f32 %v1682, %v1692
        %s1697 = sld [smem:[#allocation10 + $0x50]]
        %v1698 = vstv %s1697
        %v1699 = vmul.f32 %v1591, %v1698
        %v1700 = vmul.f32 %v1592, %v1698
        %1703 = vrot.lane.b32.xlu0 %v1699, 120
        %v1704 = vpop.permute.xlu0 %1703
        %1705 = vrot.lane.b32.xlu0 %v1700, 120
        %v1706 = vpop.permute.xlu0 %1705
        %v1709 = vadd.f32 %v1695, %v1704
        %v1710 = vadd.f32 %v1696, %v1706
        %v1711 = vld [vmem:[%s507] sm:$0xff]
        %v1712 = vld [vmem:[%s507 + $0x8] sm:$0xff]
        %s1713 = sld [smem:[#allocation10 + $0x51]]
        %v1714 = vstv %s1713
        %v1715 = vmul.f32 %v1711, %v1714
        %v1716 = vmul.f32 %v1712, %v1714
        %v1717 = vadd.f32 %v1709, %v1715
        %v1718 = vadd.f32 %v1710, %v1716
        %s1719 = sld [smem:[#allocation10 + $0x52]]
        %v1720 = vstv %s1719
        %v1721 = vmul.f32 %v1711, %v1720
        %v1722 = vmul.f32 %v1712, %v1720
        %1725 = vrot.lane.b32.xlu0 %v1721, 127
        %v1726 = vpop.permute.xlu0 %1725
        %1727 = vrot.lane.b32.xlu0 %v1722, 127
        %v1728 = vpop.permute.xlu0 %1727
        %v1731 = vadd.f32 %v1717, %v1726
        %v1732 = vadd.f32 %v1718, %v1728
        %s1733 = sld [smem:[#allocation10 + $0x53]]
        %v1734 = vstv %s1733
        %v1735 = vmul.f32 %v1711, %v1734
        %v1736 = vmul.f32 %v1712, %v1734
        %1739 = vrot.lane.b32.xlu0 %v1735, 126
        %v1740 = vpop.permute.xlu0 %1739
        %1741 = vrot.lane.b32.xlu0 %v1736, 126
        %v1742 = vpop.permute.xlu0 %1741
        %v1745 = vadd.f32 %v1731, %v1740
        %v1746 = vadd.f32 %v1732, %v1742
        %s1747 = sld [smem:[#allocation10 + $0x54]]
        %v1748 = vstv %s1747
        %v1749 = vmul.f32 %v1711, %v1748
        %v1750 = vmul.f32 %v1712, %v1748
        %1753 = vrot.lane.b32.xlu0 %v1749, 125
        %v1754 = vpop.permute.xlu0 %1753
        %1755 = vrot.lane.b32.xlu0 %v1750, 125
        %v1756 = vpop.permute.xlu0 %1755
        %v1759 = vadd.f32 %v1745, %v1754
        %v1760 = vadd.f32 %v1746, %v1756
        %s1761 = sld [smem:[#allocation10 + $0x55]]
        %v1762 = vstv %s1761
        %v1763 = vmul.f32 %v1711, %v1762
        %v1764 = vmul.f32 %v1712, %v1762
        %1767 = vrot.lane.b32.xlu0 %v1763, 124
        %v1768 = vpop.permute.xlu0 %1767
        %1769 = vrot.lane.b32.xlu0 %v1764, 124
        %v1770 = vpop.permute.xlu0 %1769
        %v1773 = vadd.f32 %v1759, %v1768
        %v1774 = vadd.f32 %v1760, %v1770
        %s1775 = sld [smem:[#allocation10 + $0x56]]
        %v1776 = vstv %s1775
        %v1777 = vmul.f32 %v1711, %v1776
        %v1778 = vmul.f32 %v1712, %v1776
        %1781 = vrot.lane.b32.xlu0 %v1777, 123
        %v1782 = vpop.permute.xlu0 %1781
        %1783 = vrot.lane.b32.xlu0 %v1778, 123
        %v1784 = vpop.permute.xlu0 %1783
        %v1787 = vadd.f32 %v1773, %v1782
        %v1788 = vadd.f32 %v1774, %v1784
        %s1789 = sld [smem:[#allocation10 + $0x57]]
        %v1790 = vstv %s1789
        %v1791 = vmul.f32 %v1711, %v1790
        %v1792 = vmul.f32 %v1712, %v1790
        %1795 = vrot.lane.b32.xlu0 %v1791, 122
        %v1796 = vpop.permute.xlu0 %1795
        %1797 = vrot.lane.b32.xlu0 %v1792, 122
        %v1798 = vpop.permute.xlu0 %1797
        %v1801 = vadd.f32 %v1787, %v1796
        %v1802 = vadd.f32 %v1788, %v1798
        %s1803 = sld [smem:[#allocation10 + $0x58]]
        %v1804 = vstv %s1803
        %v1805 = vmul.f32 %v1711, %v1804
        %v1806 = vmul.f32 %v1712, %v1804
        %1809 = vrot.lane.b32.xlu0 %v1805, 121
        %v1810 = vpop.permute.xlu0 %1809
        %1811 = vrot.lane.b32.xlu0 %v1806, 121
        %v1812 = vpop.permute.xlu0 %1811
        %v1815 = vadd.f32 %v1801, %v1810
        %v1816 = vadd.f32 %v1802, %v1812
        %s1817 = sld [smem:[#allocation10 + $0x59]]
        %v1818 = vstv %s1817
        %v1819 = vmul.f32 %v1711, %v1818
        %v1820 = vmul.f32 %v1712, %v1818
        %1823 = vrot.lane.b32.xlu0 %v1819, 120
        %v1824 = vpop.permute.xlu0 %1823
        %1825 = vrot.lane.b32.xlu0 %v1820, 120
        %v1826 = vpop.permute.xlu0 %1825
        %v1829 = vadd.f32 %v1815, %v1824
        %v1830 = vadd.f32 %v1816, %v1826
        %v1831 = vld [vmem:[%s507 + $0x1] sm:$0xff]
        %v1832 = vld [vmem:[%s507 + $0x9] sm:$0xff]
        %s1833 = sld [smem:[#allocation10 + $0x5a]]
        %v1834 = vstv %s1833
        %v1835 = vmul.f32 %v1831, %v1834
        %v1836 = vmul.f32 %v1832, %v1834
        %v1837 = vadd.f32 %v1829, %v1835
        %v1838 = vadd.f32 %v1830, %v1836
        %s1839 = sld [smem:[#allocation10 + $0x5b]]
        %v1840 = vstv %s1839
        %v1841 = vmul.f32 %v1831, %v1840
        %v1842 = vmul.f32 %v1832, %v1840
        %1845 = vrot.lane.b32.xlu0 %v1841, 127
        %v1846 = vpop.permute.xlu0 %1845
        %1847 = vrot.lane.b32.xlu0 %v1842, 127
        %v1848 = vpop.permute.xlu0 %1847
        %v1851 = vadd.f32 %v1837, %v1846
        %v1852 = vadd.f32 %v1838, %v1848
        %s1853 = sld [smem:[#allocation10 + $0x5c]]
        %v1854 = vstv %s1853
        %v1855 = vmul.f32 %v1831, %v1854
        %v1856 = vmul.f32 %v1832, %v1854
        %1859 = vrot.lane.b32.xlu0 %v1855, 126
        %v1860 = vpop.permute.xlu0 %1859
        %1861 = vrot.lane.b32.xlu0 %v1856, 126
        %v1862 = vpop.permute.xlu0 %1861
        %v1865 = vadd.f32 %v1851, %v1860
        %v1866 = vadd.f32 %v1852, %v1862
        %s1867 = sld [smem:[#allocation10 + $0x5d]]
        %v1868 = vstv %s1867
        %v1869 = vmul.f32 %v1831, %v1868
        %v1870 = vmul.f32 %v1832, %v1868
        %1873 = vrot.lane.b32.xlu0 %v1869, 125
        %v1874 = vpop.permute.xlu0 %1873
        %1875 = vrot.lane.b32.xlu0 %v1870, 125
        %v1876 = vpop.permute.xlu0 %1875
        %v1879 = vadd.f32 %v1865, %v1874
        %v1880 = vadd.f32 %v1866, %v1876
        %s1881 = sld [smem:[#allocation10 + $0x5e]]
        %v1882 = vstv %s1881
        %v1883 = vmul.f32 %v1831, %v1882
        %v1884 = vmul.f32 %v1832, %v1882
        %1887 = vrot.lane.b32.xlu0 %v1883, 124
        %v1888 = vpop.permute.xlu0 %1887
        %1889 = vrot.lane.b32.xlu0 %v1884, 124
        %v1890 = vpop.permute.xlu0 %1889
        %v1893 = vadd.f32 %v1879, %v1888
        %v1894 = vadd.f32 %v1880, %v1890
        %s1895 = sld [smem:[#allocation10 + $0x5f]]
        %v1896 = vstv %s1895
        %v1897 = vmul.f32 %v1831, %v1896
        %v1898 = vmul.f32 %v1832, %v1896
        %1901 = vrot.lane.b32.xlu0 %v1897, 123
        %v1902 = vpop.permute.xlu0 %1901
        %1903 = vrot.lane.b32.xlu0 %v1898, 123
        %v1904 = vpop.permute.xlu0 %1903
        %v1907 = vadd.f32 %v1893, %v1902
        %v1908 = vadd.f32 %v1894, %v1904
        %s1909 = sld [smem:[#allocation10 + $0x60]]
        %v1910 = vstv %s1909
        %v1911 = vmul.f32 %v1831, %v1910
        %v1912 = vmul.f32 %v1832, %v1910
        %1915 = vrot.lane.b32.xlu0 %v1911, 122
        %v1916 = vpop.permute.xlu0 %1915
        %1917 = vrot.lane.b32.xlu0 %v1912, 122
        %v1918 = vpop.permute.xlu0 %1917
        %v1921 = vadd.f32 %v1907, %v1916
        %v1922 = vadd.f32 %v1908, %v1918
        %s1923 = sld [smem:[#allocation10 + $0x61]]
        %v1924 = vstv %s1923
        %v1925 = vmul.f32 %v1831, %v1924
        %v1926 = vmul.f32 %v1832, %v1924
        %1929 = vrot.lane.b32.xlu0 %v1925, 121
        %v1930 = vpop.permute.xlu0 %1929
        %1931 = vrot.lane.b32.xlu0 %v1926, 121
        %v1932 = vpop.permute.xlu0 %1931
        %v1935 = vadd.f32 %v1921, %v1930
        %v1936 = vadd.f32 %v1922, %v1932
        %s1937 = sld [smem:[#allocation10 + $0x62]]
        %v1938 = vstv %s1937
        %v1939 = vmul.f32 %v1831, %v1938
        %v1940 = vmul.f32 %v1832, %v1938
        %1943 = vrot.lane.b32.xlu0 %v1939, 120
        %v1944 = vpop.permute.xlu0 %1943
        %1945 = vrot.lane.b32.xlu0 %v1940, 120
        %v1946 = vpop.permute.xlu0 %1945
        %v1949 = vadd.f32 %v1935, %v1944
        %v1950 = vadd.f32 %v1936, %v1946
        %v1951 = vld [vmem:[%s507 + $0x2] sm:$0xff]
        %v1952 = vld [vmem:[%s507 + $0xa] sm:$0xff]
        %s1953 = sld [smem:[#allocation10 + $0x63]]
        %v1954 = vstv %s1953
        %v1955 = vmul.f32 %v1951, %v1954
        %v1956 = vmul.f32 %v1952, %v1954
        %v1957 = vadd.f32 %v1949, %v1955
        %v1958 = vadd.f32 %v1950, %v1956
        %s1959 = sld [smem:[#allocation10 + $0x64]]
        %v1960 = vstv %s1959
        %v1961 = vmul.f32 %v1951, %v1960
        %v1962 = vmul.f32 %v1952, %v1960
        %1965 = vrot.lane.b32.xlu0 %v1961, 127
        %v1966 = vpop.permute.xlu0 %1965
        %1967 = vrot.lane.b32.xlu0 %v1962, 127
        %v1968 = vpop.permute.xlu0 %1967
        %v1971 = vadd.f32 %v1957, %v1966
        %v1972 = vadd.f32 %v1958, %v1968
        %s1973 = sld [smem:[#allocation10 + $0x65]]
        %v1974 = vstv %s1973
        %v1975 = vmul.f32 %v1951, %v1974
        %v1976 = vmul.f32 %v1952, %v1974
        %1979 = vrot.lane.b32.xlu0 %v1975, 126
        %v1980 = vpop.permute.xlu0 %1979
        %1981 = vrot.lane.b32.xlu0 %v1976, 126
        %v1982 = vpop.permute.xlu0 %1981
        %v1985 = vadd.f32 %v1971, %v1980
        %v1986 = vadd.f32 %v1972, %v1982
        %s1987 = sld [smem:[#allocation10 + $0x66]]
        %v1988 = vstv %s1987
        %v1989 = vmul.f32 %v1951, %v1988
        %v1990 = vmul.f32 %v1952, %v1988
        %1993 = vrot.lane.b32.xlu0 %v1989, 125
        %v1994 = vpop.permute.xlu0 %1993
        %1995 = vrot.lane.b32.xlu0 %v1990, 125
        %v1996 = vpop.permute.xlu0 %1995
        %v1999 = vadd.f32 %v1985, %v1994
        %v2000 = vadd.f32 %v1986, %v1996
        %s2001 = sld [smem:[#allocation10 + $0x67]]
        %v2002 = vstv %s2001
        %v2003 = vmul.f32 %v1951, %v2002
        %v2004 = vmul.f32 %v1952, %v2002
        %2007 = vrot.lane.b32.xlu0 %v2003, 124
        %v2008 = vpop.permute.xlu0 %2007
        %2009 = vrot.lane.b32.xlu0 %v2004, 124
        %v2010 = vpop.permute.xlu0 %2009
        %v2013 = vadd.f32 %v1999, %v2008
        %v2014 = vadd.f32 %v2000, %v2010
        %s2015 = sld [smem:[#allocation10 + $0x68]]
        %v2016 = vstv %s2015
        %v2017 = vmul.f32 %v1951, %v2016
        %v2018 = vmul.f32 %v1952, %v2016
        %2021 = vrot.lane.b32.xlu0 %v2017, 123
        %v2022 = vpop.permute.xlu0 %2021
        %2023 = vrot.lane.b32.xlu0 %v2018, 123
        %v2024 = vpop.permute.xlu0 %2023
        %v2027 = vadd.f32 %v2013, %v2022
        %v2028 = vadd.f32 %v2014, %v2024
        %s2029 = sld [smem:[#allocation10 + $0x69]]
        %v2030 = vstv %s2029
        %v2031 = vmul.f32 %v1951, %v2030
        %v2032 = vmul.f32 %v1952, %v2030
        %2035 = vrot.lane.b32.xlu0 %v2031, 122
        %v2036 = vpop.permute.xlu0 %2035
        %2037 = vrot.lane.b32.xlu0 %v2032, 122
        %v2038 = vpop.permute.xlu0 %2037
        %v2041 = vadd.f32 %v2027, %v2036
        %v2042 = vadd.f32 %v2028, %v2038
        %s2043 = sld [smem:[#allocation10 + $0x6a]]
        %v2044 = vstv %s2043
        %v2045 = vmul.f32 %v1951, %v2044
        %v2046 = vmul.f32 %v1952, %v2044
        %2049 = vrot.lane.b32.xlu0 %v2045, 121
        %v2050 = vpop.permute.xlu0 %2049
        %2051 = vrot.lane.b32.xlu0 %v2046, 121
        %v2052 = vpop.permute.xlu0 %2051
        %v2055 = vadd.f32 %v2041, %v2050
        %v2056 = vadd.f32 %v2042, %v2052
        %s2057 = sld [smem:[#allocation10 + $0x6b]]
        %v2058 = vstv %s2057
        %v2059 = vmul.f32 %v1951, %v2058
        %v2060 = vmul.f32 %v1952, %v2058
        %2063 = vrot.lane.b32.xlu0 %v2059, 120
        %v2064 = vpop.permute.xlu0 %2063
        %2065 = vrot.lane.b32.xlu0 %v2060, 120
        %v2066 = vpop.permute.xlu0 %2065
        %v2069 = vadd.f32 %v2055, %v2064
        %v2070 = vadd.f32 %v2056, %v2066
        %v2071 = vld [vmem:[%s507 + $0x3] sm:$0xff]
        %v2072 = vld [vmem:[%s507 + $0xb] sm:$0xff]
        %s2073 = sld [smem:[#allocation10 + $0x6c]]
        %v2074 = vstv %s2073
        %v2075 = vmul.f32 %v2071, %v2074
        %v2076 = vmul.f32 %v2072, %v2074
        %v2077 = vadd.f32 %v2069, %v2075
        %v2078 = vadd.f32 %v2070, %v2076
        %s2079 = sld [smem:[#allocation10 + $0x6d]]
        %v2080 = vstv %s2079
        %v2081 = vmul.f32 %v2071, %v2080
        %v2082 = vmul.f32 %v2072, %v2080
        %2085 = vrot.lane.b32.xlu0 %v2081, 127
        %v2086 = vpop.permute.xlu0 %2085
        %2087 = vrot.lane.b32.xlu0 %v2082, 127
        %v2088 = vpop.permute.xlu0 %2087
        %v2091 = vadd.f32 %v2077, %v2086
        %v2092 = vadd.f32 %v2078, %v2088
        %s2093 = sld [smem:[#allocation10 + $0x6e]]
        %v2094 = vstv %s2093
        %v2095 = vmul.f32 %v2071, %v2094
        %v2096 = vmul.f32 %v2072, %v2094
        %2099 = vrot.lane.b32.xlu0 %v2095, 126
        %v2100 = vpop.permute.xlu0 %2099
        %2101 = vrot.lane.b32.xlu0 %v2096, 126
        %v2102 = vpop.permute.xlu0 %2101
        %v2105 = vadd.f32 %v2091, %v2100
        %v2106 = vadd.f32 %v2092, %v2102
        %s2107 = sld [smem:[#allocation10 + $0x6f]]
        %v2108 = vstv %s2107
        %v2109 = vmul.f32 %v2071, %v2108
        %v2110 = vmul.f32 %v2072, %v2108
        %2113 = vrot.lane.b32.xlu0 %v2109, 125
        %v2114 = vpop.permute.xlu0 %2113
        %2115 = vrot.lane.b32.xlu0 %v2110, 125
        %v2116 = vpop.permute.xlu0 %2115
        %v2119 = vadd.f32 %v2105, %v2114
        %v2120 = vadd.f32 %v2106, %v2116
        %s2121 = sld [smem:[#allocation10 + $0x70]]
        %v2122 = vstv %s2121
        %v2123 = vmul.f32 %v2071, %v2122
        %v2124 = vmul.f32 %v2072, %v2122
        %2127 = vrot.lane.b32.xlu0 %v2123, 124
        %v2128 = vpop.permute.xlu0 %2127
        %2129 = vrot.lane.b32.xlu0 %v2124, 124
        %v2130 = vpop.permute.xlu0 %2129
        %v2133 = vadd.f32 %v2119, %v2128
        %v2134 = vadd.f32 %v2120, %v2130
        %s2135 = sld [smem:[#allocation10 + $0x71]]
        %v2136 = vstv %s2135
        %v2137 = vmul.f32 %v2071, %v2136
        %v2138 = vmul.f32 %v2072, %v2136
        %2141 = vrot.lane.b32.xlu0 %v2137, 123
        %v2142 = vpop.permute.xlu0 %2141
        %2143 = vrot.lane.b32.xlu0 %v2138, 123
        %v2144 = vpop.permute.xlu0 %2143
        %v2147 = vadd.f32 %v2133, %v2142
        %v2148 = vadd.f32 %v2134, %v2144
        %s2149 = sld [smem:[#allocation10 + $0x72]]
        %v2150 = vstv %s2149
        %v2151 = vmul.f32 %v2071, %v2150
        %v2152 = vmul.f32 %v2072, %v2150
        %2155 = vrot.lane.b32.xlu0 %v2151, 122
        %v2156 = vpop.permute.xlu0 %2155
        %2157 = vrot.lane.b32.xlu0 %v2152, 122
        %v2158 = vpop.permute.xlu0 %2157
        %v2161 = vadd.f32 %v2147, %v2156
        %v2162 = vadd.f32 %v2148, %v2158
        %s2163 = sld [smem:[#allocation10 + $0x73]]
        %v2164 = vstv %s2163
        %v2165 = vmul.f32 %v2071, %v2164
        %v2166 = vmul.f32 %v2072, %v2164
        %2169 = vrot.lane.b32.xlu0 %v2165, 121
        %v2170 = vpop.permute.xlu0 %2169
        %2171 = vrot.lane.b32.xlu0 %v2166, 121
        %v2172 = vpop.permute.xlu0 %2171
        %v2175 = vadd.f32 %v2161, %v2170
        %v2176 = vadd.f32 %v2162, %v2172
        %s2177 = sld [smem:[#allocation10 + $0x74]]
        %v2178 = vstv %s2177
        %v2179 = vmul.f32 %v2071, %v2178
        %v2180 = vmul.f32 %v2072, %v2178
        %2183 = vrot.lane.b32.xlu0 %v2179, 120
        %v2184 = vpop.permute.xlu0 %2183
        %2185 = vrot.lane.b32.xlu0 %v2180, 120
        %v2186 = vpop.permute.xlu0 %2185
        %v2189 = vadd.f32 %v2175, %v2184
        %v2190 = vadd.f32 %v2176, %v2186
        %v2191 = vld [vmem:[%s507 + $0x4] sm:$0xff]
        %v2192 = vld [vmem:[%s507 + $0xc] sm:$0xff]
        %s2193 = sld [smem:[#allocation10 + $0x75]]
        %v2194 = vstv %s2193
        %v2195 = vmul.f32 %v2191, %v2194
        %v2196 = vmul.f32 %v2192, %v2194
        %v2197 = vadd.f32 %v2189, %v2195
        %v2198 = vadd.f32 %v2190, %v2196
        %s2199 = sld [smem:[#allocation10 + $0x76]]
        %v2200 = vstv %s2199
        %v2201 = vmul.f32 %v2191, %v2200
        %v2202 = vmul.f32 %v2192, %v2200
        %2205 = vrot.lane.b32.xlu0 %v2201, 127
        %v2206 = vpop.permute.xlu0 %2205
        %2207 = vrot.lane.b32.xlu0 %v2202, 127
        %v2208 = vpop.permute.xlu0 %2207
        %v2211 = vadd.f32 %v2197, %v2206
        %v2212 = vadd.f32 %v2198, %v2208
        %s2213 = sld [smem:[#allocation10 + $0x77]]
        %v2214 = vstv %s2213
        %v2215 = vmul.f32 %v2191, %v2214
        %v2216 = vmul.f32 %v2192, %v2214
        %2219 = vrot.lane.b32.xlu0 %v2215, 126
        %v2220 = vpop.permute.xlu0 %2219
        %2221 = vrot.lane.b32.xlu0 %v2216, 126
        %v2222 = vpop.permute.xlu0 %2221
        %v2225 = vadd.f32 %v2211, %v2220
        %v2226 = vadd.f32 %v2212, %v2222
        %s2227 = sld [smem:[#allocation10 + $0x78]]
        %v2228 = vstv %s2227
        %v2229 = vmul.f32 %v2191, %v2228
        %v2230 = vmul.f32 %v2192, %v2228
        %2233 = vrot.lane.b32.xlu0 %v2229, 125
        %v2234 = vpop.permute.xlu0 %2233
        %2235 = vrot.lane.b32.xlu0 %v2230, 125
        %v2236 = vpop.permute.xlu0 %2235
        %v2239 = vadd.f32 %v2225, %v2234
        %v2240 = vadd.f32 %v2226, %v2236
        %s2241 = sld [smem:[#allocation10 + $0x79]]
        %v2242 = vstv %s2241
        %v2243 = vmul.f32 %v2191, %v2242
        %v2244 = vmul.f32 %v2192, %v2242
        %2247 = vrot.lane.b32.xlu0 %v2243, 124
        %v2248 = vpop.permute.xlu0 %2247
        %2249 = vrot.lane.b32.xlu0 %v2244, 124
        %v2250 = vpop.permute.xlu0 %2249
        %v2253 = vadd.f32 %v2239, %v2248
        %v2254 = vadd.f32 %v2240, %v2250
        %s2255 = sld [smem:[#allocation10 + $0x7a]]
        %v2256 = vstv %s2255
        %v2257 = vmul.f32 %v2191, %v2256
        %v2258 = vmul.f32 %v2192, %v2256
        %2261 = vrot.lane.b32.xlu0 %v2257, 123
        %v2262 = vpop.permute.xlu0 %2261
        %2263 = vrot.lane.b32.xlu0 %v2258, 123
        %v2264 = vpop.permute.xlu0 %2263
        %v2267 = vadd.f32 %v2253, %v2262
        %v2268 = vadd.f32 %v2254, %v2264
        %s2269 = sld [smem:[#allocation10 + $0x7b]]
        %v2270 = vstv %s2269
        %v2271 = vmul.f32 %v2191, %v2270
        %v2272 = vmul.f32 %v2192, %v2270
        %2275 = vrot.lane.b32.xlu0 %v2271, 122
        %v2276 = vpop.permute.xlu0 %2275
        %2277 = vrot.lane.b32.xlu0 %v2272, 122
        %v2278 = vpop.permute.xlu0 %2277
        %v2281 = vadd.f32 %v2267, %v2276
        %v2282 = vadd.f32 %v2268, %v2278
        %s2283 = sld [smem:[#allocation10 + $0x7c]]
        %v2284 = vstv %s2283
        %v2285 = vmul.f32 %v2191, %v2284
        %v2286 = vmul.f32 %v2192, %v2284
        %2289 = vrot.lane.b32.xlu0 %v2285, 121
        %v2290 = vpop.permute.xlu0 %2289
        %2291 = vrot.lane.b32.xlu0 %v2286, 121
        %v2292 = vpop.permute.xlu0 %2291
        %v2295 = vadd.f32 %v2281, %v2290
        %v2296 = vadd.f32 %v2282, %v2292
        %s2297 = sld [smem:[#allocation10 + $0x7d]]
        %v2298 = vstv %s2297
        %v2299 = vmul.f32 %v2191, %v2298
        %v2300 = vmul.f32 %v2192, %v2298
        %2303 = vrot.lane.b32.xlu0 %v2299, 120
        %v2304 = vpop.permute.xlu0 %2303
        %2305 = vrot.lane.b32.xlu0 %v2300, 120
        %v2306 = vpop.permute.xlu0 %2305
        %v2309 = vadd.f32 %v2295, %v2304
        %v2310 = vadd.f32 %v2296, %v2306
        %v2311 = vld [vmem:[%s507 + $0x5] sm:$0xff]
        %v2312 = vld [vmem:[%s507 + $0xd] sm:$0xff]
        %s2313 = sld [smem:[#allocation10 + $0x7e]]
        %v2314 = vstv %s2313
        %v2315 = vmul.f32 %v2311, %v2314
        %v2316 = vmul.f32 %v2312, %v2314
        %v2317 = vadd.f32 %v2309, %v2315
        %v2318 = vadd.f32 %v2310, %v2316
        %s2319 = sld [smem:[#allocation10 + $0x7f]]
        %v2320 = vstv %s2319
        %v2321 = vmul.f32 %v2311, %v2320
        %v2322 = vmul.f32 %v2312, %v2320
        %2325 = vrot.lane.b32.xlu0 %v2321, 127
        %v2326 = vpop.permute.xlu0 %2325
        %2327 = vrot.lane.b32.xlu0 %v2322, 127
        %v2328 = vpop.permute.xlu0 %2327
        %v2331 = vadd.f32 %v2317, %v2326
        %v2332 = vadd.f32 %v2318, %v2328
        %s2333 = sld [smem:[#allocation10 + $0x80]]
        %v2334 = vstv %s2333
        %v2335 = vmul.f32 %v2311, %v2334
        %v2336 = vmul.f32 %v2312, %v2334
        %2339 = vrot.lane.b32.xlu0 %v2335, 126
        %v2340 = vpop.permute.xlu0 %2339
        %2341 = vrot.lane.b32.xlu0 %v2336, 126
        %v2342 = vpop.permute.xlu0 %2341
        %v2345 = vadd.f32 %v2331, %v2340
        %v2346 = vadd.f32 %v2332, %v2342
        %s2347 = sld [smem:[#allocation10 + $0x81]]
        %v2348 = vstv %s2347
        %v2349 = vmul.f32 %v2311, %v2348
        %v2350 = vmul.f32 %v2312, %v2348
        %2353 = vrot.lane.b32.xlu0 %v2349, 125
        %v2354 = vpop.permute.xlu0 %2353
        %2355 = vrot.lane.b32.xlu0 %v2350, 125
        %v2356 = vpop.permute.xlu0 %2355
        %v2359 = vadd.f32 %v2345, %v2354
        %v2360 = vadd.f32 %v2346, %v2356
        %s2361 = sld [smem:[#allocation10 + $0x82]]
        %v2362 = vstv %s2361
        %v2363 = vmul.f32 %v2311, %v2362
        %v2364 = vmul.f32 %v2312, %v2362
        %2367 = vrot.lane.b32.xlu0 %v2363, 124
        %v2368 = vpop.permute.xlu0 %2367
        %2369 = vrot.lane.b32.xlu0 %v2364, 124
        %v2370 = vpop.permute.xlu0 %2369
        %v2373 = vadd.f32 %v2359, %v2368
        %v2374 = vadd.f32 %v2360, %v2370
        %s2375 = sld [smem:[#allocation10 + $0x83]]
        %v2376 = vstv %s2375
        %v2377 = vmul.f32 %v2311, %v2376
        %v2378 = vmul.f32 %v2312, %v2376
        %2381 = vrot.lane.b32.xlu0 %v2377, 123
        %v2382 = vpop.permute.xlu0 %2381
        %2383 = vrot.lane.b32.xlu0 %v2378, 123
        %v2384 = vpop.permute.xlu0 %2383
        %v2387 = vadd.f32 %v2373, %v2382
        %v2388 = vadd.f32 %v2374, %v2384
        %s2389 = sld [smem:[#allocation10 + $0x84]]
        %v2390 = vstv %s2389
        %v2391 = vmul.f32 %v2311, %v2390
        %v2392 = vmul.f32 %v2312, %v2390
        %2395 = vrot.lane.b32.xlu0 %v2391, 122
        %v2396 = vpop.permute.xlu0 %2395
        %2397 = vrot.lane.b32.xlu0 %v2392, 122
        %v2398 = vpop.permute.xlu0 %2397
        %v2401 = vadd.f32 %v2387, %v2396
        %v2402 = vadd.f32 %v2388, %v2398
        %s2403 = sld [smem:[#allocation10 + $0x85]]
        %v2404 = vstv %s2403
        %v2405 = vmul.f32 %v2311, %v2404
        %v2406 = vmul.f32 %v2312, %v2404
        %2409 = vrot.lane.b32.xlu0 %v2405, 121
        %v2410 = vpop.permute.xlu0 %2409
        %2411 = vrot.lane.b32.xlu0 %v2406, 121
        %v2412 = vpop.permute.xlu0 %2411
        %v2415 = vadd.f32 %v2401, %v2410
        %v2416 = vadd.f32 %v2402, %v2412
        %s2417 = sld [smem:[#allocation10 + $0x86]]
        %v2418 = vstv %s2417
        %v2419 = vmul.f32 %v2311, %v2418
        %v2420 = vmul.f32 %v2312, %v2418
        %2423 = vrot.lane.b32.xlu0 %v2419, 120
        %v2424 = vpop.permute.xlu0 %2423
        %2425 = vrot.lane.b32.xlu0 %v2420, 120
        %v2426 = vpop.permute.xlu0 %2425
        %v2429 = vadd.f32 %v2415, %v2424
        %v2430 = vadd.f32 %v2416, %v2426
        %v2431 = vld [vmem:[%s507 + $0x6] sm:$0xff]
        %v2432 = vld [vmem:[%s507 + $0xe] sm:$0xff]
        %s2433 = sld [smem:[#allocation10 + $0x87]]
        %v2434 = vstv %s2433
        %v2435 = vmul.f32 %v2431, %v2434
        %v2436 = vmul.f32 %v2432, %v2434
        %v2437 = vadd.f32 %v2429, %v2435
        %v2438 = vadd.f32 %v2430, %v2436
        %s2439 = sld [smem:[#allocation10 + $0x88]]
        %v2440 = vstv %s2439
        %v2441 = vmul.f32 %v2431, %v2440
        %v2442 = vmul.f32 %v2432, %v2440
        %2445 = vrot.lane.b32.xlu0 %v2441, 127
        %v2446 = vpop.permute.xlu0 %2445
        %2447 = vrot.lane.b32.xlu0 %v2442, 127
        %v2448 = vpop.permute.xlu0 %2447
        %v2451 = vadd.f32 %v2437, %v2446
        %v2452 = vadd.f32 %v2438, %v2448
        %s2453 = sld [smem:[#allocation10 + $0x89]]
        %v2454 = vstv %s2453
        %v2455 = vmul.f32 %v2431, %v2454
        %v2456 = vmul.f32 %v2432, %v2454
        %2459 = vrot.lane.b32.xlu0 %v2455, 126
        %v2460 = vpop.permute.xlu0 %2459
        %2461 = vrot.lane.b32.xlu0 %v2456, 126
        %v2462 = vpop.permute.xlu0 %2461
        %v2465 = vadd.f32 %v2451, %v2460
        %v2466 = vadd.f32 %v2452, %v2462
        %s2467 = sld [smem:[#allocation10 + $0x8a]]
        %v2468 = vstv %s2467
        %v2469 = vmul.f32 %v2431, %v2468
        %v2470 = vmul.f32 %v2432, %v2468
        %2473 = vrot.lane.b32.xlu0 %v2469, 125
        %v2474 = vpop.permute.xlu0 %2473
        %2475 = vrot.lane.b32.xlu0 %v2470, 125
        %v2476 = vpop.permute.xlu0 %2475
        %v2479 = vadd.f32 %v2465, %v2474
        %v2480 = vadd.f32 %v2466, %v2476
        %s2481 = sld [smem:[#allocation10 + $0x8b]]
        %v2482 = vstv %s2481
        %v2483 = vmul.f32 %v2431, %v2482
        %v2484 = vmul.f32 %v2432, %v2482
        %2487 = vrot.lane.b32.xlu0 %v2483, 124
        %v2488 = vpop.permute.xlu0 %2487
        %2489 = vrot.lane.b32.xlu0 %v2484, 124
        %v2490 = vpop.permute.xlu0 %2489
        %v2493 = vadd.f32 %v2479, %v2488
        %v2494 = vadd.f32 %v2480, %v2490
        %s2495 = sld [smem:[#allocation10 + $0x8c]]
        %v2496 = vstv %s2495
        %v2497 = vmul.f32 %v2431, %v2496
        %v2498 = vmul.f32 %v2432, %v2496
        %2501 = vrot.lane.b32.xlu0 %v2497, 123
        %v2502 = vpop.permute.xlu0 %2501
        %2503 = vrot.lane.b32.xlu0 %v2498, 123
        %v2504 = vpop.permute.xlu0 %2503
        %v2507 = vadd.f32 %v2493, %v2502
        %v2508 = vadd.f32 %v2494, %v2504
        %s2509 = sld [smem:[#allocation10 + $0x8d]]
        %v2510 = vstv %s2509
        %v2511 = vmul.f32 %v2431, %v2510
        %v2512 = vmul.f32 %v2432, %v2510
        %2515 = vrot.lane.b32.xlu0 %v2511, 122
        %v2516 = vpop.permute.xlu0 %2515
        %2517 = vrot.lane.b32.xlu0 %v2512, 122
        %v2518 = vpop.permute.xlu0 %2517
        %v2521 = vadd.f32 %v2507, %v2516
        %v2522 = vadd.f32 %v2508, %v2518
        %s2523 = sld [smem:[#allocation10 + $0x8e]]
        %v2524 = vstv %s2523
        %v2525 = vmul.f32 %v2431, %v2524
        %v2526 = vmul.f32 %v2432, %v2524
        %2529 = vrot.lane.b32.xlu0 %v2525, 121
        %v2530 = vpop.permute.xlu0 %2529
        %2531 = vrot.lane.b32.xlu0 %v2526, 121
        %v2532 = vpop.permute.xlu0 %2531
        %v2535 = vadd.f32 %v2521, %v2530
        %v2536 = vadd.f32 %v2522, %v2532
        %s2537 = sld [smem:[#allocation10 + $0x8f]]
        %v2538 = vstv %s2537
        %v2539 = vmul.f32 %v2431, %v2538
        %v2540 = vmul.f32 %v2432, %v2538
        %2543 = vrot.lane.b32.xlu0 %v2539, 120
        %v2544 = vpop.permute.xlu0 %2543
        %2545 = vrot.lane.b32.xlu0 %v2540, 120
        %v2546 = vpop.permute.xlu0 %2545
        %v2549 = vadd.f32 %v2535, %v2544
        %v2550 = vadd.f32 %v2536, %v2546
        %v2551 = vld [vmem:[%s507 + $0x7] sm:$0xff]
        %v2552 = vld [vmem:[%s507 + $0xf] sm:$0xff]
        %s2553 = sld [smem:[#allocation10 + $0x90]]
        %v2554 = vstv %s2553
        %v2555 = vmul.f32 %v2551, %v2554
        %v2556 = vmul.f32 %v2552, %v2554
        %v2557 = vadd.f32 %v2549, %v2555
        %v2558 = vadd.f32 %v2550, %v2556
        %s2559 = sld [smem:[#allocation10 + $0x91]]
        %v2560 = vstv %s2559
        %v2561 = vmul.f32 %v2551, %v2560
        %v2562 = vmul.f32 %v2552, %v2560
        %2565 = vrot.lane.b32.xlu0 %v2561, 127
        %v2566 = vpop.permute.xlu0 %2565
        %2567 = vrot.lane.b32.xlu0 %v2562, 127
        %v2568 = vpop.permute.xlu0 %2567
        %v2571 = vadd.f32 %v2557, %v2566
        %v2572 = vadd.f32 %v2558, %v2568
        %s2573 = sld [smem:[#allocation10 + $0x92]]
        %v2574 = vstv %s2573
        %v2575 = vmul.f32 %v2551, %v2574
        %v2576 = vmul.f32 %v2552, %v2574
        %2579 = vrot.lane.b32.xlu0 %v2575, 126
        %v2580 = vpop.permute.xlu0 %2579
        %2581 = vrot.lane.b32.xlu0 %v2576, 126
        %v2582 = vpop.permute.xlu0 %2581
        %v2585 = vadd.f32 %v2571, %v2580
        %v2586 = vadd.f32 %v2572, %v2582
        %s2587 = sld [smem:[#allocation10 + $0x93]]
        %v2588 = vstv %s2587
        %v2589 = vmul.f32 %v2551, %v2588
        %v2590 = vmul.f32 %v2552, %v2588
        %2593 = vrot.lane.b32.xlu0 %v2589, 125
        %v2594 = vpop.permute.xlu0 %2593
        %2595 = vrot.lane.b32.xlu0 %v2590, 125
        %v2596 = vpop.permute.xlu0 %2595
        %v2599 = vadd.f32 %v2585, %v2594
        %v2600 = vadd.f32 %v2586, %v2596
        %s2601 = sld [smem:[#allocation10 + $0x94]]
        %v2602 = vstv %s2601
        %v2603 = vmul.f32 %v2551, %v2602
        %v2604 = vmul.f32 %v2552, %v2602
        %2607 = vrot.lane.b32.xlu0 %v2603, 124
        %v2608 = vpop.permute.xlu0 %2607
        %2609 = vrot.lane.b32.xlu0 %v2604, 124
        %v2610 = vpop.permute.xlu0 %2609
        %v2613 = vadd.f32 %v2599, %v2608
        %v2614 = vadd.f32 %v2600, %v2610
        %s2615 = sld [smem:[#allocation10 + $0x95]]
        %v2616 = vstv %s2615
        %v2617 = vmul.f32 %v2551, %v2616
        %v2618 = vmul.f32 %v2552, %v2616
        %2621 = vrot.lane.b32.xlu0 %v2617, 123
        %v2622 = vpop.permute.xlu0 %2621
        %2623 = vrot.lane.b32.xlu0 %v2618, 123
        %v2624 = vpop.permute.xlu0 %2623
        %v2627 = vadd.f32 %v2613, %v2622
        %v2628 = vadd.f32 %v2614, %v2624
        %s2629 = sld [smem:[#allocation10 + $0x96]]
        %v2630 = vstv %s2629
        %v2631 = vmul.f32 %v2551, %v2630
        %v2632 = vmul.f32 %v2552, %v2630
        %2635 = vrot.lane.b32.xlu0 %v2631, 122
        %v2636 = vpop.permute.xlu0 %2635
        %2637 = vrot.lane.b32.xlu0 %v2632, 122
        %v2638 = vpop.permute.xlu0 %2637
        %v2641 = vadd.f32 %v2627, %v2636
        %v2642 = vadd.f32 %v2628, %v2638
        %s2643 = sld [smem:[#allocation10 + $0x97]]
        %v2644 = vstv %s2643
        %v2645 = vmul.f32 %v2551, %v2644
        %v2646 = vmul.f32 %v2552, %v2644
        %2649 = vrot.lane.b32.xlu0 %v2645, 121
        %v2650 = vpop.permute.xlu0 %2649
        %2651 = vrot.lane.b32.xlu0 %v2646, 121
        %v2652 = vpop.permute.xlu0 %2651
        %v2655 = vadd.f32 %v2641, %v2650
        %v2656 = vadd.f32 %v2642, %v2652
        %s2657 = sld [smem:[#allocation10 + $0x98]]
        %v2658 = vstv %s2657
        %v2659 = vmul.f32 %v2551, %v2658
        %v2660 = vmul.f32 %v2552, %v2658
        %2663 = vrot.lane.b32.xlu0 %v2659, 120
        %v2664 = vpop.permute.xlu0 %2663
        %2665 = vrot.lane.b32.xlu0 %v2660, 120
        %v2666 = vpop.permute.xlu0 %2665
        %v2669 = vadd.f32 %v2655, %v2664
        %v2670 = vadd.f32 %v2656, %v2666
        %v2671 = vld [vmem:[%s507 + $0x8] sm:$0xff]
        %v2672 = vld [vmem:[%s507 + $0x10] sm:$0xff]
        %s2673 = sld [smem:[#allocation10 + $0x99]]
        %v2674 = vstv %s2673
        %v2675 = vmul.f32 %v2671, %v2674
        %v2676 = vmul.f32 %v2672, %v2674
        %v2677 = vadd.f32 %v2669, %v2675
        %v2678 = vadd.f32 %v2670, %v2676
        %s2679 = sld [smem:[#allocation10 + $0x9a]]
        %v2680 = vstv %s2679
        %v2681 = vmul.f32 %v2671, %v2680
        %v2682 = vmul.f32 %v2672, %v2680
        %2685 = vrot.lane.b32.xlu0 %v2681, 127
        %v2686 = vpop.permute.xlu0 %2685
        %2687 = vrot.lane.b32.xlu0 %v2682, 127
        %v2688 = vpop.permute.xlu0 %2687
        %v2691 = vadd.f32 %v2677, %v2686
        %v2692 = vadd.f32 %v2678, %v2688
        %s2693 = sld [smem:[#allocation10 + $0x9b]]
        %v2694 = vstv %s2693
        %v2695 = vmul.f32 %v2671, %v2694
        %v2696 = vmul.f32 %v2672, %v2694
        %2699 = vrot.lane.b32.xlu0 %v2695, 126
        %v2700 = vpop.permute.xlu0 %2699
        %2701 = vrot.lane.b32.xlu0 %v2696, 126
        %v2702 = vpop.permute.xlu0 %2701
        %v2705 = vadd.f32 %v2691, %v2700
        %v2706 = vadd.f32 %v2692, %v2702
        %s2707 = sld [smem:[#allocation10 + $0x9c]]
        %v2708 = vstv %s2707
        %v2709 = vmul.f32 %v2671, %v2708
        %v2710 = vmul.f32 %v2672, %v2708
        %2713 = vrot.lane.b32.xlu0 %v2709, 125
        %v2714 = vpop.permute.xlu0 %2713
        %2715 = vrot.lane.b32.xlu0 %v2710, 125
        %v2716 = vpop.permute.xlu0 %2715
        %v2719 = vadd.f32 %v2705, %v2714
        %v2720 = vadd.f32 %v2706, %v2716
        %s2721 = sld [smem:[#allocation10 + $0x9d]]
        %v2722 = vstv %s2721
        %v2723 = vmul.f32 %v2671, %v2722
        %v2724 = vmul.f32 %v2672, %v2722
        %2727 = vrot.lane.b32.xlu0 %v2723, 124
        %v2728 = vpop.permute.xlu0 %2727
        %2729 = vrot.lane.b32.xlu0 %v2724, 124
        %v2730 = vpop.permute.xlu0 %2729
        %v2733 = vadd.f32 %v2719, %v2728
        %v2734 = vadd.f32 %v2720, %v2730
        %s2735 = sld [smem:[#allocation10 + $0x9e]]
        %v2736 = vstv %s2735
        %v2737 = vmul.f32 %v2671, %v2736
        %v2738 = vmul.f32 %v2672, %v2736
        %2741 = vrot.lane.b32.xlu0 %v2737, 123
        %v2742 = vpop.permute.xlu0 %2741
        %2743 = vrot.lane.b32.xlu0 %v2738, 123
        %v2744 = vpop.permute.xlu0 %2743
        %v2747 = vadd.f32 %v2733, %v2742
        %v2748 = vadd.f32 %v2734, %v2744
        %s2749 = sld [smem:[#allocation10 + $0x9f]]
        %v2750 = vstv %s2749
        %v2751 = vmul.f32 %v2671, %v2750
        %v2752 = vmul.f32 %v2672, %v2750
        %2755 = vrot.lane.b32.xlu0 %v2751, 122
        %v2756 = vpop.permute.xlu0 %2755
        %2757 = vrot.lane.b32.xlu0 %v2752, 122
        %v2758 = vpop.permute.xlu0 %2757
        %v2761 = vadd.f32 %v2747, %v2756
        %v2762 = vadd.f32 %v2748, %v2758
        %s2763 = sld [smem:[#allocation10 + $0xa0]]
        %v2764 = vstv %s2763
        %v2765 = vmul.f32 %v2671, %v2764
        %v2766 = vmul.f32 %v2672, %v2764
        %2769 = vrot.lane.b32.xlu0 %v2765, 121
        %v2770 = vpop.permute.xlu0 %2769
        %2771 = vrot.lane.b32.xlu0 %v2766, 121
        %v2772 = vpop.permute.xlu0 %2771
        %v2775 = vadd.f32 %v2761, %v2770
        %v2776 = vadd.f32 %v2762, %v2772
        %s2777 = sld [smem:[#allocation10 + $0xa1]]
        %v2778 = vstv %s2777
        %v2779 = vmul.f32 %v2671, %v2778
        %v2780 = vmul.f32 %v2672, %v2778
        %2783 = vrot.lane.b32.xlu0 %v2779, 120
        %v2784 = vpop.permute.xlu0 %2783
        %2785 = vrot.lane.b32.xlu0 %v2780, 120
        %v2786 = vpop.permute.xlu0 %2785
        %v2789 = vadd.f32 %v2775, %v2784
        %v2790 = vadd.f32 %v2776, %v2786
        %v2791 = vxor.u32 %v2789, 2147483648
        %v2792 = vxor.u32 %v2790, 2147483648
        %v2793 = vmul.f32 %v2791, 1.442695
        %v2794 = vpow.pop %v2793
        %v2795 = vmul.f32 %v2792, 1.442695
        %v2796 = vpow.pop %v2795
        %v2797 = vadd.f32 %v2794, 1.0
        %v2798 = vadd.f32 %v2796, 1.0
        %v2799 = vrcp.pop %v2797
        %v2800 = vmul.f32 1.0, %v2799
        %v2801 = vrcp.pop %v2798
        %v2802 = vmul.f32 1.0, %v2801
        %v2803 = vlaneseq
        %vm2804 = vcmp.ge.s32.totalorder %v2803, 0
        %vm2805 = vcmp.lt.s32.totalorder %v2803, 16
        %vm2806 = vmand %vm2804, %vm2805
        %2807 = vst.msk [vmem:[#allocation3] sm:$0x1] %vm2806, %v2800
        %v2810 = vunpack.c.l.s4 1966171168
        %v2811 = vunpack.c.0.s8 %v2810
        %v2812 = vlaneseq
        %v2813 = vshrl.u32 %v2812, 7
        %v2814 = vsub.s32 %v2811, %v2813
        %v2815 = vrot.slane %v2800, %v2814
        %v2816 = vcombine.high %v2815, %v2815
        %v2818 = vunpack.c.l.s4 1966171168
        %v2819 = vunpack.c.0.s8 %v2818
        %v2820 = vlaneseq
        %v2821 = vshrl.u32 %v2820, 7
        %v2822 = vsub.s32 %v2819, %v2821
        %v2823 = vrot.slane %v2815, %v2822
        %v2825 = vunpack.c.l.s4 1966171168
        %v2826 = vunpack.c.0.s8 %v2825
        %v2827 = vlaneseq
        %v2828 = vshrl.u32 %v2827, 7
        %v2829 = vsub.s32 %v2826, %v2828
        %v2830 = vrot.slane %v2816, %v2829
        %2831 = vrot.lane.b32.xlu0 %v2830, 16
        %v2832 = vpop.permute.xlu0 %2831
        %vm2834 = vcmp.ge.s32.totalorder %v2803, 16
        %vm2835 = vcmp.lt.s32.totalorder %v2803, 32
        %vm2836 = vmand %vm2834, %vm2835
        %2837 = vst.msk [vmem:[#allocation3] sm:$0x1] %vm2836, %v2832
        %v2838 = vcombine.high %v2823, %v2823
        %2839 = vrot.lane.b32.xlu0 %v2838, 32
        %v2840 = vpop.permute.xlu0 %2839
        %vm2842 = vcmp.ge.s32.totalorder %v2803, 32
        %vm2843 = vcmp.lt.s32.totalorder %v2803, 48
        %vm2844 = vmand %vm2842, %vm2843
        %2845 = vst.msk [vmem:[#allocation3] sm:$0x1] %vm2844, %v2840
        %v2846 = vcombine.high %v2830, %v2830
        %2847 = vrot.lane.b32.xlu0 %v2846, 48
        %v2848 = vpop.permute.xlu0 %2847
        %vm2850 = vcmp.ge.s32.totalorder %v2803, 48
        %vm2851 = vcmp.lt.s32.totalorder %v2803, 64
        %vm2852 = vmand %vm2850, %vm2851
        %2853 = vst.msk [vmem:[#allocation3] sm:$0x1] %vm2852, %v2848
        %v2854 = vcombine.high %v2800, %v2800
        %v2856 = vunpack.c.l.s4 1966171168
        %v2857 = vunpack.c.0.s8 %v2856
        %v2858 = vlaneseq
        %v2859 = vshrl.u32 %v2858, 7
        %v2860 = vsub.s32 %v2857, %v2859
        %v2861 = vrot.slane %v2854, %v2860
        %v2863 = vunpack.c.l.s4 1966171168
        %v2864 = vunpack.c.0.s8 %v2863
        %v2865 = vlaneseq
        %v2866 = vshrl.u32 %v2865, 7
        %v2867 = vsub.s32 %v2864, %v2866
        %v2868 = vrot.slane %v2861, %v2867
        %2869 = vrot.lane.b32.xlu0 %v2868, 64
        %v2870 = vpop.permute.xlu0 %2869
        %vm2872 = vcmp.ge.s32.totalorder %v2803, 64
        %vm2873 = vcmp.lt.s32.totalorder %v2803, 80
        %vm2874 = vmand %vm2872, %vm2873
        %2875 = vst.msk [vmem:[#allocation3] sm:$0x1] %vm2874, %v2870
        %v2876 = vcombine.high %v2861, %v2861
        %v2878 = vunpack.c.l.s4 1966171168
        %v2879 = vunpack.c.0.s8 %v2878
        %v2880 = vlaneseq
        %v2881 = vshrl.u32 %v2880, 7
        %v2882 = vsub.s32 %v2879, %v2881
        %v2883 = vrot.slane %v2876, %v2882
        %2884 = vrot.lane.b32.xlu0 %v2883, 80
        %v2885 = vpop.permute.xlu0 %2884
        %vm2887 = vcmp.ge.s32.totalorder %v2803, 80
        %vm2888 = vcmp.lt.s32.totalorder %v2803, 96
        %vm2889 = vmand %vm2887, %vm2888
        %2890 = vst.msk [vmem:[#allocation3] sm:$0x1] %vm2889, %v2885
        %v2891 = vcombine.high %v2868, %v2868
        %2892 = vrot.lane.b32.xlu0 %v2891, 96
        %v2893 = vpop.permute.xlu0 %2892
        %vm2895 = vcmp.ge.s32.totalorder %v2803, 96
        %vm2896 = vcmp.lt.s32.totalorder %v2803, 112
        %vm2897 = vmand %vm2895, %vm2896
        %2898 = vst.msk [vmem:[#allocation3] sm:$0x1] %vm2897, %v2893
        %v2899 = vcombine.high %v2883, %v2883
        %2900 = vrot.lane.b32.xlu0 %v2899, 112
        %v2901 = vpop.permute.xlu0 %2900
        %vm2903 = vcmp.ge.s32.totalorder %v2803, 112
        %vm2904 = vcmp.lt.s32.totalorder %v2803, 128
        %vm2905 = vmand %vm2903, %vm2904
        %2906 = vst.msk [vmem:[#allocation3] sm:$0x1] %vm2905, %v2901
        %2907 = vst.msk [vmem:[#allocation3 + $0x1] sm:$0x1] %vm2806, %v2802
        %v2910 = vunpack.c.l.s4 1966171168
        %v2911 = vunpack.c.0.s8 %v2910
        %v2912 = vlaneseq
        %v2913 = vshrl.u32 %v2912, 7
        %v2914 = vsub.s32 %v2911, %v2913
        %v2915 = vrot.slane %v2802, %v2914
        %v2916 = vcombine.high %v2915, %v2915
        %v2918 = vunpack.c.l.s4 1966171168
        %v2919 = vunpack.c.0.s8 %v2918
        %v2920 = vlaneseq
        %v2921 = vshrl.u32 %v2920, 7
        %v2922 = vsub.s32 %v2919, %v2921
        %v2923 = vrot.slane %v2915, %v2922
        %v2925 = vunpack.c.l.s4 1966171168
        %v2926 = vunpack.c.0.s8 %v2925
        %v2927 = vlaneseq
        %v2928 = vshrl.u32 %v2927, 7
        %v2929 = vsub.s32 %v2926, %v2928
        %v2930 = vrot.slane %v2916, %v2929
        %2931 = vrot.lane.b32.xlu0 %v2930, 16
        %v2932 = vpop.permute.xlu0 %2931
        %2934 = vst.msk [vmem:[#allocation3 + $0x1] sm:$0x1] %vm2836, %v2932
        %v2935 = vcombine.high %v2923, %v2923
        %2936 = vrot.lane.b32.xlu0 %v2935, 32
        %v2937 = vpop.permute.xlu0 %2936
        %2939 = vst.msk [vmem:[#allocation3 + $0x1] sm:$0x1] %vm2844, %v2937
        %v2940 = vcombine.high %v2930, %v2930
        %2941 = vrot.lane.b32.xlu0 %v2940, 48
        %v2942 = vpop.permute.xlu0 %2941
        %2944 = vst.msk [vmem:[#allocation3 + $0x1] sm:$0x1] %vm2852, %v2942
        %v2945 = vcombine.high %v2802, %v2802
        %v2947 = vunpack.c.l.s4 1966171168
        %v2948 = vunpack.c.0.s8 %v2947
        %v2949 = vlaneseq
        %v2950 = vshrl.u32 %v2949, 7
        %v2951 = vsub.s32 %v2948, %v2950
        %v2952 = vrot.slane %v2945, %v2951
        %v2954 = vunpack.c.l.s4 1966171168
        %v2955 = vunpack.c.0.s8 %v2954
        %v2956 = vlaneseq
        %v2957 = vshrl.u32 %v2956, 7
        %v2958 = vsub.s32 %v2955, %v2957
        %v2959 = vrot.slane %v2952, %v2958
        %2960 = vrot.lane.b32.xlu0 %v2959, 64
        %v2961 = vpop.permute.xlu0 %2960
        %2963 = vst.msk [vmem:[#allocation3 + $0x1] sm:$0x1] %vm2874, %v2961
        %v2964 = vcombine.high %v2952, %v2952
        %v2966 = vunpack.c.l.s4 1966171168
        %v2967 = vunpack.c.0.s8 %v2966
        %v2968 = vlaneseq
        %v2969 = vshrl.u32 %v2968, 7
        %v2970 = vsub.s32 %v2967, %v2969
        %v2971 = vrot.slane %v2964, %v2970
        %2972 = vrot.lane.b32.xlu0 %v2971, 80
        %v2973 = vpop.permute.xlu0 %2972
        %2975 = vst.msk [vmem:[#allocation3 + $0x1] sm:$0x1] %vm2889, %v2973
        %v2976 = vcombine.high %v2959, %v2959
        %2977 = vrot.lane.b32.xlu0 %v2976, 96
        %v2978 = vpop.permute.xlu0 %2977
        %2980 = vst.msk [vmem:[#allocation3 + $0x1] sm:$0x1] %vm2897, %v2978
        %v2981 = vcombine.high %v2971, %v2971
        %2982 = vrot.lane.b32.xlu0 %v2981, 112
        %v2983 = vpop.permute.xlu0 %2982
        %2985 = vst.msk [vmem:[#allocation3 + $0x1] sm:$0x1] %vm2905, %v2983
        %s2986 = sld [smem:[#allocation5]]
        %v2987 = vld [vmem:[#allocation3] sm:$0x3]
        %v2988 = vstv %s2986
        %v2989 = vmul.f32 %v2988, %v2987
        %v2991 = vlaneseq
        %v2992 = vshrl.u32 %v2991, 7
        %v2993 = vsub.s32 0, %v2992
        %v2994 = vrot.slane %v2989, %v2993
        %v2995 = vlaneseq
        %v2996 = vshrl.u32 %v2995, 7
        %v2997 = vsub.s32 1, %v2996
        %v2998 = vrot.slane %v2989, %v2997
        %v3001 = vmul.f32 %v456, %v2994
        %v3002 = vmul.f32 %v457, %v2998
        %v3003 = vmul.f32 %v458, %v2994
        %v3004 = vmul.f32 %v459, %v2998
        %v3005 = vadd.f32 %v3001, %v3002
        %3006 = vadd.xlane.f32.xlu0 %v3005
        %v3007 = vpop.xlane.xlu0 %3006
        %v3008 = vadd.f32 %v3003, %v3004
        %3009 = vadd.xlane.f32.xlu0 %v3008
        %v3010 = vpop.xlane.xlu0 %3009
        %v3011 = vmul.f32 %v3007, %v404
        %v3012 = vmul.f32 %v3010, %v404
        %v3013 = vld [vmem:[%s4] sm:$0xff]
        %v3014 = vld [vmem:[%s4 + $0x8] sm:$0xff]
        %v3015 = vld [vmem:[%s6] sm:$0xff]
        %v3016 = vld [vmem:[%s6 + $0x8] sm:$0xff]
        %vm3017 = vcmask 130048
        %v3019 = vsel %vm3017, %v3013, 0
        %v3022 = vsel %vm3017, %v3014, 0
        %3024 = vmatprep.subr.mxu0 0.0
        %3025 = vmatpush1.msra.mxu0 0.0
        %3026 = vmatprep.subr.mxu0 0.0
        %3027 = vmatpush1.msra.mxu0 0.0
        %3028 = vmatprep.subr.mxu0 0.0
        %3029 = vmatpush1.msra.mxu0 0.0
        %3030 = vmatprep.subr.mxu0 0.0
        %3031 = vmatpush1.msra.mxu0 0.0
        %3032 = vmatprep.subr.mxu0 0.0
        %3033 = vmatpush1.msra.mxu0 0.0
        %3034 = vmatprep.subr.mxu0 0.0
        %3035 = vmatpush1.msra.mxu0 0.0
        %3036 = vmatprep.subr.mxu0 0.0
        %3037 = vmatpush1.msra.mxu0 0.0
        %3038 = vmatprep.subr.mxu0 0.0
        %3039 = vmatpush1.msra.mxu0 0.0
        %3040 = vmatprep.subr.mxu0 0.0
        %3041 = vmatpush1.msra.mxu0 0.0
        %3042 = vmatprep.subr.mxu0 0.0
        %3043 = vmatpush1.msra.mxu0 0.0
        %3044 = vmatprep.subr.mxu0 0.0
        %3045 = vmatpush1.msra.mxu0 0.0
        %3046 = vmatprep.subr.mxu0 0.0
        %3047 = vmatpush1.msra.mxu0 0.0
        %3048 = vmatprep.subr.mxu0 0.0
        %3049 = vmatpush1.msra.mxu0 0.0
        %3050 = vmatprep.subr.mxu0 0.0
        %3051 = vmatpush1.msra.mxu0 0.0
        %3052 = vmatprep.subr.mxu0 0.0
        %3053 = vmatpush1.msra.mxu0 %v3012
        %3054 = vmatprep.subr.mxu0 0.0
        %3055 = vmatpush1.msra.mxu0 %v3011
        %3056 = vmatprep.subr.mxu0 0.0
        %3057 = vmatpush2.msra.mxu0 0.0
        %3058 = vmatprep.subr.mxu0 0.0
        %3059 = vmatpush2.msra.mxu0 0.0
        %3060 = vmatprep.subr.mxu0 0.0
        %3061 = vmatpush2.msra.mxu0 0.0
        %3062 = vmatprep.subr.mxu0 0.0
        %3063 = vmatpush2.msra.mxu0 0.0
        %3064 = vmatprep.subr.mxu0 0.0
        %3065 = vmatpush2.msra.mxu0 0.0
        %3066 = vmatprep.subr.mxu0 0.0
        %3067 = vmatpush2.msra.mxu0 0.0
        %3068 = vmatprep.subr.mxu0 0.0
        %3069 = vmatpush2.msra.mxu0 0.0
        %3070 = vmatprep.subr.mxu0 0.0
        %3071 = vmatpush2.msra.mxu0 0.0
        %3072 = vmatprep.subr.mxu0 0.0
        %3073 = vmatpush2.msra.mxu0 0.0
        %3074 = vmatprep.subr.mxu0 0.0
        %3075 = vmatpush2.msra.mxu0 0.0
        %3076 = vmatprep.subr.mxu0 0.0
        %3077 = vmatpush2.msra.mxu0 0.0
        %3078 = vmatprep.subr.mxu0 0.0
        %3079 = vmatpush2.msra.mxu0 0.0
        %3080 = vmatprep.subr.mxu0 0.0
        %3081 = vmatpush2.msra.mxu0 0.0
        %3082 = vmatprep.subr.mxu0 0.0
        %3083 = vmatpush2.msra.mxu0 0.0
        %3084 = vmatprep.subr.mxu0 0.0
        %3085 = vmatpush2.msra.mxu0 0.0
        %3086 = vmatprep.subr.mxu0 0.0
        %3087 = vmatpush2.msra.mxu0 0.0
        %3088 = vmatprep.mubr.f32.mxu0 0.0
        %3089 = vmatmul.mubr.f32.gmra.mxu0 %v3019
        %v3090 = vpop.f32.mrf.mxu0
        %v3091 = vadd.f32 %v3015, %v3090
        %v3092 = vpop.f32.mrf.mxu0
        %3093 = vmatprep.mubr.f32.mxu0 0.0
        %3094 = vmatmul.mubr.f32.gmra.mxu0 %v3022
        %v3095 = vpop.f32.mrf.mxu0
        %v3096 = vadd.f32 %v3016, %v3095
        %v3097 = vpop.f32.mrf.mxu0
        %3098 = vdwg.mxu0
        %v3099 = vld [vmem:[%s3] sm:$0xff]
        %v3100 = vld [vmem:[%s3 + $0x8] sm:$0xff]
        %v3101 = vld [vmem:[%s5] sm:$0xff]
        %v3102 = vld [vmem:[%s5 + $0x8] sm:$0xff]
        %v3104 = vsel %vm3017, %v3101, 0
        %v3107 = vsel %vm3017, %v3102, 0
        %3109 = vmatprep.subr.mxu0 0.0
        %3110 = vmatpush1.msra.mxu0 0.0
        %3111 = vmatprep.subr.mxu0 0.0
        %3112 = vmatpush1.msra.mxu0 0.0
        %3113 = vmatprep.subr.mxu0 0.0
        %3114 = vmatpush1.msra.mxu0 0.0
        %3115 = vmatprep.subr.mxu0 0.0
        %3116 = vmatpush1.msra.mxu0 0.0
        %3117 = vmatprep.subr.mxu0 0.0
        %3118 = vmatpush1.msra.mxu0 0.0
        %3119 = vmatprep.subr.mxu0 0.0
        %3120 = vmatpush1.msra.mxu0 0.0
        %3121 = vmatprep.subr.mxu0 0.0
        %3122 = vmatpush1.msra.mxu0 0.0
        %3123 = vmatprep.subr.mxu0 0.0
        %3124 = vmatpush1.msra.mxu0 0.0
        %3125 = vmatprep.subr.mxu0 0.0
        %3126 = vmatpush1.msra.mxu0 0.0
        %3127 = vmatprep.subr.mxu0 0.0
        %3128 = vmatpush1.msra.mxu0 0.0
        %3129 = vmatprep.subr.mxu0 0.0
        %3130 = vmatpush1.msra.mxu0 0.0
        %3131 = vmatprep.subr.mxu0 0.0
        %3132 = vmatpush1.msra.mxu0 0.0
        %3133 = vmatprep.subr.mxu0 0.0
        %3134 = vmatpush1.msra.mxu0 0.0
        %3135 = vmatprep.subr.mxu0 0.0
        %3136 = vmatpush1.msra.mxu0 0.0
        %3137 = vmatprep.subr.mxu0 %v397
        %3138 = vmatpush1.msra.mxu0 %v396
        %3139 = vmatprep.subr.mxu0 %v395
        %3140 = vmatpush1.msra.mxu0 %v394
        %3141 = vmatprep.subr.mxu0 0.0
        %3142 = vmatpush2.msra.mxu0 0.0
        %3143 = vmatprep.subr.mxu0 0.0
        %3144 = vmatpush2.msra.mxu0 0.0
        %3145 = vmatprep.subr.mxu0 0.0
        %3146 = vmatpush2.msra.mxu0 0.0
        %3147 = vmatprep.subr.mxu0 0.0
        %3148 = vmatpush2.msra.mxu0 0.0
        %3149 = vmatprep.subr.mxu0 0.0
        %3150 = vmatpush2.msra.mxu0 0.0
        %3151 = vmatprep.subr.mxu0 0.0
        %3152 = vmatpush2.msra.mxu0 0.0
        %3153 = vmatprep.subr.mxu0 0.0
        %3154 = vmatpush2.msra.mxu0 0.0
        %3155 = vmatprep.subr.mxu0 0.0
        %3156 = vmatpush2.msra.mxu0 0.0
        %3157 = vmatprep.subr.mxu0 0.0
        %3158 = vmatpush2.msra.mxu0 0.0
        %3159 = vmatprep.subr.mxu0 0.0
        %3160 = vmatpush2.msra.mxu0 0.0
        %3161 = vmatprep.subr.mxu0 0.0
        %3162 = vmatpush2.msra.mxu0 0.0
        %3163 = vmatprep.subr.mxu0 0.0
        %3164 = vmatpush2.msra.mxu0 0.0
        %3165 = vmatprep.subr.mxu0 0.0
        %3166 = vmatpush2.msra.mxu0 0.0
        %3167 = vmatprep.subr.mxu0 0.0
        %3168 = vmatpush2.msra.mxu0 0.0
        %3169 = vmatprep.subr.mxu0 0.0
        %3170 = vmatpush2.msra.mxu0 0.0
        %3171 = vmatprep.subr.mxu0 0.0
        %3172 = vmatpush2.msra.mxu0 0.0
        %3173 = vmatprep.mubr.f32.mxu0 0.0
        %3174 = vmatmul.mubr.f32.gmra.mxu0 %v3104
        %v3175 = vpop.f32.mrf.mxu0
        %v3176 = vadd.f32 0.0, %v3175
        %v3177 = vpop.f32.mrf.mxu0
        %v3178 = vadd.f32 0.0, %v3177
        %3179 = vmatprep.mubr.f32.mxu0 0.0
        %3180 = vmatmul.mubr.f32.gmra.mxu0 %v3107
        %v3181 = vpop.f32.mrf.mxu0
        %v3182 = vadd.f32 0.0, %v3181
        %v3183 = vpop.f32.mrf.mxu0
        %v3184 = vadd.f32 0.0, %v3183
        %3185 = vdwg.mxu0
        %v3187 = vsel %vm3017, %v3099, 0
        %v3190 = vsel %vm3017, %v3100, 0
        %3192 = vmatprep.subr.mxu0 0.0
        %3193 = vmatpush1.msra.mxu0 0.0
        %3194 = vmatprep.subr.mxu0 0.0
        %3195 = vmatpush1.msra.mxu0 0.0
        %3196 = vmatprep.subr.mxu0 0.0
        %3197 = vmatpush1.msra.mxu0 0.0
        %3198 = vmatprep.subr.mxu0 0.0
        %3199 = vmatpush1.msra.mxu0 0.0
        %3200 = vmatprep.subr.mxu0 0.0
        %3201 = vmatpush1.msra.mxu0 0.0
        %3202 = vmatprep.subr.mxu0 0.0
        %3203 = vmatpush1.msra.mxu0 0.0
        %3204 = vmatprep.subr.mxu0 0.0
        %3205 = vmatpush1.msra.mxu0 0.0
        %3206 = vmatprep.subr.mxu0 0.0
        %3207 = vmatpush1.msra.mxu0 0.0
        %3208 = vmatprep.subr.mxu0 0.0
        %3209 = vmatpush1.msra.mxu0 0.0
        %3210 = vmatprep.subr.mxu0 0.0
        %3211 = vmatpush1.msra.mxu0 0.0
        %3212 = vmatprep.subr.mxu0 0.0
        %3213 = vmatpush1.msra.mxu0 0.0
        %3214 = vmatprep.subr.mxu0 0.0
        %3215 = vmatpush1.msra.mxu0 0.0
        %3216 = vmatprep.subr.mxu0 0.0
        %3217 = vmatpush1.msra.mxu0 0.0
        %3218 = vmatprep.subr.mxu0 0.0
        %3219 = vmatpush1.msra.mxu0 0.0
        %3220 = vmatprep.subr.mxu0 %v3004
        %3221 = vmatpush1.msra.mxu0 %v3003
        %3222 = vmatprep.subr.mxu0 %v3002
        %3223 = vmatpush1.msra.mxu0 %v3001
        %3224 = vmatprep.subr.mxu0 0.0
        %3225 = vmatpush2.msra.mxu0 0.0
        %3226 = vmatprep.subr.mxu0 0.0
        %3227 = vmatpush2.msra.mxu0 0.0
        %3228 = vmatprep.subr.mxu0 0.0
        %3229 = vmatpush2.msra.mxu0 0.0
        %3230 = vmatprep.subr.mxu0 0.0
        %3231 = vmatpush2.msra.mxu0 0.0
        %3232 = vmatprep.subr.mxu0 0.0
        %3233 = vmatpush2.msra.mxu0 0.0
        %3234 = vmatprep.subr.mxu0 0.0
        %3235 = vmatpush2.msra.mxu0 0.0
        %3236 = vmatprep.subr.mxu0 0.0
        %3237 = vmatpush2.msra.mxu0 0.0
        %3238 = vmatprep.subr.mxu0 0.0
        %3239 = vmatpush2.msra.mxu0 0.0
        %3240 = vmatprep.subr.mxu0 0.0
        %3241 = vmatpush2.msra.mxu0 0.0
        %3242 = vmatprep.subr.mxu0 0.0
        %3243 = vmatpush2.msra.mxu0 0.0
        %3244 = vmatprep.subr.mxu0 0.0
        %3245 = vmatpush2.msra.mxu0 0.0
        %3246 = vmatprep.subr.mxu0 0.0
        %3247 = vmatpush2.msra.mxu0 0.0
        %3248 = vmatprep.subr.mxu0 0.0
        %3249 = vmatpush2.msra.mxu0 0.0
        %3250 = vmatprep.subr.mxu0 0.0
        %3251 = vmatpush2.msra.mxu0 0.0
        %3252 = vmatprep.subr.mxu0 0.0
        %3253 = vmatpush2.msra.mxu0 0.0
        %3254 = vmatprep.subr.mxu0 0.0
        %3255 = vmatpush2.msra.mxu0 0.0
        %3256 = vmatprep.mubr.f32.mxu0 0.0
        %3257 = vmatmul.mubr.f32.gmra.mxu0 %v3187
        %v3258 = vpop.f32.mrf.mxu0
        %v3259 = vadd.f32 %v3176, %v3258
        %v3260 = vpop.f32.mrf.mxu0
        %v3261 = vadd.f32 %v3178, %v3260
        %3262 = vmatprep.mubr.f32.mxu0 0.0
        %3263 = vmatmul.mubr.f32.gmra.mxu0 %v3190
        %v3264 = vpop.f32.mrf.mxu0
        %v3265 = vadd.f32 %v3182, %v3264
        %v3266 = vpop.f32.mrf.mxu0
        %v3267 = vadd.f32 %v3184, %v3266
        %3268 = vdwg.mxu0
        %3270 = vset.pattern.permute.xlu0 0
        %3271 = vperm.xlu0 %3270, %v3091
        %v3272 = vpop.permute.xlu0 %3271
        %3275 = vset.pattern.permute.xlu0 0
        %3276 = vperm.xlu0 %3275, %v3096
        %v3277 = vpop.permute.xlu0 %3276
        %v3279 = vadd.f32 %v3259, %v3272
        %v3280 = vadd.f32 %v3261, %v3272
        %v3281 = vadd.f32 %v3265, %v3277
        %v3282 = vadd.f32 %v3267, %v3277
        %3283 = vst [vmem:[%s393] sm:$0xff] %v3279
        %3284 = vst [vmem:[%s393 + $0x8] sm:$0xff] %v3280
        %3285 = vst [vmem:[%s393 + $0x10] sm:$0xff] %v3281
        %3286 = vst [vmem:[%s393 + $0x18] sm:$0xff] %v3282
        %s3287 = sand.u32 %s253, 1
        %s3288 = scalar_lea.sflag [#allocation8], %s3287
        %s3289 = sand.u32 %s253, 1
        %s3290 = smul.addr %s3289, 32
        %s3291 = scalar_lea.vmem [#allocation11], %s3290
        // Predicated region
        $region69: #{tpu_custom_call.1} parent=59 // pred_check
          %p3292 = pneg %p263
        $region70: #{tpu_custom_call.1} parent=59 // pred_check_branch
          %3294 = sbr.rel (%p3292) target = $region72
        $region71: #{tpu_custom_call.1} parent=59 // pred_region
          %s3296 = ssub.s32 512, 512
          %3297 = vsyncadd %s3288, %s3296
          %s3298 = smul.addr %s30, 4
          %s3299 = smul.addr %s3298, 128
          %s3300 = scalar_lea.hbm %s10, %s3299
          %s3301 = sshll.u32 %s3291, 4
          %s3302 = int_to_ptr.vmem [resolvable:$true] %s3301
          %3307 = dma.vmem_to_hbm [thread:$0]  %s3302, 512, %s3300, %s3288, 256, 256, 16
        $region72: #{tpu_custom_call.1} parent=59 // pred_fallthru
          _
      $region60: #{tpu_custom_call.1} parent=5 // pred_fallthru
        _
      %p3308 = scmp.le.s32.totalorder 2, %s25
      // Predicated region
      $region73: #{tpu_custom_call.1} parent=5 // pred_check
        %p3309 = pneg %p3308
      $region74: #{tpu_custom_call.1} parent=5 // pred_check_branch
        %3311 = sbr.rel (%p3309) target = $region76
      $region75: #{tpu_custom_call.1} parent=5 // pred_region
        %s3312 = ssub.s32 %s25, 2
        // Predicated region
        $region77: #{tpu_custom_call.1} parent=75 // pred_check
          %p3313 = pneg %p269
        $region78: #{tpu_custom_call.1} parent=75 // pred_check_branch
          %3315 = sbr.rel (%p3313) target = $region80
        $region79: #{tpu_custom_call.1} parent=75 // pred_region
          %s3316 = sand.u32 %s254, 1
          %s3317 = scalar_lea.sflag [#allocation8], %s3316
          %s3318 = sand.u32 %s254, 1
          %s3319 = smul.addr %s3318, 32
          %s3320 = scalar_lea.vmem [#allocation11], %s3319
          %3321 = dma.done %s3317, 512
        $region80: #{tpu_custom_call.1} parent=75 // pred_fallthru
          _
      $region76: #{tpu_custom_call.1} parent=5 // pred_fallthru
        _
    $region6: #{tpu_custom_call.1} parent=1 // loop_footer
      %s29 = sadd.s32 1, %s25
    $region7: #{tpu_custom_call.1} parent=1 // loop_footer_branch
      %24 = sbr.rel target = $region3
    $region8: #{tpu_custom_call.1} parent=1 // loop_exit
      _
    %3322 = vsyncpa [#allocation7], 1
    %s3323 = scalar_lea.sflag [#allocation7], 1
    %3324 = vsyncpa %s3323, 1
    %3325 = vsyncpa [#allocation8], 1
    %s3326 = scalar_lea.sflag [#allocation8], 1
    %3327 = vsyncpa %s3326, 1
    %3328 = vsyncpa [#allocation9], 1
    %s3329 = scalar_lea.sflag [#allocation9], 1
    %3330 = vsyncpa %s3329, 1

</llo_original>
